<compile_context>
chip_gen: v7x
topology: tpu7x:2x2x1
jax: 0.10.0
libtpu: 0.0.40
codegen_flags: <defaults>
</compile_context>

<pallas_src>
import functools

import jax
import jax.numpy as jnp
from jax.experimental import pallas as pl
from jax.experimental.pallas import tpu as pltpu


def _silu(x):
    return x * jax.nn.sigmoid(x)


def _round_up(x, m):
    return (x + m - 1) // m * m


def _cdiv(a, b):
    return (a + b - 1) // b


# ---------------------------------------------------------------------------
# Kernel: one grid step processes either one node-row tile or one edge-row
# tile (selected by grid position) through the fused 4-layer SiLU MLP +
# LayerNorm of the matching parameter set, and writes the matching output
# tile.  Both parameter sets are tiny (hidden=128) and stay resident in VMEM
# for the whole grid (constant block index -> DMA'd exactly once).
# ---------------------------------------------------------------------------
def _encoder_pair_kernel(node_x_ref, edge_x_ref,
                         nw1, nb1, nw2, nb2, nw3, nb3, nw4, nb4, ng, nbt,
                         ew1, eb1, ew2, eb2, ew3, eb3, ew4, eb4, eg, ebt,
                         node_o_ref, edge_o_ref,
                         *, node_tiles):
    i = pl.program_id(0)
    f32 = jnp.float32

    def mlp_ln(x, w1, b1, w2, b2, w3, b3, w4, b4, gamma, beta):
        mm = w1.dtype  # matmul operand dtype (bf16 weights -> bf16 MXU ops)

        def dense(h, w_ref, b_ref):
            # f32 accumulation on the MXU; (1, d) bias broadcasts per-vreg.
            return (jnp.dot(h.astype(mm), w_ref[...],
                            preferred_element_type=f32)
                    + b_ref[...].astype(f32))

        h = x.astype(f32)
        h = _silu(dense(h, w1, b1))
        h = _silu(dense(h, w2, b2))
        h = _silu(dense(h, w3, b3))
        h = dense(h, w4, b4)

        # One-pass LayerNorm stats: sum(h) and sum(h*h) are independent
        # cross-lane reductions, so the XLUs can overlap them.
        mean = jnp.mean(h, axis=-1, keepdims=True)
        mean_sq = jnp.mean(h * h, axis=-1, keepdims=True)
        var = jnp.maximum(mean_sq - mean * mean, 0.0)
        h_norm = (h - mean) * jax.lax.rsqrt(var + 1e-5)
        return h_norm * gamma[...].astype(f32) + beta[...].astype(f32)

    @pl.when(i < node_tiles)
    def _():
        node_o_ref[...] = mlp_ln(node_x_ref[...], nw1, nb1, nw2, nb2,
                                 nw3, nb3, nw4, nb4, ng, nbt
                                 ).astype(node_o_ref.dtype)

    @pl.when(i >= node_tiles)
    def _():
        edge_o_ref[...] = mlp_ln(edge_x_ref[...], ew1, eb1, ew2, eb2,
                                 ew3, eb3, ew4, eb4, eg, ebt
                                 ).astype(edge_o_ref.dtype)


# ---------------------------------------------------------------------------
# Parameter construction (shapes match build_mlp; PyTorch Linear init).
# bf16 params are MXU-native and halve weight DMA; pass dtype=jnp.float32 for
# an exact-f32 parameter path.
# ---------------------------------------------------------------------------
def init_mlp_params(key, in_size, hidden_size, out_size, dtype=jnp.bfloat16):
    keys = jax.random.split(key, 8)
    dims = [(in_size, hidden_size),
            (hidden_size, hidden_size),
            (hidden_size, hidden_size),
            (hidden_size, out_size)]
    params = []
    for i, (din, dout) in enumerate(dims):
        bound = 1.0 / (din ** 0.5)
        w = jax.random.uniform(keys[2 * i], (din, dout), jnp.float32,
                               minval=-bound, maxval=bound).astype(dtype)
        b = jax.random.uniform(keys[2 * i + 1], (1, dout), jnp.float32,
                               minval=-bound, maxval=bound).astype(dtype)
        params.extend([w, b])
    gamma = jnp.ones((1, out_size), dtype)
    beta = jnp.zeros((1, out_size), dtype)
    params.extend([gamma, beta])
    return tuple(params)


# ---------------------------------------------------------------------------
# Pure-JAX reference for correctness checking.
# ---------------------------------------------------------------------------
def _ref_mlp_layernorm(x, params, match_kernel_precision=True):
    w1, b1, w2, b2, w3, b3, w4, b4, gamma, beta = params
    f32 = jnp.float32
    mm = w1.dtype if match_kernel_precision else f32

    def dense(h, w, b):
        return (jnp.dot(h.astype(mm), w.astype(mm),
                        preferred_element_type=f32) + b.astype(f32))

    h = x.astype(f32)
    h = _silu(dense(h, w1, b1))
    h = _silu(dense(h, w2, b2))
    h = _silu(dense(h, w3, b3))
    h = dense(h, w4, b4)
    mean = jnp.mean(h, axis=-1, keepdims=True)
    var = jnp.mean(jnp.square(h - mean), axis=-1, keepdims=True)
    hn = (h - mean) * jax.lax.rsqrt(var + 1e-5)
    return hn * gamma.astype(f32) + beta.astype(f32)


# ---------------------------------------------------------------------------
# Encoder forward: both MLPs fused into a single pallas_call, no pad/concat.
# ---------------------------------------------------------------------------
@functools.partial(jax.jit, static_argnames=("tile_rows", "out_dtype"))
def encoder_forward(node_attr, edge_attr, edge_index, nb_params, eb_params,
                    *, tile_rows=1024, out_dtype=None):
    """Pallas equivalent of Encoder.forward -> (node_out, edge_out, edge_index)."""
    n_node, in_node = node_attr.shape
    n_edge, in_edge = edge_attr.shape
    hidden = nb_params[0].shape[1]
    out_size = nb_params[6].shape[1]
    assert eb_params[0].shape[1] == hidden and eb_params[6].shape[1] == out_size

    node_dtype = out_dtype if out_dtype is not None else node_attr.dtype
    edge_dtype = out_dtype if out_dtype is not None else edge_attr.dtype

    if n_node == 0 or n_edge == 0:
        # Degenerate empty-graph case: nothing worth launching a kernel for.
        node_out = _ref_mlp_layernorm(node_attr, nb_params).astype(node_dtype)
        edge_out = _ref_mlp_layernorm(edge_attr, eb_params).astype(edge_dtype)
        return node_out, edge_out, edge_index

    tile_rows = max(8, _round_up(int(tile_rows), 8))

    def pick_tile(rows):
        # Whole array as one block if it fits (block dim == array dim lifts the
        # multiple-of-8 sublane rule for any row count); otherwise a
        # multiple-of-8 row tile with a ragged (masked) last block.
        return rows if rows <= tile_rows else tile_rows

    tile_n = pick_tile(n_node)
    tile_e = pick_tile(n_edge)
    node_tiles = _cdiv(n_node, tile_n)
    edge_tiles = _cdiv(n_edge, tile_e)
    n_steps = node_tiles + edge_tiles

    # Activations are passed unpadded and unconcatenated; each input's block
    # index is clamped to its own range, so the inactive input's index stays
    # constant (no re-DMA) while the other phase runs.
    node_x_spec = pl.BlockSpec(
        (tile_n, in_node), lambda i: (jnp.minimum(i, node_tiles - 1), 0))
    edge_x_spec = pl.BlockSpec(
        (tile_e, in_edge), lambda i: (jnp.maximum(i - node_tiles, 0), 0))

    # Parameters: full array, constant block index -> DMA'd once, resident.
    # TODO(synk): for hidden >= ~512, add pipeline_mode=pl.Buffered(1) to these
    # specs to drop the unused second weight buffer (v7x 64 MiB VMEM headroom).
    def param_spec(p):
        return pl.BlockSpec(p.shape, lambda i: (0, 0))

    in_specs = ([node_x_spec, edge_x_spec]
                + [param_spec(p) for p in nb_params]
                + [param_spec(p) for p in eb_params])

    out_specs = [
        pl.BlockSpec((tile_n, out_size),
                     lambda i: (jnp.minimum(i, node_tiles - 1), 0)),
        pl.BlockSpec((tile_e, out_size),
                     lambda i: (jnp.maximum(i - node_tiles, 0), 0)),
    ]

    kernel = functools.partial(_encoder_pair_kernel, node_tiles=node_tiles)

    node_out, edge_out = pl.pallas_call(
        kernel,
        out_shape=(jax.ShapeDtypeStruct((n_node, out_size), node_dtype),
                   jax.ShapeDtypeStruct((n_edge, out_size), edge_dtype)),
        grid_spec=pltpu.PrefetchScalarGridSpec(
            num_scalar_prefetch=0,
            grid=(n_steps,),
            in_specs=in_specs,
            out_specs=out_specs,
        ),
        # "arbitrary": the clamped output index maps revisit output blocks
        # across the grid axis, so this axis must not be split across megacore
        # TensorCores.
        # TODO(synk): on v7x, interleave node/edge tiles with per-group output
        # indexing to regain megacore sharding without the revisit hazard.
        compiler_params=pltpu.CompilerParams(
            dimension_semantics=("arbitrary",),
            vmem_limit_bytes=32 * 1024 * 1024),
    )(node_attr, edge_attr, *nb_params, *eb_params)

    return node_out, edge_out, edge_index


if __name__ == "__main__":
    # Module defaults: 128-dim node/edge features, hidden 128 (lane-dense out).
    node_input_size = 128
    edge_input_size = 128
    hidden_size = 128
    num_nodes = 40   # deliberately NOT multiples of the row tile
    num_edges = 72

    key = jax.random.PRNGKey(0)
    k_node, k_edge, k_nb, k_eb, k_idx = jax.random.split(key, 5)

    node_attr = jax.random.normal(k_node, (num_nodes, node_input_size),
                                  jnp.float32)
    edge_attr = jax.random.normal(k_edge, (num_edges, edge_input_size),
                                  jnp.float32)
    edge_index = jax.random.randint(k_idx, (2, num_edges), 0, num_nodes,
                                    dtype=jnp.int32)

    # bf16 params (MXU-native, half the weight DMA); math stays f32 in-kernel.
    nb_params = init_mlp_params(k_nb, node_input_size, hidden_size, hidden_size)
    eb_params = init_mlp_params(k_eb, edge_input_size, hidden_size, hidden_size)

    node_out, edge_out, edge_index_out = encoder_forward(
        node_attr, edge_attr, edge_index, nb_params, eb_params)
    jax.block_until_ready((node_out, edge_out, edge_index_out))

    assert node_out.shape == (num_nodes, hidden_size)
    assert edge_out.shape == (num_edges, hidden_size)
    assert jnp.array_equal(edge_index_out, edge_index)

    # Strict check vs a reference using the same mixed precision as the kernel.
    node_ref = _ref_mlp_layernorm(node_attr, nb_params)
    edge_ref = _ref_mlp_layernorm(edge_attr, eb_params)
    assert jnp.allclose(node_out.astype(jnp.float32), node_ref,
                        atol=2e-3, rtol=2e-3)
    assert jnp.allclose(edge_out.astype(jnp.float32), edge_ref,
                        atol=2e-3, rtol=2e-3)

    # Loose check vs an all-f32 reference (validates the bf16 weight policy).
    node_ref32 = _ref_mlp_layernorm(node_attr, nb_params,
                                    match_kernel_precision=False)
    edge_ref32 = _ref_mlp_layernorm(edge_attr, eb_params,
                                    match_kernel_precision=False)
    assert jnp.allclose(node_out.astype(jnp.float32), node_ref32,
                        atol=3e-2, rtol=3e-2)
    assert jnp.allclose(edge_out.astype(jnp.float32), edge_ref32,
                        atol=3e-2, rtol=3e-2)

    print("KERNEL_OK")
</pallas_src>

<mosaic_0001>
module attributes {stable_mosaic.version = 11 : i64} {
  func.func @_encoder_pair_kernel(%arg0: i32, %arg1: memref<40x128xf32, #tpu.memory_space<vmem>>, %arg2: memref<72x128xf32, #tpu.memory_space<vmem>>, %arg3: memref<128x128xbf16, #tpu.memory_space<vmem>>, %arg4: memref<1x128xbf16, #tpu.memory_space<vmem>>, %arg5: memref<128x128xbf16, #tpu.memory_space<vmem>>, %arg6: memref<1x128xbf16, #tpu.memory_space<vmem>>, %arg7: memref<128x128xbf16, #tpu.memory_space<vmem>>, %arg8: memref<1x128xbf16, #tpu.memory_space<vmem>>, %arg9: memref<128x128xbf16, #tpu.memory_space<vmem>>, %arg10: memref<1x128xbf16, #tpu.memory_space<vmem>>, %arg11: memref<1x128xbf16, #tpu.memory_space<vmem>>, %arg12: memref<1x128xbf16, #tpu.memory_space<vmem>>, %arg13: memref<128x128xbf16, #tpu.memory_space<vmem>>, %arg14: memref<1x128xbf16, #tpu.memory_space<vmem>>, %arg15: memref<128x128xbf16, #tpu.memory_space<vmem>>, %arg16: memref<1x128xbf16, #tpu.memory_space<vmem>>, %arg17: memref<128x128xbf16, #tpu.memory_space<vmem>>, %arg18: memref<1x128xbf16, #tpu.memory_space<vmem>>, %arg19: memref<128x128xbf16, #tpu.memory_space<vmem>>, %arg20: memref<1x128xbf16, #tpu.memory_space<vmem>>, %arg21: memref<1x128xbf16, #tpu.memory_space<vmem>>, %arg22: memref<1x128xbf16, #tpu.memory_space<vmem>>, %arg23: memref<40x128xf32, #tpu.memory_space<vmem>>, %arg24: memref<72x128xf32, #tpu.memory_space<vmem>>) attributes {dimension_semantics = [#tpu.dimension_semantics<arbitrary>], iteration_bounds = array<i64: 2>, scalar_prefetch = 0 : i64, scratch_operands = 0 : i64, tpu.core_type = #tpu.core_type<tc>, window_params = [{transform_indices = @transform_0, window_bounds = array<i64: 40, 128>}, {transform_indices = @transform_1, window_bounds = array<i64: 72, 128>}, {pipeline_mode = #tpu.pipeline_mode<synchronous>, transform_indices = @transform_2, window_bounds = array<i64: 128, 128>}, {pipeline_mode = #tpu.pipeline_mode<synchronous>, transform_indices = @transform_3, window_bounds = array<i64: 1, 128>}, {pipeline_mode = #tpu.pipeline_mode<synchronous>, transform_indices = @transform_4, window_bounds = array<i64: 128, 128>}, {pipeline_mode = #tpu.pipeline_mode<synchronous>, transform_indices = @transform_5, window_bounds = array<i64: 1, 128>}, {pipeline_mode = #tpu.pipeline_mode<synchronous>, transform_indices = @transform_6, window_bounds = array<i64: 128, 128>}, {pipeline_mode = #tpu.pipeline_mode<synchronous>, transform_indices = @transform_7, window_bounds = array<i64: 1, 128>}, {pipeline_mode = #tpu.pipeline_mode<synchronous>, transform_indices = @transform_8, window_bounds = array<i64: 128, 128>}, {pipeline_mode = #tpu.pipeline_mode<synchronous>, transform_indices = @transform_9, window_bounds = array<i64: 1, 128>}, {pipeline_mode = #tpu.pipeline_mode<synchronous>, transform_indices = @transform_10, window_bounds = array<i64: 1, 128>}, {pipeline_mode = #tpu.pipeline_mode<synchronous>, transform_indices = @transform_11, window_bounds = array<i64: 1, 128>}, {pipeline_mode = #tpu.pipeline_mode<synchronous>, transform_indices = @transform_12, window_bounds = array<i64: 128, 128>}, {pipeline_mode = #tpu.pipeline_mode<synchronous>, transform_indices = @transform_13, window_bounds = array<i64: 1, 128>}, {pipeline_mode = #tpu.pipeline_mode<synchronous>, transform_indices = @transform_14, window_bounds = array<i64: 128, 128>}, {pipeline_mode = #tpu.pipeline_mode<synchronous>, transform_indices = @transform_15, window_bounds = array<i64: 1, 128>}, {pipeline_mode = #tpu.pipeline_mode<synchronous>, transform_indices = @transform_16, window_bounds = array<i64: 128, 128>}, {pipeline_mode = #tpu.pipeline_mode<synchronous>, transform_indices = @transform_17, window_bounds = array<i64: 1, 128>}, {pipeline_mode = #tpu.pipeline_mode<synchronous>, transform_indices = @transform_18, window_bounds = array<i64: 128, 128>}, {pipeline_mode = #tpu.pipeline_mode<synchronous>, transform_indices = @transform_19, window_bounds = array<i64: 1, 128>}, {pipeline_mode = #tpu.pipeline_mode<synchronous>, transform_indices = @transform_20, window_bounds = array<i64: 1, 128>}, {pipeline_mode = #tpu.pipeline_mode<synchronous>, transform_indices = @transform_21, window_bounds = array<i64: 1, 128>}, {transform_indices = @transform_22, window_bounds = array<i64: 40, 128>}, {transform_indices = @transform_23, window_bounds = array<i64: 72, 128>}]} {
    %c1_i32 = arith.constant 1 : i32
    %0 = arith.cmpi slt, %arg0, %c1_i32 : i32
    %1 = arith.extui %0 : i1 to i32
    %c0_i32 = arith.constant 0 : i32
    %2 = arith.cmpi ne, %1, %c0_i32 : i32
    scf.if %2 {
      %c0 = arith.constant 0 : index
      %c0_2 = arith.constant 0 : index
      %6 = vector.load %arg1[%c0, %c0_2] : memref<40x128xf32, #tpu.memory_space<vmem>>, vector<40x128xf32>
      %7 = arith.truncf %6 : vector<40x128xf32> to vector<40x128xbf16>
      %c0_3 = arith.constant 0 : index
      %c0_4 = arith.constant 0 : index
      %8 = vector.load %arg3[%c0_3, %c0_4] : memref<128x128xbf16, #tpu.memory_space<vmem>>, vector<128x128xbf16>
      %cst = arith.constant dense<0.000000e+00> : vector<40x128xf32>
      %9 = tpu.matmul %7, %8, %cst {dimension_numbers = #tpu.dot_dimension_numbers<[1], [0], [0], [1], [0, 0, 1, 1], [], []>} : vector<40x128xbf16>, vector<128x128xbf16>, vector<40x128xf32> -> vector<40x128xf32>
      %c0_5 = arith.constant 0 : index
      %c0_6 = arith.constant 0 : index
      %10 = vector.load %arg4[%c0_5, %c0_6] : memref<1x128xbf16, #tpu.memory_space<vmem>>, vector<1x128xbf16>
      %11 = arith.extf %10 : vector<1x128xbf16> to vector<1x128xf32>
      %12 = vector.broadcast %11 : vector<1x128xf32> to vector<40x128xf32>
      %13 = arith.addf %9, %12 : vector<40x128xf32>
      %14 = arith.negf %13 : vector<40x128xf32>
      %15 = math.exp %14 : vector<40x128xf32>
      %cst_7 = arith.constant 1.000000e+00 : f32
      %16 = vector.broadcast %cst_7 : f32 to vector<40x128xf32>
      %17 = arith.addf %16, %15 : vector<40x128xf32>
      %18 = arith.divf %16, %17 : vector<40x128xf32>
      %19 = arith.mulf %13, %18 : vector<40x128xf32>
      %20 = arith.truncf %19 : vector<40x128xf32> to vector<40x128xbf16>
      %c0_8 = arith.constant 0 : index
      %c0_9 = arith.constant 0 : index
      %21 = vector.load %arg5[%c0_8, %c0_9] : memref<128x128xbf16, #tpu.memory_space<vmem>>, vector<128x128xbf16>
      %cst_10 = arith.constant dense<0.000000e+00> : vector<40x128xf32>
      %22 = tpu.matmul %20, %21, %cst_10 {dimension_numbers = #tpu.dot_dimension_numbers<[1], [0], [0], [1], [0, 0, 1, 1], [], []>} : vector<40x128xbf16>, vector<128x128xbf16>, vector<40x128xf32> -> vector<40x128xf32>
      %c0_11 = arith.constant 0 : index
      %c0_12 = arith.constant 0 : index
      %23 = vector.load %arg6[%c0_11, %c0_12] : memref<1x128xbf16, #tpu.memory_space<vmem>>, vector<1x128xbf16>
      %24 = arith.extf %23 : vector<1x128xbf16> to vector<1x128xf32>
      %25 = vector.broadcast %24 : vector<1x128xf32> to vector<40x128xf32>
      %26 = arith.addf %22, %25 : vector<40x128xf32>
      %27 = arith.negf %26 : vector<40x128xf32>
      %28 = math.exp %27 : vector<40x128xf32>
      %cst_13 = arith.constant 1.000000e+00 : f32
      %29 = vector.broadcast %cst_13 : f32 to vector<40x128xf32>
      %30 = arith.addf %29, %28 : vector<40x128xf32>
      %31 = arith.divf %29, %30 : vector<40x128xf32>
      %32 = arith.mulf %26, %31 : vector<40x128xf32>
      %33 = arith.truncf %32 : vector<40x128xf32> to vector<40x128xbf16>
      %c0_14 = arith.constant 0 : index
      %c0_15 = arith.constant 0 : index
      %34 = vector.load %arg7[%c0_14, %c0_15] : memref<128x128xbf16, #tpu.memory_space<vmem>>, vector<128x128xbf16>
      %cst_16 = arith.constant dense<0.000000e+00> : vector<40x128xf32>
      %35 = tpu.matmul %33, %34, %cst_16 {dimension_numbers = #tpu.dot_dimension_numbers<[1], [0], [0], [1], [0, 0, 1, 1], [], []>} : vector<40x128xbf16>, vector<128x128xbf16>, vector<40x128xf32> -> vector<40x128xf32>
      %c0_17 = arith.constant 0 : index
      %c0_18 = arith.constant 0 : index
      %36 = vector.load %arg8[%c0_17, %c0_18] : memref<1x128xbf16, #tpu.memory_space<vmem>>, vector<1x128xbf16>
      %37 = arith.extf %36 : vector<1x128xbf16> to vector<1x128xf32>
      %38 = vector.broadcast %37 : vector<1x128xf32> to vector<40x128xf32>
      %39 = arith.addf %35, %38 : vector<40x128xf32>
      %40 = arith.negf %39 : vector<40x128xf32>
      %41 = math.exp %40 : vector<40x128xf32>
      %cst_19 = arith.constant 1.000000e+00 : f32
      %42 = vector.broadcast %cst_19 : f32 to vector<40x128xf32>
      %43 = arith.addf %42, %41 : vector<40x128xf32>
      %44 = arith.divf %42, %43 : vector<40x128xf32>
      %45 = arith.mulf %39, %44 : vector<40x128xf32>
      %46 = arith.truncf %45 : vector<40x128xf32> to vector<40x128xbf16>
      %c0_20 = arith.constant 0 : index
      %c0_21 = arith.constant 0 : index
      %47 = vector.load %arg9[%c0_20, %c0_21] : memref<128x128xbf16, #tpu.memory_space<vmem>>, vector<128x128xbf16>
      %cst_22 = arith.constant dense<0.000000e+00> : vector<40x128xf32>
      %48 = tpu.matmul %46, %47, %cst_22 {dimension_numbers = #tpu.dot_dimension_numbers<[1], [0], [0], [1], [0, 0, 1, 1], [], []>} : vector<40x128xbf16>, vector<128x128xbf16>, vector<40x128xf32> -> vector<40x128xf32>
      %c0_23 = arith.constant 0 : index
      %c0_24 = arith.constant 0 : index
      %49 = vector.load %arg10[%c0_23, %c0_24] : memref<1x128xbf16, #tpu.memory_space<vmem>>, vector<1x128xbf16>
      %50 = arith.extf %49 : vector<1x128xbf16> to vector<1x128xf32>
      %51 = vector.broadcast %50 : vector<1x128xf32> to vector<40x128xf32>
      %52 = arith.addf %48, %51 : vector<40x128xf32>
      %cst_25 = arith.constant dense<0.000000e+00> : vector<40xf32>
      %53 = vector.multi_reduction <add>, %52, %cst_25 [1] : vector<40x128xf32> to vector<40xf32>
      %54 = vector.shape_cast %53 : vector<40xf32> to vector<40x1xf32>
      %cst_26 = arith.constant 1.280000e+02 : f32
      %55 = vector.broadcast %cst_26 : f32 to vector<40x1xf32>
      %56 = arith.divf %54, %55 : vector<40x1xf32>
      %57 = arith.mulf %52, %52 : vector<40x128xf32>
      %cst_27 = arith.constant dense<0.000000e+00> : vector<40xf32>
      %58 = vector.multi_reduction <add>, %57, %cst_27 [1] : vector<40x128xf32> to vector<40xf32>
      %59 = vector.shape_cast %58 : vector<40xf32> to vector<40x1xf32>
      %cst_28 = arith.constant 1.280000e+02 : f32
      %60 = vector.broadcast %cst_28 : f32 to vector<40x1xf32>
      %61 = arith.divf %59, %60 : vector<40x1xf32>
      %62 = arith.mulf %56, %56 : vector<40x1xf32>
      %63 = arith.subf %61, %62 : vector<40x1xf32>
      %cst_29 = arith.constant 0.000000e+00 : f32
      %64 = vector.broadcast %cst_29 : f32 to vector<40x1xf32>
      %65 = arith.maximumf %63, %64 : vector<40x1xf32>
      %66 = vector.broadcast %56 : vector<40x1xf32> to vector<40x128xf32>
      %67 = arith.subf %52, %66 : vector<40x128xf32>
      %cst_30 = arith.constant 9.99999974E-6 : f32
      %68 = vector.broadcast %cst_30 : f32 to vector<40x1xf32>
      %69 = arith.addf %65, %68 : vector<40x1xf32>
      %70 = math.rsqrt %69 : vector<40x1xf32>
      %71 = vector.broadcast %70 : vector<40x1xf32> to vector<40x128xf32>
      %72 = arith.mulf %67, %71 : vector<40x128xf32>
      %c0_31 = arith.constant 0 : index
      %c0_32 = arith.constant 0 : index
      %73 = vector.load %arg11[%c0_31, %c0_32] : memref<1x128xbf16, #tpu.memory_space<vmem>>, vector<1x128xbf16>
      %74 = arith.extf %73 : vector<1x128xbf16> to vector<1x128xf32>
      %75 = vector.broadcast %74 : vector<1x128xf32> to vector<40x128xf32>
      %76 = arith.mulf %72, %75 : vector<40x128xf32>
      %c0_33 = arith.constant 0 : index
      %c0_34 = arith.constant 0 : index
      %77 = vector.load %arg12[%c0_33, %c0_34] : memref<1x128xbf16, #tpu.memory_space<vmem>>, vector<1x128xbf16>
      %78 = arith.extf %77 : vector<1x128xbf16> to vector<1x128xf32>
      %79 = vector.broadcast %78 : vector<1x128xf32> to vector<40x128xf32>
      %80 = arith.addf %76, %79 : vector<40x128xf32>
      %c0_35 = arith.constant 0 : index
      %c0_36 = arith.constant 0 : index
      %81 = vector.load %arg23[%c0_35, %c0_36] : memref<40x128xf32, #tpu.memory_space<vmem>>, vector<40x128xf32>
      tpu.vector_store %arg23[%c0_35, %c0_36], %80 {strides = array<i32>} : memref<40x128xf32, #tpu.memory_space<vmem>>, vector<40x128xf32>,
    } else {
    }
    %c1_i32_0 = arith.constant 1 : i32
    %3 = arith.cmpi sge, %arg0, %c1_i32_0 : i32
    %4 = arith.extui %3 : i1 to i32
    %c0_i32_1 = arith.constant 0 : i32
    %5 = arith.cmpi ne, %4, %c0_i32_1 : i32
    scf.if %5 {
      %c0 = arith.constant 0 : index
      %c0_2 = arith.constant 0 : index
      %6 = vector.load %arg2[%c0, %c0_2] : memref<72x128xf32, #tpu.memory_space<vmem>>, vector<72x128xf32>
      %7 = arith.truncf %6 : vector<72x128xf32> to vector<72x128xbf16>
      %c0_3 = arith.constant 0 : index
      %c0_4 = arith.constant 0 : index
      %8 = vector.load %arg13[%c0_3, %c0_4] : memref<128x128xbf16, #tpu.memory_space<vmem>>, vector<128x128xbf16>
      %cst = arith.constant dense<0.000000e+00> : vector<72x128xf32>
      %9 = tpu.matmul %7, %8, %cst {dimension_numbers = #tpu.dot_dimension_numbers<[1], [0], [0], [1], [0, 0, 1, 1], [], []>} : vector<72x128xbf16>, vector<128x128xbf16>, vector<72x128xf32> -> vector<72x128xf32>
      %c0_5 = arith.constant 0 : index
      %c0_6 = arith.constant 0 : index
      %10 = vector.load %arg14[%c0_5, %c0_6] : memref<1x128xbf16, #tpu.memory_space<vmem>>, vector<1x128xbf16>
      %11 = arith.extf %10 : vector<1x128xbf16> to vector<1x128xf32>
      %12 = vector.broadcast %11 : vector<1x128xf32> to vector<72x128xf32>
      %13 = arith.addf %9, %12 : vector<72x128xf32>
      %14 = arith.negf %13 : vector<72x128xf32>
      %15 = math.exp %14 : vector<72x128xf32>
      %cst_7 = arith.constant 1.000000e+00 : f32
      %16 = vector.broadcast %cst_7 : f32 to vector<72x128xf32>
      %17 = arith.addf %16, %15 : vector<72x128xf32>
      %18 = arith.divf %16, %17 : vector<72x128xf32>
      %19 = arith.mulf %13, %18 : vector<72x128xf32>
      %20 = arith.truncf %19 : vector<72x128xf32> to vector<72x128xbf16>
      %c0_8 = arith.constant 0 : index
      %c0_9 = arith.constant 0 : index
      %21 = vector.load %arg15[%c0_8, %c0_9] : memref<128x128xbf16, #tpu.memory_space<vmem>>, vector<128x128xbf16>
      %cst_10 = arith.constant dense<0.000000e+00> : vector<72x128xf32>
      %22 = tpu.matmul %20, %21, %cst_10 {dimension_numbers = #tpu.dot_dimension_numbers<[1], [0], [0], [1], [0, 0, 1, 1], [], []>} : vector<72x128xbf16>, vector<128x128xbf16>, vector<72x128xf32> -> vector<72x128xf32>
      %c0_11 = arith.constant 0 : index
      %c0_12 = arith.constant 0 : index
      %23 = vector.load %arg16[%c0_11, %c0_12] : memref<1x128xbf16, #tpu.memory_space<vmem>>, vector<1x128xbf16>
      %24 = arith.extf %23 : vector<1x128xbf16> to vector<1x128xf32>
      %25 = vector.broadcast %24 : vector<1x128xf32> to vector<72x128xf32>
      %26 = arith.addf %22, %25 : vector<72x128xf32>
      %27 = arith.negf %26 : vector<72x128xf32>
      %28 = math.exp %27 : vector<72x128xf32>
      %cst_13 = arith.constant 1.000000e+00 : f32
      %29 = vector.broadcast %cst_13 : f32 to vector<72x128xf32>
      %30 = arith.addf %29, %28 : vector<72x128xf32>
      %31 = arith.divf %29, %30 : vector<72x128xf32>
      %32 = arith.mulf %26, %31 : vector<72x128xf32>
      %33 = arith.truncf %32 : vector<72x128xf32> to vector<72x128xbf16>
      %c0_14 = arith.constant 0 : index
      %c0_15 = arith.constant 0 : index
      %34 = vector.load %arg17[%c0_14, %c0_15] : memref<128x128xbf16, #tpu.memory_space<vmem>>, vector<128x128xbf16>
      %cst_16 = arith.constant dense<0.000000e+00> : vector<72x128xf32>
      %35 = tpu.matmul %33, %34, %cst_16 {dimension_numbers = #tpu.dot_dimension_numbers<[1], [0], [0], [1], [0, 0, 1, 1], [], []>} : vector<72x128xbf16>, vector<128x128xbf16>, vector<72x128xf32> -> vector<72x128xf32>
      %c0_17 = arith.constant 0 : index
      %c0_18 = arith.constant 0 : index
      %36 = vector.load %arg18[%c0_17, %c0_18] : memref<1x128xbf16, #tpu.memory_space<vmem>>, vector<1x128xbf16>
      %37 = arith.extf %36 : vector<1x128xbf16> to vector<1x128xf32>
      %38 = vector.broadcast %37 : vector<1x128xf32> to vector<72x128xf32>
      %39 = arith.addf %35, %38 : vector<72x128xf32>
      %40 = arith.negf %39 : vector<72x128xf32>
      %41 = math.exp %40 : vector<72x128xf32>
      %cst_19 = arith.constant 1.000000e+00 : f32
      %42 = vector.broadcast %cst_19 : f32 to vector<72x128xf32>
      %43 = arith.addf %42, %41 : vector<72x128xf32>
      %44 = arith.divf %42, %43 : vector<72x128xf32>
      %45 = arith.mulf %39, %44 : vector<72x128xf32>
      %46 = arith.truncf %45 : vector<72x128xf32> to vector<72x128xbf16>
      %c0_20 = arith.constant 0 : index
      %c0_21 = arith.constant 0 : index
      %47 = vector.load %arg19[%c0_20, %c0_21] : memref<128x128xbf16, #tpu.memory_space<vmem>>, vector<128x128xbf16>
      %cst_22 = arith.constant dense<0.000000e+00> : vector<72x128xf32>
      %48 = tpu.matmul %46, %47, %cst_22 {dimension_numbers = #tpu.dot_dimension_numbers<[1], [0], [0], [1], [0, 0, 1, 1], [], []>} : vector<72x128xbf16>, vector<128x128xbf16>, vector<72x128xf32> -> vector<72x128xf32>
      %c0_23 = arith.constant 0 : index
      %c0_24 = arith.constant 0 : index
      %49 = vector.load %arg20[%c0_23, %c0_24] : memref<1x128xbf16, #tpu.memory_space<vmem>>, vector<1x128xbf16>
      %50 = arith.extf %49 : vector<1x128xbf16> to vector<1x128xf32>
      %51 = vector.broadcast %50 : vector<1x128xf32> to vector<72x128xf32>
      %52 = arith.addf %48, %51 : vector<72x128xf32>
      %cst_25 = arith.constant dense<0.000000e+00> : vector<72xf32>
      %53 = vector.multi_reduction <add>, %52, %cst_25 [1] : vector<72x128xf32> to vector<72xf32>
      %54 = vector.shape_cast %53 : vector<72xf32> to vector<72x1xf32>
      %cst_26 = arith.constant 1.280000e+02 : f32
      %55 = vector.broadcast %cst_26 : f32 to vector<72x1xf32>
      %56 = arith.divf %54, %55 : vector<72x1xf32>
      %57 = arith.mulf %52, %52 : vector<72x128xf32>
      %cst_27 = arith.constant dense<0.000000e+00> : vector<72xf32>
      %58 = vector.multi_reduction <add>, %57, %cst_27 [1] : vector<72x128xf32> to vector<72xf32>
      %59 = vector.shape_cast %58 : vector<72xf32> to vector<72x1xf32>
      %cst_28 = arith.constant 1.280000e+02 : f32
      %60 = vector.broadcast %cst_28 : f32 to vector<72x1xf32>
      %61 = arith.divf %59, %60 : vector<72x1xf32>
      %62 = arith.mulf %56, %56 : vector<72x1xf32>
      %63 = arith.subf %61, %62 : vector<72x1xf32>
      %cst_29 = arith.constant 0.000000e+00 : f32
      %64 = vector.broadcast %cst_29 : f32 to vector<72x1xf32>
      %65 = arith.maximumf %63, %64 : vector<72x1xf32>
      %66 = vector.broadcast %56 : vector<72x1xf32> to vector<72x128xf32>
      %67 = arith.subf %52, %66 : vector<72x128xf32>
      %cst_30 = arith.constant 9.99999974E-6 : f32
      %68 = vector.broadcast %cst_30 : f32 to vector<72x1xf32>
      %69 = arith.addf %65, %68 : vector<72x1xf32>
      %70 = math.rsqrt %69 : vector<72x1xf32>
      %71 = vector.broadcast %70 : vector<72x1xf32> to vector<72x128xf32>
      %72 = arith.mulf %67, %71 : vector<72x128xf32>
      %c0_31 = arith.constant 0 : index
      %c0_32 = arith.constant 0 : index
      %73 = vector.load %arg21[%c0_31, %c0_32] : memref<1x128xbf16, #tpu.memory_space<vmem>>, vector<1x128xbf16>
      %74 = arith.extf %73 : vector<1x128xbf16> to vector<1x128xf32>
      %75 = vector.broadcast %74 : vector<1x128xf32> to vector<72x128xf32>
      %76 = arith.mulf %72, %75 : vector<72x128xf32>
      %c0_33 = arith.constant 0 : index
      %c0_34 = arith.constant 0 : index
      %77 = vector.load %arg22[%c0_33, %c0_34] : memref<1x128xbf16, #tpu.memory_space<vmem>>, vector<1x128xbf16>
      %78 = arith.extf %77 : vector<1x128xbf16> to vector<1x128xf32>
      %79 = vector.broadcast %78 : vector<1x128xf32> to vector<72x128xf32>
      %80 = arith.addf %76, %79 : vector<72x128xf32>
      %c0_35 = arith.constant 0 : index
      %c0_36 = arith.constant 0 : index
      %81 = vector.load %arg24[%c0_35, %c0_36] : memref<72x128xf32, #tpu.memory_space<vmem>>, vector<72x128xf32>
      tpu.vector_store %arg24[%c0_35, %c0_36], %80 {strides = array<i32>} : memref<72x128xf32, #tpu.memory_space<vmem>>, vector<72x128xf32>,
    } else {
    }
    return
  }
  func.func @transform_0(%arg0: i32) -> (i32, i32) {
    %c0_i32 = arith.constant 0 : i32
    %0 = arith.minsi %arg0, %c0_i32 : i32
    %c0_i32_0 = arith.constant 0 : i32
    %c0_i32_1 = arith.constant 0 : i32
    return %0, %c0_i32_0 : i32, i32
  }
  func.func @transform_1(%arg0: i32) -> (i32, i32) {
    %c1_i32 = arith.constant 1 : i32
    %0 = arith.subi %arg0, %c1_i32 : i32
    %c0_i32 = arith.constant 0 : i32
    %1 = arith.maxsi %0, %c0_i32 : i32
    %c0_i32_0 = arith.constant 0 : i32
    %c0_i32_1 = arith.constant 0 : i32
    return %1, %c0_i32_0 : i32, i32
  }
  func.func @transform_2(%arg0: i32) -> (i32, i32) {
    %c0_i32 = arith.constant 0 : i32
    %c0_i32_0 = arith.constant 0 : i32
    %c0_i32_1 = arith.constant 0 : i32
    return %c0_i32, %c0_i32_0 : i32, i32
  }
  func.func @transform_3(%arg0: i32) -> (i32, i32) {
    %c0_i32 = arith.constant 0 : i32
    %c0_i32_0 = arith.constant 0 : i32
    %c0_i32_1 = arith.constant 0 : i32
    return %c0_i32, %c0_i32_0 : i32, i32
  }
  func.func @transform_4(%arg0: i32) -> (i32, i32) {
    %c0_i32 = arith.constant 0 : i32
    %c0_i32_0 = arith.constant 0 : i32
    %c0_i32_1 = arith.constant 0 : i32
    return %c0_i32, %c0_i32_0 : i32, i32
  }
  func.func @transform_5(%arg0: i32) -> (i32, i32) {
    %c0_i32 = arith.constant 0 : i32
    %c0_i32_0 = arith.constant 0 : i32
    %c0_i32_1 = arith.constant 0 : i32
    return %c0_i32, %c0_i32_0 : i32, i32
  }
  func.func @transform_6(%arg0: i32) -> (i32, i32) {
    %c0_i32 = arith.constant 0 : i32
    %c0_i32_0 = arith.constant 0 : i32
    %c0_i32_1 = arith.constant 0 : i32
    return %c0_i32, %c0_i32_0 : i32, i32
  }
  func.func @transform_7(%arg0: i32) -> (i32, i32) {
    %c0_i32 = arith.constant 0 : i32
    %c0_i32_0 = arith.constant 0 : i32
    %c0_i32_1 = arith.constant 0 : i32
    return %c0_i32, %c0_i32_0 : i32, i32
  }
  func.func @transform_8(%arg0: i32) -> (i32, i32) {
    %c0_i32 = arith.constant 0 : i32
    %c0_i32_0 = arith.constant 0 : i32
    %c0_i32_1 = arith.constant 0 : i32
    return %c0_i32, %c0_i32_0 : i32, i32
  }
  func.func @transform_9(%arg0: i32) -> (i32, i32) {
    %c0_i32 = arith.constant 0 : i32
    %c0_i32_0 = arith.constant 0 : i32
    %c0_i32_1 = arith.constant 0 : i32
    return %c0_i32, %c0_i32_0 : i32, i32
  }
  func.func @transform_10(%arg0: i32) -> (i32, i32) {
    %c0_i32 = arith.constant 0 : i32
    %c0_i32_0 = arith.constant 0 : i32
    %c0_i32_1 = arith.constant 0 : i32
    return %c0_i32, %c0_i32_0 : i32, i32
  }
  func.func @transform_11(%arg0: i32) -> (i32, i32) {
    %c0_i32 = arith.constant 0 : i32
    %c0_i32_0 = arith.constant 0 : i32
    %c0_i32_1 = arith.constant 0 : i32
    return %c0_i32, %c0_i32_0 : i32, i32
  }
  func.func @transform_12(%arg0: i32) -> (i32, i32) {
    %c0_i32 = arith.constant 0 : i32
    %c0_i32_0 = arith.constant 0 : i32
    %c0_i32_1 = arith.constant 0 : i32
    return %c0_i32, %c0_i32_0 : i32, i32
  }
  func.func @transform_13(%arg0: i32) -> (i32, i32) {
    %c0_i32 = arith.constant 0 : i32
    %c0_i32_0 = arith.constant 0 : i32
    %c0_i32_1 = arith.constant 0 : i32
    return %c0_i32, %c0_i32_0 : i32, i32
  }
  func.func @transform_14(%arg0: i32) -> (i32, i32) {
    %c0_i32 = arith.constant 0 : i32
    %c0_i32_0 = arith.constant 0 : i32
    %c0_i32_1 = arith.constant 0 : i32
    return %c0_i32, %c0_i32_0 : i32, i32
  }
  func.func @transform_15(%arg0: i32) -> (i32, i32) {
    %c0_i32 = arith.constant 0 : i32
    %c0_i32_0 = arith.constant 0 : i32
    %c0_i32_1 = arith.constant 0 : i32
    return %c0_i32, %c0_i32_0 : i32, i32
  }
  func.func @transform_16(%arg0: i32) -> (i32, i32) {
    %c0_i32 = arith.constant 0 : i32
    %c0_i32_0 = arith.constant 0 : i32
    %c0_i32_1 = arith.constant 0 : i32
    return %c0_i32, %c0_i32_0 : i32, i32
  }
  func.func @transform_17(%arg0: i32) -> (i32, i32) {
    %c0_i32 = arith.constant 0 : i32
    %c0_i32_0 = arith.constant 0 : i32
    %c0_i32_1 = arith.constant 0 : i32
    return %c0_i32, %c0_i32_0 : i32, i32
  }
  func.func @transform_18(%arg0: i32) -> (i32, i32) {
    %c0_i32 = arith.constant 0 : i32
    %c0_i32_0 = arith.constant 0 : i32
    %c0_i32_1 = arith.constant 0 : i32
    return %c0_i32, %c0_i32_0 : i32, i32
  }
  func.func @transform_19(%arg0: i32) -> (i32, i32) {
    %c0_i32 = arith.constant 0 : i32
    %c0_i32_0 = arith.constant 0 : i32
    %c0_i32_1 = arith.constant 0 : i32
    return %c0_i32, %c0_i32_0 : i32, i32
  }
  func.func @transform_20(%arg0: i32) -> (i32, i32) {
    %c0_i32 = arith.constant 0 : i32
    %c0_i32_0 = arith.constant 0 : i32
    %c0_i32_1 = arith.constant 0 : i32
    return %c0_i32, %c0_i32_0 : i32, i32
  }
  func.func @transform_21(%arg0: i32) -> (i32, i32) {
    %c0_i32 = arith.constant 0 : i32
    %c0_i32_0 = arith.constant 0 : i32
    %c0_i32_1 = arith.constant 0 : i32
    return %c0_i32, %c0_i32_0 : i32, i32
  }
  func.func @transform_22(%arg0: i32) -> (i32, i32) {
    %c0_i32 = arith.constant 0 : i32
    %0 = arith.minsi %arg0, %c0_i32 : i32
    %c0_i32_0 = arith.constant 0 : i32
    %c0_i32_1 = arith.constant 0 : i32
    return %0, %c0_i32_0 : i32, i32
  }
  func.func @transform_23(%arg0: i32) -> (i32, i32) {
    %c1_i32 = arith.constant 1 : i32
    %0 = arith.subi %arg0, %c1_i32 : i32
    %c0_i32 = arith.constant 0 : i32
    %1 = arith.maxsi %0, %c0_i32 : i32
    %c0_i32_0 = arith.constant 0 : i32
    %c0_i32_1 = arith.constant 0 : i32
    return %1, %c0_i32_0 : i32, i32
  }
}

</mosaic_0001>

<llo_original>
// kernel: encoder_forward.1
$region0: #{encoder_forward.1}
  #allocation0 [shape = 'u32[]', space=smem, size = 0x4, offset = 0x4, fixed_abs, tag = 'smem constant byte address 0x4 - core index']
  #allocation1 [shape = 'u32[144,128]{1,0:T(1,128)}', space=vmem, size = 0x12000, scoped, tag = 'internal scratch']
  %s0 = inlined_call_operand.hbm [shape: f32[40,128], index: 0, kind: input, shape index: {}]
  %s1 = inlined_call_operand.hbm [shape: f32[72,128], index: 1, kind: input, shape index: {}]
  %s2 = inlined_call_operand.hbm [shape: bf16[128,128], index: 2, kind: input, shape index: {}]
  %s3 = inlined_call_operand.hbm [shape: bf16[1,128], index: 3, kind: input, shape index: {}]
  %s4 = inlined_call_operand.hbm [shape: bf16[128,128], index: 4, kind: input, shape index: {}]
  %s5 = inlined_call_operand.hbm [shape: bf16[1,128], index: 5, kind: input, shape index: {}]
  %s6 = inlined_call_operand.hbm [shape: bf16[128,128], index: 6, kind: input, shape index: {}]
  %s7 = inlined_call_operand.hbm [shape: bf16[1,128], index: 7, kind: input, shape index: {}]
  %s8 = inlined_call_operand.hbm [shape: bf16[128,128], index: 8, kind: input, shape index: {}]
  %s9 = inlined_call_operand.hbm [shape: bf16[1,128], index: 9, kind: input, shape index: {}]
  %s10 = inlined_call_operand.hbm [shape: bf16[1,128], index: 10, kind: input, shape index: {}]
  %s11 = inlined_call_operand.hbm [shape: bf16[1,128], index: 11, kind: input, shape index: {}]
  %s12 = inlined_call_operand.hbm [shape: bf16[128,128], index: 12, kind: input, shape index: {}]
  %s13 = inlined_call_operand.hbm [shape: bf16[1,128], index: 13, kind: input, shape index: {}]
  %s14 = inlined_call_operand.hbm [shape: bf16[128,128], index: 14, kind: input, shape index: {}]
  %s15 = inlined_call_operand.hbm [shape: bf16[1,128], index: 15, kind: input, shape index: {}]
  %s16 = inlined_call_operand.vmem [shape: bf16[128,128], index: 16, kind: input, shape index: {}]
  %s17 = inlined_call_operand.vmem [shape: bf16[1,128], index: 17, kind: input, shape index: {}]
  %s18 = inlined_call_operand.hbm [shape: bf16[128,128], index: 18, kind: input, shape index: {}]
  %s19 = inlined_call_operand.vmem [shape: bf16[1,128], index: 19, kind: input, shape index: {}]
  %s20 = inlined_call_operand.vmem [shape: bf16[1,128], index: 20, kind: input, shape index: {}]
  %s21 = inlined_call_operand.vmem [shape: bf16[1,128], index: 21, kind: input, shape index: {}]
  %s22 = inlined_call_operand.hbm [shape: f32[40,128], index: 22, kind: output, shape index: {0}]
  %s23 = inlined_call_operand.hbm [shape: f32[72,128], index: 23, kind: output, shape index: {1}]
  %24 = xla_tuple %s22, %s23
  %s25 = sld [smem:[#allocation0]]
  $region205: #{encoder_forward.1} parent=0
    _
  %s27 = ssub.s32 1, %s25
  %s28 = scalar_select 0, %s27, %s25
  $region1: #{encoder_forward.1} parent=0
    #allocation2 [shape = 'u8[40960]{0}', space=vmem, size = 0xa000, scoped, tag = 'input window, operand 0']
    #allocation3 [shape = 's32[2]{0}', space=sflag, size = 0x8, scoped, tag = 'scoped memory for encoder_forward.1']
    #allocation4 [shape = 's32[2]{0}', space=sflag, size = 0x8, scoped, tag = 'scoped memory for encoder_forward.1']
    #allocation5 [shape = 'u8[73728]{0}', space=vmem, size = 0x12000, scoped, tag = 'input window, operand 1']
    #allocation6 [shape = 's32[2]{0}', space=sflag, size = 0x8, scoped, tag = 'scoped memory for encoder_forward.1']
    #allocation7 [shape = 'u8[32768]{0}', space=vmem, size = 0x8000, scoped, tag = 'input window, operand 2, single buffered']
    #allocation8 [shape = 'u8[512]{0}', space=vmem, size = 0x400, scoped, tag = 'input window, operand 3, single buffered']
    #allocation9 [shape = 's32[1]{0}', space=sflag, size = 0x4, scoped, tag = 'scoped memory for encoder_forward.1']
    #allocation10 [shape = 'u8[32768]{0}', space=vmem, size = 0x8000, scoped, tag = 'input window, operand 4, single buffered']
    #allocation11 [shape = 'u8[512]{0}', space=vmem, size = 0x400, scoped, tag = 'input window, operand 5, single buffered']
    #allocation12 [shape = 's32[1]{0}', space=sflag, size = 0x4, scoped, tag = 'scoped memory for encoder_forward.1']
    #allocation13 [shape = 'u8[32768]{0}', space=vmem, size = 0x8000, scoped, tag = 'input window, operand 6, single buffered']
    #allocation14 [shape = 'u8[512]{0}', space=vmem, size = 0x400, scoped, tag = 'input window, operand 7, single buffered']
    #allocation15 [shape = 's32[1]{0}', space=sflag, size = 0x4, scoped, tag = 'scoped memory for encoder_forward.1']
    #allocation16 [shape = 'u8[32768]{0}', space=vmem, size = 0x8000, scoped, tag = 'input window, operand 8, single buffered']
    #allocation17 [shape = 'u8[512]{0}', space=vmem, size = 0x400, scoped, tag = 'input window, operand 9, single buffered']
    #allocation18 [shape = 's32[1]{0}', space=sflag, size = 0x4, scoped, tag = 'scoped memory for encoder_forward.1']
    #allocation19 [shape = 'u8[512]{0}', space=vmem, size = 0x400, scoped, tag = 'input window, operand 10, single buffered']
    #allocation20 [shape = 'u8[512]{0}', space=vmem, size = 0x400, scoped, tag = 'input window, operand 11, single buffered']
    #allocation21 [shape = 's32[1]{0}', space=sflag, size = 0x4, scoped, tag = 'scoped memory for encoder_forward.1']
    #allocation22 [shape = 'u8[32768]{0}', space=vmem, size = 0x8000, scoped, tag = 'input window, operand 12, single buffered']
    #allocation23 [shape = 'u8[512]{0}', space=vmem, size = 0x400, scoped, tag = 'input window, operand 13, single buffered']
    #allocation24 [shape = 's32[1]{0}', space=sflag, size = 0x4, scoped, tag = 'scoped memory for encoder_forward.1']
    #allocation25 [shape = 'u8[32768]{0}', space=vmem, size = 0x8000, scoped, tag = 'input window, operand 14, single buffered']
    #allocation26 [shape = 'u8[512]{0}', space=vmem, size = 0x400, scoped, tag = 'input window, operand 15, single buffered']
    #allocation27 [shape = 's32[1]{0}', space=sflag, size = 0x4, scoped, tag = 'scoped memory for encoder_forward.1']
    #allocation28 [shape = 'u8[32768]{0}', space=vmem, size = 0x8000, scoped, tag = 'input window, operand 18, single buffered']
    #allocation29 [shape = 'u8[40960]{0}', space=vmem, size = 0xa000, scoped, tag = 'output window, operand 0']
    #allocation30 [shape = 'u8[73728]{0}', space=vmem, size = 0x12000, scoped, tag = 'output window, operand 1']
    #allocation31 [shape = 's32[2]{0}', space=sflag, size = 0x8, scoped, tag = 'scoped memory for encoder_forward.1']
    %29 = vsyncpa [#allocation3], 0
    %s30 = scalar_lea.sflag [#allocation3], 1
    %31 = vsyncpa %s30, 0
    %32 = vsyncpa [#allocation6], 0
    %s33 = scalar_lea.sflag [#allocation6], 1
    %34 = vsyncpa %s33, 0
    %35 = vsyncpa [#allocation9], 0
    %36 = vsyncpa [#allocation12], 0
    %37 = vsyncpa [#allocation15], 0
    %38 = vsyncpa [#allocation18], 0
    %39 = vsyncpa [#allocation21], 0
    %40 = vsyncpa [#allocation24], 0
    %41 = vsyncpa [#allocation27], 0
    %42 = vsyncpa [#allocation4], 0
    %s43 = scalar_lea.sflag [#allocation4], 1
    %44 = vsyncpa %s43, 0
    %45 = vsyncpa [#allocation31], 0
    %s46 = scalar_lea.sflag [#allocation31], 1
    %47 = vsyncpa %s46, 0
    loop: start=0, step=1, limit=4
    $region2: #{encoder_forward.1} parent=1 // loop_pre_header
      _
    $region3: #{encoder_forward.1} parent=1 // loop_header
      %s49 = sphi 0, %s53
      %p50 = scmp.ge.s32.totalorder %s49, 4
      %s63 = sphi 0, %s65
      %s66 = sphi 0, %s63
      %s67 = sphi 0, %s66
      %s83 = sphi 0, %s67
      %s95 = sphi 0, %s97
      %s98 = sphi 0, %s95
      %s99 = sphi 0, %s98
      %s115 = sphi 0, %s99
      %s119 = sphi 0, %s119
      %s121 = sphi 0, %s119
      %s122 = sphi 0, %s121
      %s136 = sphi 0, %s122
      %s140 = sphi 0, %s140
      %s142 = sphi 0, %s140
      %s143 = sphi 0, %s142
      %s157 = sphi 0, %s143
      %s161 = sphi 0, %s161
      %s163 = sphi 0, %s161
      %s164 = sphi 0, %s163
      %s178 = sphi 0, %s164
      %s182 = sphi 0, %s182
      %s184 = sphi 0, %s182
      %s185 = sphi 0, %s184
      %s199 = sphi 0, %s185
      %s203 = sphi 0, %s203
      %s205 = sphi 0, %s203
      %s206 = sphi 0, %s205
      %s220 = sphi 0, %s206
      %s224 = sphi 0, %s224
      %s226 = sphi 0, %s224
      %s227 = sphi 0, %s226
      %s241 = sphi 0, %s227
      %s245 = sphi 0, %s245
      %s247 = sphi 0, %s245
      %s248 = sphi 0, %s247
      %s262 = sphi 0, %s248
      %s266 = sphi 0, %s266
      %s268 = sphi 0, %s266
      %s269 = sphi 0, %s268
      %s283 = sphi 0, %s269
      %s287 = sphi 0, %s287
      %s289 = sphi 0, %s287
      %s290 = sphi 0, %s289
      %s304 = sphi 0, %s290
      %s308 = sphi 0, %s308
      %s310 = sphi 0, %s308
      %s311 = sphi 0, %s310
      %s325 = sphi 0, %s311
      %s329 = sphi 0, %s329
      %s331 = sphi 0, %s329
      %s332 = sphi 0, %s331
      %s346 = sphi 0, %s332
      %s350 = sphi 0, %s350
      %s352 = sphi 0, %s350
      %s353 = sphi 0, %s352
      %s367 = sphi 0, %s353
      %s371 = sphi 0, %s371
      %s373 = sphi 0, %s371
      %s374 = sphi 0, %s373
      %s388 = sphi 0, %s374
      %s392 = sphi 0, %s392
      %s394 = sphi 0, %s392
      %s395 = sphi 0, %s394
      %s409 = sphi 0, %s395
      %s413 = sphi 0, %s413
      %s415 = sphi 0, %s413
      %s416 = sphi 0, %s415
      %s430 = sphi 0, %s416
      %s434 = sphi 0, %s434
      %s436 = sphi 0, %s434
      %s437 = sphi 0, %s436
      %s451 = sphi 0, %s437
      %s455 = sphi 0, %s455
      %s457 = sphi 0, %s455
      %s458 = sphi 0, %s457
      %s472 = sphi 0, %s458
      %s476 = sphi 0, %s476
      %s478 = sphi 0, %s476
      %s479 = sphi 0, %s478
      %s493 = sphi 0, %s479
      %s497 = sphi 0, %s497
      %s499 = sphi 0, %s497
      %s500 = sphi 0, %s499
      %s514 = sphi 0, %s500
      %s518 = sphi 0, %s518
      %s520 = sphi 0, %s518
      %s521 = sphi 0, %s520
      %s535 = sphi 0, %s521
      %s545 = sphi 0, %s547
      %s548 = sphi 0, %s545
      %s549 = sphi 0, %s548
      %s565 = sphi 0, %s549
      %s577 = sphi 0, %s579
      %s580 = sphi 0, %s577
      %s581 = sphi 0, %s580
      %s597 = sphi 0, %s581
    $region4: #{encoder_forward.1} parent=1 // loop_header_branch
      %52 = sbr.rel (%p50) target = $region8
    $region5: #{encoder_forward.1} parent=1 // loop_body
      %s54 = ssub.s32 %s49, 1
      %s55 = ssub.s32 %s49, 2
      %s56 = sadd.s32 %s49, 1
      %p57 = scmp.lt.s32.totalorder %s49, 0
      %s58 = scalar_select %p57, %s49, 0
      %p59 = scmp.lt.s32.totalorder %s56, 0
      %s60 = scalar_select %p59, %s56, 0
      %s61 = ssub.s32 %s58, %s60
      %p62 = scmp.eq.s32.totalorder %s61, 0
      %s64 = sadd.s32 %s63, 1
      %s65 = scalar_select %p62, %s63, %s64
      %p68 = pneg %p62
      %p69 = scmp.eq.s32.totalorder %s49, 1
      %p70 = por %p68, %p69
      %p71 = scmp.ne.s32.totalorder %s63, %s66
      %p72 = scmp.eq.s32.totalorder %s49, 0
      %p73 = por %p71, %p72
      %p74 = scmp.ne.s32.totalorder %s63, %s66
      %p75 = scmp.eq.s32.totalorder %s54, 1
      %p76 = por %p74, %p75
      %p77 = scmp.ne.s32.totalorder %s66, %s67
      %p78 = scmp.eq.s32.totalorder %s54, 0
      %p79 = por %p77, %p78
      %p80 = scmp.ne.s32.totalorder %s66, %s67
      %p81 = scmp.eq.s32.totalorder %s55, 1
      %p82 = por %p80, %p81
      %p84 = scmp.ne.s32.totalorder %s67, %s83
      %p85 = scmp.eq.s32.totalorder %s55, 0
      %p86 = por %p84, %p85
      %s87 = ssub.s32 %s49, 1
      %p88 = scmp.gt.s32.totalorder %s87, 0
      %s89 = scalar_select %p88, %s87, 0
      %s90 = ssub.s32 %s56, 1
      %p91 = scmp.gt.s32.totalorder %s90, 0
      %s92 = scalar_select %p91, %s90, 0
      %s93 = ssub.s32 %s89, %s92
      %p94 = scmp.eq.s32.totalorder %s93, 0
      %s96 = sadd.s32 %s95, 1
      %s97 = scalar_select %p94, %s95, %s96
      %p100 = pneg %p94
      %p101 = scmp.eq.s32.totalorder %s49, 1
      %p102 = por %p100, %p101
      %p103 = scmp.ne.s32.totalorder %s95, %s98
      %p104 = scmp.eq.s32.totalorder %s49, 0
      %p105 = por %p103, %p104
      %p106 = scmp.ne.s32.totalorder %s95, %s98
      %p107 = scmp.eq.s32.totalorder %s54, 1
      %p108 = por %p106, %p107
      %p109 = scmp.ne.s32.totalorder %s98, %s99
      %p110 = scmp.eq.s32.totalorder %s54, 0
      %p111 = por %p109, %p110
      %p112 = scmp.ne.s32.totalorder %s98, %s99
      %p113 = scmp.eq.s32.totalorder %s55, 1
      %p114 = por %p112, %p113
      %p116 = scmp.ne.s32.totalorder %s99, %s115
      %p117 = scmp.eq.s32.totalorder %s55, 0
      %p118 = por %p116, %p117
      %s120 = sadd.s32 %s119, 1
      %p123 = scmp.eq.s32.totalorder %s49, 1
      %p124 = scmp.ne.s32.totalorder %s119, %s121
      %p125 = scmp.eq.s32.totalorder %s49, 0
      %p126 = por %p124, %p125
      %p127 = scmp.ne.s32.totalorder %s119, %s121
      %p128 = scmp.eq.s32.totalorder %s54, 1
      %p129 = por %p127, %p128
      %p130 = scmp.ne.s32.totalorder %s121, %s122
      %p131 = scmp.eq.s32.totalorder %s54, 0
      %p132 = por %p130, %p131
      %p133 = scmp.ne.s32.totalorder %s121, %s122
      %p134 = scmp.eq.s32.totalorder %s55, 1
      %p135 = por %p133, %p134
      %p137 = scmp.ne.s32.totalorder %s122, %s136
      %p138 = scmp.eq.s32.totalorder %s55, 0
      %p139 = por %p137, %p138
      %s141 = sadd.s32 %s140, 1
      %p144 = scmp.eq.s32.totalorder %s49, 1
      %p145 = scmp.ne.s32.totalorder %s140, %s142
      %p146 = scmp.eq.s32.totalorder %s49, 0
      %p147 = por %p145, %p146
      %p148 = scmp.ne.s32.totalorder %s140, %s142
      %p149 = scmp.eq.s32.totalorder %s54, 1
      %p150 = por %p148, %p149
      %p151 = scmp.ne.s32.totalorder %s142, %s143
      %p152 = scmp.eq.s32.totalorder %s54, 0
      %p153 = por %p151, %p152
      %p154 = scmp.ne.s32.totalorder %s142, %s143
      %p155 = scmp.eq.s32.totalorder %s55, 1
      %p156 = por %p154, %p155
      %p158 = scmp.ne.s32.totalorder %s143, %s157
      %p159 = scmp.eq.s32.totalorder %s55, 0
      %p160 = por %p158, %p159
      %s162 = sadd.s32 %s161, 1
      %p165 = scmp.eq.s32.totalorder %s49, 1
      %p166 = scmp.ne.s32.totalorder %s161, %s163
      %p167 = scmp.eq.s32.totalorder %s49, 0
      %p168 = por %p166, %p167
      %p169 = scmp.ne.s32.totalorder %s161, %s163
      %p170 = scmp.eq.s32.totalorder %s54, 1
      %p171 = por %p169, %p170
      %p172 = scmp.ne.s32.totalorder %s163, %s164
      %p173 = scmp.eq.s32.totalorder %s54, 0
      %p174 = por %p172, %p173
      %p175 = scmp.ne.s32.totalorder %s163, %s164
      %p176 = scmp.eq.s32.totalorder %s55, 1
      %p177 = por %p175, %p176
      %p179 = scmp.ne.s32.totalorder %s164, %s178
      %p180 = scmp.eq.s32.totalorder %s55, 0
      %p181 = por %p179, %p180
      %s183 = sadd.s32 %s182, 1
      %p186 = scmp.eq.s32.totalorder %s49, 1
      %p187 = scmp.ne.s32.totalorder %s182, %s184
      %p188 = scmp.eq.s32.totalorder %s49, 0
      %p189 = por %p187, %p188
      %p190 = scmp.ne.s32.totalorder %s182, %s184
      %p191 = scmp.eq.s32.totalorder %s54, 1
      %p192 = por %p190, %p191
      %p193 = scmp.ne.s32.totalorder %s184, %s185
      %p194 = scmp.eq.s32.totalorder %s54, 0
      %p195 = por %p193, %p194
      %p196 = scmp.ne.s32.totalorder %s184, %s185
      %p197 = scmp.eq.s32.totalorder %s55, 1
      %p198 = por %p196, %p197
      %p200 = scmp.ne.s32.totalorder %s185, %s199
      %p201 = scmp.eq.s32.totalorder %s55, 0
      %p202 = por %p200, %p201
      %s204 = sadd.s32 %s203, 1
      %p207 = scmp.eq.s32.totalorder %s49, 1
      %p208 = scmp.ne.s32.totalorder %s203, %s205
      %p209 = scmp.eq.s32.totalorder %s49, 0
      %p210 = por %p208, %p209
      %p211 = scmp.ne.s32.totalorder %s203, %s205
      %p212 = scmp.eq.s32.totalorder %s54, 1
      %p213 = por %p211, %p212
      %p214 = scmp.ne.s32.totalorder %s205, %s206
      %p215 = scmp.eq.s32.totalorder %s54, 0
      %p216 = por %p214, %p215
      %p217 = scmp.ne.s32.totalorder %s205, %s206
      %p218 = scmp.eq.s32.totalorder %s55, 1
      %p219 = por %p217, %p218
      %p221 = scmp.ne.s32.totalorder %s206, %s220
      %p222 = scmp.eq.s32.totalorder %s55, 0
      %p223 = por %p221, %p222
      %s225 = sadd.s32 %s224, 1
      %p228 = scmp.eq.s32.totalorder %s49, 1
      %p229 = scmp.ne.s32.totalorder %s224, %s226
      %p230 = scmp.eq.s32.totalorder %s49, 0
      %p231 = por %p229, %p230
      %p232 = scmp.ne.s32.totalorder %s224, %s226
      %p233 = scmp.eq.s32.totalorder %s54, 1
      %p234 = por %p232, %p233
      %p235 = scmp.ne.s32.totalorder %s226, %s227
      %p236 = scmp.eq.s32.totalorder %s54, 0
      %p237 = por %p235, %p236
      %p238 = scmp.ne.s32.totalorder %s226, %s227
      %p239 = scmp.eq.s32.totalorder %s55, 1
      %p240 = por %p238, %p239
      %p242 = scmp.ne.s32.totalorder %s227, %s241
      %p243 = scmp.eq.s32.totalorder %s55, 0
      %p244 = por %p242, %p243
      %s246 = sadd.s32 %s245, 1
      %p249 = scmp.eq.s32.totalorder %s49, 1
      %p250 = scmp.ne.s32.totalorder %s245, %s247
      %p251 = scmp.eq.s32.totalorder %s49, 0
      %p252 = por %p250, %p251
      %p253 = scmp.ne.s32.totalorder %s245, %s247
      %p254 = scmp.eq.s32.totalorder %s54, 1
      %p255 = por %p253, %p254
      %p256 = scmp.ne.s32.totalorder %s247, %s248
      %p257 = scmp.eq.s32.totalorder %s54, 0
      %p258 = por %p256, %p257
      %p259 = scmp.ne.s32.totalorder %s247, %s248
      %p260 = scmp.eq.s32.totalorder %s55, 1
      %p261 = por %p259, %p260
      %p263 = scmp.ne.s32.totalorder %s248, %s262
      %p264 = scmp.eq.s32.totalorder %s55, 0
      %p265 = por %p263, %p264
      %s267 = sadd.s32 %s266, 1
      %p270 = scmp.eq.s32.totalorder %s49, 1
      %p271 = scmp.ne.s32.totalorder %s266, %s268
      %p272 = scmp.eq.s32.totalorder %s49, 0
      %p273 = por %p271, %p272
      %p274 = scmp.ne.s32.totalorder %s266, %s268
      %p275 = scmp.eq.s32.totalorder %s54, 1
      %p276 = por %p274, %p275
      %p277 = scmp.ne.s32.totalorder %s268, %s269
      %p278 = scmp.eq.s32.totalorder %s54, 0
      %p279 = por %p277, %p278
      %p280 = scmp.ne.s32.totalorder %s268, %s269
      %p281 = scmp.eq.s32.totalorder %s55, 1
      %p282 = por %p280, %p281
      %p284 = scmp.ne.s32.totalorder %s269, %s283
      %p285 = scmp.eq.s32.totalorder %s55, 0
      %p286 = por %p284, %p285
      %s288 = sadd.s32 %s287, 1
      %p291 = scmp.eq.s32.totalorder %s49, 1
      %p292 = scmp.ne.s32.totalorder %s287, %s289
      %p293 = scmp.eq.s32.totalorder %s49, 0
      %p294 = por %p292, %p293
      %p295 = scmp.ne.s32.totalorder %s287, %s289
      %p296 = scmp.eq.s32.totalorder %s54, 1
      %p297 = por %p295, %p296
      %p298 = scmp.ne.s32.totalorder %s289, %s290
      %p299 = scmp.eq.s32.totalorder %s54, 0
      %p300 = por %p298, %p299
      %p301 = scmp.ne.s32.totalorder %s289, %s290
      %p302 = scmp.eq.s32.totalorder %s55, 1
      %p303 = por %p301, %p302
      %p305 = scmp.ne.s32.totalorder %s290, %s304
      %p306 = scmp.eq.s32.totalorder %s55, 0
      %p307 = por %p305, %p306
      %s309 = sadd.s32 %s308, 1
      %p312 = scmp.eq.s32.totalorder %s49, 1
      %p313 = scmp.ne.s32.totalorder %s308, %s310
      %p314 = scmp.eq.s32.totalorder %s49, 0
      %p315 = por %p313, %p314
      %p316 = scmp.ne.s32.totalorder %s308, %s310
      %p317 = scmp.eq.s32.totalorder %s54, 1
      %p318 = por %p316, %p317
      %p319 = scmp.ne.s32.totalorder %s310, %s311
      %p320 = scmp.eq.s32.totalorder %s54, 0
      %p321 = por %p319, %p320
      %p322 = scmp.ne.s32.totalorder %s310, %s311
      %p323 = scmp.eq.s32.totalorder %s55, 1
      %p324 = por %p322, %p323
      %p326 = scmp.ne.s32.totalorder %s311, %s325
      %p327 = scmp.eq.s32.totalorder %s55, 0
      %p328 = por %p326, %p327
      %s330 = sadd.s32 %s329, 1
      %p333 = scmp.eq.s32.totalorder %s49, 1
      %p334 = scmp.ne.s32.totalorder %s329, %s331
      %p335 = scmp.eq.s32.totalorder %s49, 0
      %p336 = por %p334, %p335
      %p337 = scmp.ne.s32.totalorder %s329, %s331
      %p338 = scmp.eq.s32.totalorder %s54, 1
      %p339 = por %p337, %p338
      %p340 = scmp.ne.s32.totalorder %s331, %s332
      %p341 = scmp.eq.s32.totalorder %s54, 0
      %p342 = por %p340, %p341
      %p343 = scmp.ne.s32.totalorder %s331, %s332
      %p344 = scmp.eq.s32.totalorder %s55, 1
      %p345 = por %p343, %p344
      %p347 = scmp.ne.s32.totalorder %s332, %s346
      %p348 = scmp.eq.s32.totalorder %s55, 0
      %p349 = por %p347, %p348
      %s351 = sadd.s32 %s350, 1
      %p354 = scmp.eq.s32.totalorder %s49, 1
      %p355 = scmp.ne.s32.totalorder %s350, %s352
      %p356 = scmp.eq.s32.totalorder %s49, 0
      %p357 = por %p355, %p356
      %p358 = scmp.ne.s32.totalorder %s350, %s352
      %p359 = scmp.eq.s32.totalorder %s54, 1
      %p360 = por %p358, %p359
      %p361 = scmp.ne.s32.totalorder %s352, %s353
      %p362 = scmp.eq.s32.totalorder %s54, 0
      %p363 = por %p361, %p362
      %p364 = scmp.ne.s32.totalorder %s352, %s353
      %p365 = scmp.eq.s32.totalorder %s55, 1
      %p366 = por %p364, %p365
      %p368 = scmp.ne.s32.totalorder %s353, %s367
      %p369 = scmp.eq.s32.totalorder %s55, 0
      %p370 = por %p368, %p369
      %s372 = sadd.s32 %s371, 1
      %p375 = scmp.eq.s32.totalorder %s49, 1
      %p376 = scmp.ne.s32.totalorder %s371, %s373
      %p377 = scmp.eq.s32.totalorder %s49, 0
      %p378 = por %p376, %p377
      %p379 = scmp.ne.s32.totalorder %s371, %s373
      %p380 = scmp.eq.s32.totalorder %s54, 1
      %p381 = por %p379, %p380
      %p382 = scmp.ne.s32.totalorder %s373, %s374
      %p383 = scmp.eq.s32.totalorder %s54, 0
      %p384 = por %p382, %p383
      %p385 = scmp.ne.s32.totalorder %s373, %s374
      %p386 = scmp.eq.s32.totalorder %s55, 1
      %p387 = por %p385, %p386
      %p389 = scmp.ne.s32.totalorder %s374, %s388
      %p390 = scmp.eq.s32.totalorder %s55, 0
      %p391 = por %p389, %p390
      %s393 = sadd.s32 %s392, 1
      %p396 = scmp.eq.s32.totalorder %s49, 1
      %p397 = scmp.ne.s32.totalorder %s392, %s394
      %p398 = scmp.eq.s32.totalorder %s49, 0
      %p399 = por %p397, %p398
      %p400 = scmp.ne.s32.totalorder %s392, %s394
      %p401 = scmp.eq.s32.totalorder %s54, 1
      %p402 = por %p400, %p401
      %p403 = scmp.ne.s32.totalorder %s394, %s395
      %p404 = scmp.eq.s32.totalorder %s54, 0
      %p405 = por %p403, %p404
      %p406 = scmp.ne.s32.totalorder %s394, %s395
      %p407 = scmp.eq.s32.totalorder %s55, 1
      %p408 = por %p406, %p407
      %p410 = scmp.ne.s32.totalorder %s395, %s409
      %p411 = scmp.eq.s32.totalorder %s55, 0
      %p412 = por %p410, %p411
      %s414 = sadd.s32 %s413, 1
      %p417 = scmp.eq.s32.totalorder %s49, 1
      %p418 = scmp.ne.s32.totalorder %s413, %s415
      %p419 = scmp.eq.s32.totalorder %s49, 0
      %p420 = por %p418, %p419
      %p421 = scmp.ne.s32.totalorder %s413, %s415
      %p422 = scmp.eq.s32.totalorder %s54, 1
      %p423 = por %p421, %p422
      %p424 = scmp.ne.s32.totalorder %s415, %s416
      %p425 = scmp.eq.s32.totalorder %s54, 0
      %p426 = por %p424, %p425
      %p427 = scmp.ne.s32.totalorder %s415, %s416
      %p428 = scmp.eq.s32.totalorder %s55, 1
      %p429 = por %p427, %p428
      %p431 = scmp.ne.s32.totalorder %s416, %s430
      %p432 = scmp.eq.s32.totalorder %s55, 0
      %p433 = por %p431, %p432
      %s435 = sadd.s32 %s434, 1
      %p438 = scmp.eq.s32.totalorder %s49, 1
      %p439 = scmp.ne.s32.totalorder %s434, %s436
      %p440 = scmp.eq.s32.totalorder %s49, 0
      %p441 = por %p439, %p440
      %p442 = scmp.ne.s32.totalorder %s434, %s436
      %p443 = scmp.eq.s32.totalorder %s54, 1
      %p444 = por %p442, %p443
      %p445 = scmp.ne.s32.totalorder %s436, %s437
      %p446 = scmp.eq.s32.totalorder %s54, 0
      %p447 = por %p445, %p446
      %p448 = scmp.ne.s32.totalorder %s436, %s437
      %p449 = scmp.eq.s32.totalorder %s55, 1
      %p450 = por %p448, %p449
      %p452 = scmp.ne.s32.totalorder %s437, %s451
      %p453 = scmp.eq.s32.totalorder %s55, 0
      %p454 = por %p452, %p453
      %s456 = sadd.s32 %s455, 1
      %p459 = scmp.eq.s32.totalorder %s49, 1
      %p460 = scmp.ne.s32.totalorder %s455, %s457
      %p461 = scmp.eq.s32.totalorder %s49, 0
      %p462 = por %p460, %p461
      %p463 = scmp.ne.s32.totalorder %s455, %s457
      %p464 = scmp.eq.s32.totalorder %s54, 1
      %p465 = por %p463, %p464
      %p466 = scmp.ne.s32.totalorder %s457, %s458
      %p467 = scmp.eq.s32.totalorder %s54, 0
      %p468 = por %p466, %p467
      %p469 = scmp.ne.s32.totalorder %s457, %s458
      %p470 = scmp.eq.s32.totalorder %s55, 1
      %p471 = por %p469, %p470
      %p473 = scmp.ne.s32.totalorder %s458, %s472
      %p474 = scmp.eq.s32.totalorder %s55, 0
      %p475 = por %p473, %p474
      %s477 = sadd.s32 %s476, 1
      %p480 = scmp.eq.s32.totalorder %s49, 1
      %p481 = scmp.ne.s32.totalorder %s476, %s478
      %p482 = scmp.eq.s32.totalorder %s49, 0
      %p483 = por %p481, %p482
      %p484 = scmp.ne.s32.totalorder %s476, %s478
      %p485 = scmp.eq.s32.totalorder %s54, 1
      %p486 = por %p484, %p485
      %p487 = scmp.ne.s32.totalorder %s478, %s479
      %p488 = scmp.eq.s32.totalorder %s54, 0
      %p489 = por %p487, %p488
      %p490 = scmp.ne.s32.totalorder %s478, %s479
      %p491 = scmp.eq.s32.totalorder %s55, 1
      %p492 = por %p490, %p491
      %p494 = scmp.ne.s32.totalorder %s479, %s493
      %p495 = scmp.eq.s32.totalorder %s55, 0
      %p496 = por %p494, %p495
      %s498 = sadd.s32 %s497, 1
      %p501 = scmp.eq.s32.totalorder %s49, 1
      %p502 = scmp.ne.s32.totalorder %s497, %s499
      %p503 = scmp.eq.s32.totalorder %s49, 0
      %p504 = por %p502, %p503
      %p505 = scmp.ne.s32.totalorder %s497, %s499
      %p506 = scmp.eq.s32.totalorder %s54, 1
      %p507 = por %p505, %p506
      %p508 = scmp.ne.s32.totalorder %s499, %s500
      %p509 = scmp.eq.s32.totalorder %s54, 0
      %p510 = por %p508, %p509
      %p511 = scmp.ne.s32.totalorder %s499, %s500
      %p512 = scmp.eq.s32.totalorder %s55, 1
      %p513 = por %p511, %p512
      %p515 = scmp.ne.s32.totalorder %s500, %s514
      %p516 = scmp.eq.s32.totalorder %s55, 0
      %p517 = por %p515, %p516
      %s519 = sadd.s32 %s518, 1
      %p522 = scmp.eq.s32.totalorder %s49, 1
      %p523 = scmp.ne.s32.totalorder %s518, %s520
      %p524 = scmp.eq.s32.totalorder %s49, 0
      %p525 = por %p523, %p524
      %p526 = scmp.ne.s32.totalorder %s518, %s520
      %p527 = scmp.eq.s32.totalorder %s54, 1
      %p528 = por %p526, %p527
      %p529 = scmp.ne.s32.totalorder %s520, %s521
      %p530 = scmp.eq.s32.totalorder %s54, 0
      %p531 = por %p529, %p530
      %p532 = scmp.ne.s32.totalorder %s520, %s521
      %p533 = scmp.eq.s32.totalorder %s55, 1
      %p534 = por %p532, %p533
      %p536 = scmp.ne.s32.totalorder %s521, %s535
      %p537 = scmp.eq.s32.totalorder %s55, 0
      %p538 = por %p536, %p537
      %p539 = scmp.lt.s32.totalorder %s49, 0
      %s540 = scalar_select %p539, %s49, 0
      %p541 = scmp.lt.s32.totalorder %s56, 0
      %s542 = scalar_select %p541, %s56, 0
      %s543 = ssub.s32 %s540, %s542
      %p544 = scmp.eq.s32.totalorder %s543, 0
      %s546 = sadd.s32 %s545, 1
      %s547 = scalar_select %p544, %s545, %s546
      %p550 = pneg %p544
      %p551 = scmp.eq.s32.totalorder %s49, 1
      %p552 = por %p550, %p551
      %p553 = scmp.ne.s32.totalorder %s545, %s548
      %p554 = scmp.eq.s32.totalorder %s49, 0
      %p555 = por %p553, %p554
      %p556 = scmp.ne.s32.totalorder %s545, %s548
      %p557 = scmp.eq.s32.totalorder %s54, 1
      %p558 = por %p556, %p557
      %p559 = scmp.ne.s32.totalorder %s548, %s549
      %p560 = scmp.eq.s32.totalorder %s54, 0
      %p561 = por %p559, %p560
      %p562 = scmp.ne.s32.totalorder %s548, %s549
      %p563 = scmp.eq.s32.totalorder %s55, 1
      %p564 = por %p562, %p563
      %p566 = scmp.ne.s32.totalorder %s549, %s565
      %p567 = scmp.eq.s32.totalorder %s55, 0
      %p568 = por %p566, %p567
      %s569 = ssub.s32 %s49, 1
      %p570 = scmp.gt.s32.totalorder %s569, 0
      %s571 = scalar_select %p570, %s569, 0
      %s572 = ssub.s32 %s56, 1
      %p573 = scmp.gt.s32.totalorder %s572, 0
      %s574 = scalar_select %p573, %s572, 0
      %s575 = ssub.s32 %s571, %s574
      %p576 = scmp.eq.s32.totalorder %s575, 0
      %s578 = sadd.s32 %s577, 1
      %s579 = scalar_select %p576, %s577, %s578
      %p582 = pneg %p576
      %p583 = scmp.eq.s32.totalorder %s49, 1
      %p584 = por %p582, %p583
      %p585 = scmp.ne.s32.totalorder %s577, %s580
      %p586 = scmp.eq.s32.totalorder %s49, 0
      %p587 = por %p585, %p586
      %p588 = scmp.ne.s32.totalorder %s577, %s580
      %p589 = scmp.eq.s32.totalorder %s54, 1
      %p590 = por %p588, %p589
      %p591 = scmp.ne.s32.totalorder %s580, %s581
      %p592 = scmp.eq.s32.totalorder %s54, 0
      %p593 = por %p591, %p592
      %p594 = scmp.ne.s32.totalorder %s580, %s581
      %p595 = scmp.eq.s32.totalorder %s55, 1
      %p596 = por %p594, %p595
      %p598 = scmp.ne.s32.totalorder %s581, %s597
      %p599 = scmp.eq.s32.totalorder %s55, 0
      %p600 = por %p598, %p599
      %p601 = scmp.le.s32.totalorder 1, %s49
      %p602 = scmp.lt.s32.totalorder %s49, 3
      %p603 = pnand %p601, %p602
      %p604 = pneg %p603
      // Predicated region
      $region9: #{encoder_forward.1} parent=5 // pred_check
        _
      $region10: #{encoder_forward.1} parent=5 // pred_check_branch
        %606 = sbr.rel (%p603) target = $region12
      $region11: #{encoder_forward.1} parent=5 // pred_region
        %s607 = ssub.s32 %s49, 1
        // Predicated region
        $region13: #{encoder_forward.1} parent=11 // pred_check
          %p608 = pneg %p132
        $region14: #{encoder_forward.1} parent=11 // pred_check_branch
          %610 = sbr.rel (%p608) target = $region16
        $region15: #{encoder_forward.1} parent=11 // pred_region
          %s612 = ssub.s32 1024, 1024
          %613 = vsyncadd [#allocation6], %s612
          %s614 = sshll.u32 [#allocation7], 4
          %s615 = int_to_ptr.vmem [resolvable:$true] %s614
          %620 = dma.hbm_to_vmem [thread:$0]  %s2, 1024, %s615, [#allocation6], 64, 64, 4
        $region16: #{encoder_forward.1} parent=11 // pred_fallthru
          _
        // Predicated region
        $region17: #{encoder_forward.1} parent=11 // pred_check
          %p621 = pneg %p153
        $region18: #{encoder_forward.1} parent=11 // pred_check_branch
          %623 = sbr.rel (%p621) target = $region20
        $region19: #{encoder_forward.1} parent=11 // pred_region
          %s625 = ssub.s32 16, 16
          %626 = vsyncadd [#allocation9], %s625
          %s628 = sshll.u32 [#allocation8], 4
          %s629 = int_to_ptr.vmem [resolvable:$true] %s628
          %631 = dma.hbm_to_vmem [thread:$0]  %s3, 16, %s629, [#allocation9]
        $region20: #{encoder_forward.1} parent=11 // pred_fallthru
          _
        // Predicated region
        $region21: #{encoder_forward.1} parent=11 // pred_check
          %p632 = pneg %p174
        $region22: #{encoder_forward.1} parent=11 // pred_check_branch
          %634 = sbr.rel (%p632) target = $region24
        $region23: #{encoder_forward.1} parent=11 // pred_region
          %s636 = ssub.s32 1024, 1024
          %637 = vsyncadd [#allocation9], %s636
          %s638 = sshll.u32 [#allocation10], 4
          %s639 = int_to_ptr.vmem [resolvable:$true] %s638
          %644 = dma.hbm_to_vmem [thread:$0]  %s4, 1024, %s639, [#allocation9], 64, 64, 4
        $region24: #{encoder_forward.1} parent=11 // pred_fallthru
          _
        // Predicated region
        $region25: #{encoder_forward.1} parent=11 // pred_check
          %p645 = pneg %p195
        $region26: #{encoder_forward.1} parent=11 // pred_check_branch
          %647 = sbr.rel (%p645) target = $region28
        $region27: #{encoder_forward.1} parent=11 // pred_region
          %s649 = ssub.s32 16, 16
          %650 = vsyncadd [#allocation12], %s649
          %s652 = sshll.u32 [#allocation11], 4
          %s653 = int_to_ptr.vmem [resolvable:$true] %s652
          %655 = dma.hbm_to_vmem [thread:$0]  %s5, 16, %s653, [#allocation12]
        $region28: #{encoder_forward.1} parent=11 // pred_fallthru
          _
        // Predicated region
        $region29: #{encoder_forward.1} parent=11 // pred_check
          %p656 = pneg %p216
        $region30: #{encoder_forward.1} parent=11 // pred_check_branch
          %658 = sbr.rel (%p656) target = $region32
        $region31: #{encoder_forward.1} parent=11 // pred_region
          %s660 = ssub.s32 1024, 1024
          %661 = vsyncadd [#allocation12], %s660
          %s662 = sshll.u32 [#allocation13], 4
          %s663 = int_to_ptr.vmem [resolvable:$true] %s662
          %668 = dma.hbm_to_vmem [thread:$0]  %s6, 1024, %s663, [#allocation12], 64, 64, 4
        $region32: #{encoder_forward.1} parent=11 // pred_fallthru
          _
        // Predicated region
        $region33: #{encoder_forward.1} parent=11 // pred_check
          %p669 = pneg %p237
        $region34: #{encoder_forward.1} parent=11 // pred_check_branch
          %671 = sbr.rel (%p669) target = $region36
        $region35: #{encoder_forward.1} parent=11 // pred_region
          %s673 = ssub.s32 16, 16
          %674 = vsyncadd [#allocation15], %s673
          %s676 = sshll.u32 [#allocation14], 4
          %s677 = int_to_ptr.vmem [resolvable:$true] %s676
          %679 = dma.hbm_to_vmem [thread:$0]  %s7, 16, %s677, [#allocation15]
        $region36: #{encoder_forward.1} parent=11 // pred_fallthru
          _
        // Predicated region
        $region37: #{encoder_forward.1} parent=11 // pred_check
          %p680 = pneg %p258
        $region38: #{encoder_forward.1} parent=11 // pred_check_branch
          %682 = sbr.rel (%p680) target = $region40
        $region39: #{encoder_forward.1} parent=11 // pred_region
          %s684 = ssub.s32 1024, 1024
          %685 = vsyncadd [#allocation15], %s684
          %s686 = sshll.u32 [#allocation16], 4
          %s687 = int_to_ptr.vmem [resolvable:$true] %s686
          %692 = dma.hbm_to_vmem [thread:$0]  %s8, 1024, %s687, [#allocation15], 64, 64, 4
        $region40: #{encoder_forward.1} parent=11 // pred_fallthru
          _
        // Predicated region
        $region41: #{encoder_forward.1} parent=11 // pred_check
          %p693 = pneg %p279
        $region42: #{encoder_forward.1} parent=11 // pred_check_branch
          %695 = sbr.rel (%p693) target = $region44
        $region43: #{encoder_forward.1} parent=11 // pred_region
          %s697 = ssub.s32 16, 16
          %698 = vsyncadd [#allocation18], %s697
          %s700 = sshll.u32 [#allocation17], 4
          %s701 = int_to_ptr.vmem [resolvable:$true] %s700
          %703 = dma.hbm_to_vmem [thread:$0]  %s9, 16, %s701, [#allocation18]
        $region44: #{encoder_forward.1} parent=11 // pred_fallthru
          _
        // Predicated region
        $region45: #{encoder_forward.1} parent=11 // pred_check
          %p704 = pneg %p300
        $region46: #{encoder_forward.1} parent=11 // pred_check_branch
          %706 = sbr.rel (%p704) target = $region48
        $region47: #{encoder_forward.1} parent=11 // pred_region
          %s708 = ssub.s32 16, 16
          %709 = vsyncadd [#allocation18], %s708
          %s711 = sshll.u32 [#allocation19], 4
          %s712 = int_to_ptr.vmem [resolvable:$true] %s711
          %714 = dma.hbm_to_vmem [thread:$0]  %s10, 16, %s712, [#allocation18]
        $region48: #{encoder_forward.1} parent=11 // pred_fallthru
          _
        // Predicated region
        $region49: #{encoder_forward.1} parent=11 // pred_check
          %p715 = pneg %p321
        $region50: #{encoder_forward.1} parent=11 // pred_check_branch
          %717 = sbr.rel (%p715) target = $region52
        $region51: #{encoder_forward.1} parent=11 // pred_region
          %s719 = ssub.s32 16, 16
          %720 = vsyncadd [#allocation21], %s719
          %s722 = sshll.u32 [#allocation20], 4
          %s723 = int_to_ptr.vmem [resolvable:$true] %s722
          %725 = dma.hbm_to_vmem [thread:$0]  %s11, 16, %s723, [#allocation21]
        $region52: #{encoder_forward.1} parent=11 // pred_fallthru
          _
        // Predicated region
        $region53: #{encoder_forward.1} parent=11 // pred_check
          %p726 = pneg %p342
        $region54: #{encoder_forward.1} parent=11 // pred_check_branch
          %728 = sbr.rel (%p726) target = $region56
        $region55: #{encoder_forward.1} parent=11 // pred_region
          %s730 = ssub.s32 1024, 1024
          %731 = vsyncadd [#allocation21], %s730
          %s732 = sshll.u32 [#allocation22], 4
          %s733 = int_to_ptr.vmem [resolvable:$true] %s732
          %738 = dma.hbm_to_vmem [thread:$0]  %s12, 1024, %s733, [#allocation21], 64, 64, 4
        $region56: #{encoder_forward.1} parent=11 // pred_fallthru
          _
        // Predicated region
        $region57: #{encoder_forward.1} parent=11 // pred_check
          %p739 = pneg %p363
        $region58: #{encoder_forward.1} parent=11 // pred_check_branch
          %741 = sbr.rel (%p739) target = $region60
        $region59: #{encoder_forward.1} parent=11 // pred_region
          %s743 = ssub.s32 16, 16
          %744 = vsyncadd [#allocation24], %s743
          %s746 = sshll.u32 [#allocation23], 4
          %s747 = int_to_ptr.vmem [resolvable:$true] %s746
          %749 = dma.hbm_to_vmem [thread:$0]  %s13, 16, %s747, [#allocation24]
        $region60: #{encoder_forward.1} parent=11 // pred_fallthru
          _
        // Predicated region
        $region61: #{encoder_forward.1} parent=11 // pred_check
          %p750 = pneg %p384
        $region62: #{encoder_forward.1} parent=11 // pred_check_branch
          %752 = sbr.rel (%p750) target = $region64
        $region63: #{encoder_forward.1} parent=11 // pred_region
          %s754 = ssub.s32 1024, 1024
          %755 = vsyncadd [#allocation24], %s754
          %s756 = sshll.u32 [#allocation25], 4
          %s757 = int_to_ptr.vmem [resolvable:$true] %s756
          %762 = dma.hbm_to_vmem [thread:$0]  %s14, 1024, %s757, [#allocation24], 64, 64, 4
        $region64: #{encoder_forward.1} parent=11 // pred_fallthru
          _
        // Predicated region
        $region65: #{encoder_forward.1} parent=11 // pred_check
          %p763 = pneg %p405
        $region66: #{encoder_forward.1} parent=11 // pred_check_branch
          %765 = sbr.rel (%p763) target = $region68
        $region67: #{encoder_forward.1} parent=11 // pred_region
          %s767 = ssub.s32 16, 16
          %768 = vsyncadd [#allocation27], %s767
          %s770 = sshll.u32 [#allocation26], 4
          %s771 = int_to_ptr.vmem [resolvable:$true] %s770
          %773 = dma.hbm_to_vmem [thread:$0]  %s15, 16, %s771, [#allocation27]
        $region68: #{encoder_forward.1} parent=11 // pred_fallthru
          _
        // Predicated region
        $region69: #{encoder_forward.1} parent=11 // pred_check
          %p774 = pneg %p426
        $region70: #{encoder_forward.1} parent=11 // pred_check_branch
          %776 = sbr.rel (%p774) target = $region72
        $region71: #{encoder_forward.1} parent=11 // pred_region
          _
        $region72: #{encoder_forward.1} parent=11 // pred_fallthru
          _
        // Predicated region
        $region73: #{encoder_forward.1} parent=11 // pred_check
          %p777 = pneg %p447
        $region74: #{encoder_forward.1} parent=11 // pred_check_branch
          %779 = sbr.rel (%p777) target = $region76
        $region75: #{encoder_forward.1} parent=11 // pred_region
          _
        $region76: #{encoder_forward.1} parent=11 // pred_fallthru
          _
        // Predicated region
        $region77: #{encoder_forward.1} parent=11 // pred_check
          %p780 = pneg %p468
        $region78: #{encoder_forward.1} parent=11 // pred_check_branch
          %782 = sbr.rel (%p780) target = $region80
        $region79: #{encoder_forward.1} parent=11 // pred_region
          %s784 = ssub.s32 1024, 1024
          %785 = vsyncadd [#allocation27], %s784
          %s786 = sshll.u32 [#allocation28], 4
          %s787 = int_to_ptr.vmem [resolvable:$true] %s786
          %792 = dma.hbm_to_vmem [thread:$0]  %s18, 1024, %s787, [#allocation27], 64, 64, 4
        $region80: #{encoder_forward.1} parent=11 // pred_fallthru
          _
        // Predicated region
        $region81: #{encoder_forward.1} parent=11 // pred_check
          %p793 = pneg %p489
        $region82: #{encoder_forward.1} parent=11 // pred_check_branch
          %795 = sbr.rel (%p793) target = $region84
        $region83: #{encoder_forward.1} parent=11 // pred_region
          _
        $region84: #{encoder_forward.1} parent=11 // pred_fallthru
          _
        // Predicated region
        $region85: #{encoder_forward.1} parent=11 // pred_check
          %p796 = pneg %p510
        $region86: #{encoder_forward.1} parent=11 // pred_check_branch
          %798 = sbr.rel (%p796) target = $region88
        $region87: #{encoder_forward.1} parent=11 // pred_region
          _
        $region88: #{encoder_forward.1} parent=11 // pred_fallthru
          _
        // Predicated region
        $region89: #{encoder_forward.1} parent=11 // pred_check
          %p799 = pneg %p531
        $region90: #{encoder_forward.1} parent=11 // pred_check_branch
          %801 = sbr.rel (%p799) target = $region92
        $region91: #{encoder_forward.1} parent=11 // pred_region
          _
        $region92: #{encoder_forward.1} parent=11 // pred_fallthru
          _
      $region12: #{encoder_forward.1} parent=5 // pred_fallthru
        _
      %p802 = scmp.lt.s32.totalorder %s49, 2
      // Predicated region
      $region93: #{encoder_forward.1} parent=5 // pred_check
        %p803 = pneg %p802
      $region94: #{encoder_forward.1} parent=5 // pred_check_branch
        %805 = sbr.rel (%p803) target = $region96
      $region95: #{encoder_forward.1} parent=5 // pred_region
        // Predicated region
        $region97: #{encoder_forward.1} parent=95 // pred_check
          %p806 = pneg %p73
        $region98: #{encoder_forward.1} parent=95 // pred_check_branch
          %808 = sbr.rel (%p806) target = $region100
        $region99: #{encoder_forward.1} parent=95 // pred_region
          %s809 = sand.u32 %s63, 1
          %s810 = scalar_lea.sflag [#allocation3], %s809
          %s811 = sand.u32 %s63, 1
          %s812 = smul.addr %s811, 40
          %s813 = scalar_lea.vmem [#allocation2], %s812
          %p814 = scmp.lt.s32.totalorder %s49, 0
          %s815 = scalar_select %p814, %s49, 0
          %s816 = smul.u32 5, %s815
          %s818 = ssub.s32 640, 640
          %819 = vsyncadd %s810, %s818
          %s820 = smul.addr %s816, 128
          %s821 = scalar_lea.hbm %s0, %s820
          %s822 = sshll.u32 %s813, 4
          %s823 = int_to_ptr.vmem [resolvable:$true] %s822
          %828 = dma.hbm_to_vmem [thread:$0]  %s821, 640, %s823, %s810, 128, 128, 8
        $region100: #{encoder_forward.1} parent=95 // pred_fallthru
          _
        // Predicated region
        $region101: #{encoder_forward.1} parent=95 // pred_check
          %p829 = pneg %p105
        $region102: #{encoder_forward.1} parent=95 // pred_check_branch
          %831 = sbr.rel (%p829) target = $region104
        $region103: #{encoder_forward.1} parent=95 // pred_region
          %s832 = sand.u32 %s49, 1
          %s833 = scalar_lea.sflag [#allocation6], %s832
          %s834 = sand.u32 %s95, 1
          %s835 = smul.addr %s834, 72
          %s836 = scalar_lea.vmem [#allocation5], %s835
          %s837 = ssub.s32 %s49, 1
          %p838 = scmp.gt.s32.totalorder %s837, 0
          %s839 = scalar_select %p838, %s837, 0
          %s840 = smul.u32 9, %s839
          %s842 = ssub.s32 1152, 1152
          %843 = vsyncadd %s833, %s842
          %s844 = smul.addr %s840, 128
          %s845 = scalar_lea.hbm %s1, %s844
          %s846 = sshll.u32 %s836, 4
          %s847 = int_to_ptr.vmem [resolvable:$true] %s846
          %852 = dma.hbm_to_vmem [thread:$0]  %s845, 1152, %s847, %s833, 128, 128, 8
        $region104: #{encoder_forward.1} parent=95 // pred_fallthru
          _
      $region96: #{encoder_forward.1} parent=5 // pred_fallthru
        _
      %p853 = scmp.le.s32.totalorder 1, %s49
      %p854 = scmp.lt.s32.totalorder %s49, 3
      %p855 = pnand %p853, %p854
      %p856 = pneg %p855
      // Predicated region
      $region105: #{encoder_forward.1} parent=5 // pred_check
        _
      $region106: #{encoder_forward.1} parent=5 // pred_check_branch
        %858 = sbr.rel (%p855) target = $region108
      $region107: #{encoder_forward.1} parent=5 // pred_region
        %s859 = ssub.s32 %s49, 1
        %s860 = sand.u32 %s66, 1
        %s861 = scalar_lea.sflag [#allocation3], %s860
        %s862 = sand.u32 %s66, 1
        %s863 = smul.addr %s862, 40
        %s864 = scalar_lea.vmem [#allocation2], %s863
        // Predicated region
        $region109: #{encoder_forward.1} parent=107 // pred_check
          %p865 = pneg %p79
        $region110: #{encoder_forward.1} parent=107 // pred_check_branch
          %867 = sbr.rel (%p865) target = $region112
        $region111: #{encoder_forward.1} parent=107 // pred_region
          %868 = dma.done %s861, 640
        $region112: #{encoder_forward.1} parent=107 // pred_fallthru
          _
        %s869 = sand.u32 %s54, 1
        %s870 = scalar_lea.sflag [#allocation6], %s869
        %s871 = sand.u32 %s98, 1
        %s872 = smul.addr %s871, 72
        %s873 = scalar_lea.vmem [#allocation5], %s872
        // Predicated region
        $region113: #{encoder_forward.1} parent=107 // pred_check
          %p874 = pneg %p111
        $region114: #{encoder_forward.1} parent=107 // pred_check_branch
          %876 = sbr.rel (%p874) target = $region116
        $region115: #{encoder_forward.1} parent=107 // pred_region
          %877 = dma.done %s870, 1152
        $region116: #{encoder_forward.1} parent=107 // pred_fallthru
          _
        // Predicated region
        $region117: #{encoder_forward.1} parent=107 // pred_check
          %p878 = pneg %p132
        $region118: #{encoder_forward.1} parent=107 // pred_check_branch
          %880 = sbr.rel (%p878) target = $region120
        $region119: #{encoder_forward.1} parent=107 // pred_region
          %881 = dma.done [#allocation6], 1024
        $region120: #{encoder_forward.1} parent=107 // pred_fallthru
          _
        // Predicated region
        $region121: #{encoder_forward.1} parent=107 // pred_check
          %p882 = pneg %p153
        $region122: #{encoder_forward.1} parent=107 // pred_check_branch
          %884 = sbr.rel (%p882) target = $region124
        $region123: #{encoder_forward.1} parent=107 // pred_region
          %885 = dma.done [#allocation9], 16
        $region124: #{encoder_forward.1} parent=107 // pred_fallthru
          _
        // Predicated region
        $region125: #{encoder_forward.1} parent=107 // pred_check
          %p886 = pneg %p174
        $region126: #{encoder_forward.1} parent=107 // pred_check_branch
          %888 = sbr.rel (%p886) target = $region128
        $region127: #{encoder_forward.1} parent=107 // pred_region
          %889 = dma.done [#allocation9], 1024
        $region128: #{encoder_forward.1} parent=107 // pred_fallthru
          _
        // Predicated region
        $region129: #{encoder_forward.1} parent=107 // pred_check
          %p890 = pneg %p195
        $region130: #{encoder_forward.1} parent=107 // pred_check_branch
          %892 = sbr.rel (%p890) target = $region132
        $region131: #{encoder_forward.1} parent=107 // pred_region
          %893 = dma.done [#allocation12], 16
        $region132: #{encoder_forward.1} parent=107 // pred_fallthru
          _
        // Predicated region
        $region133: #{encoder_forward.1} parent=107 // pred_check
          %p894 = pneg %p216
        $region134: #{encoder_forward.1} parent=107 // pred_check_branch
          %896 = sbr.rel (%p894) target = $region136
        $region135: #{encoder_forward.1} parent=107 // pred_region
          %897 = dma.done [#allocation12], 1024
        $region136: #{encoder_forward.1} parent=107 // pred_fallthru
          _
        // Predicated region
        $region137: #{encoder_forward.1} parent=107 // pred_check
          %p898 = pneg %p237
        $region138: #{encoder_forward.1} parent=107 // pred_check_branch
          %900 = sbr.rel (%p898) target = $region140
        $region139: #{encoder_forward.1} parent=107 // pred_region
          %901 = dma.done [#allocation15], 16
        $region140: #{encoder_forward.1} parent=107 // pred_fallthru
          _
        // Predicated region
        $region141: #{encoder_forward.1} parent=107 // pred_check
          %p902 = pneg %p258
        $region142: #{encoder_forward.1} parent=107 // pred_check_branch
          %904 = sbr.rel (%p902) target = $region144
        $region143: #{encoder_forward.1} parent=107 // pred_region
          %905 = dma.done [#allocation15], 1024
        $region144: #{encoder_forward.1} parent=107 // pred_fallthru
          _
        // Predicated region
        $region145: #{encoder_forward.1} parent=107 // pred_check
          %p906 = pneg %p279
        $region146: #{encoder_forward.1} parent=107 // pred_check_branch
          %908 = sbr.rel (%p906) target = $region148
        $region147: #{encoder_forward.1} parent=107 // pred_region
          %909 = dma.done [#allocation18], 16
        $region148: #{encoder_forward.1} parent=107 // pred_fallthru
          _
        // Predicated region
        $region149: #{encoder_forward.1} parent=107 // pred_check
          %p910 = pneg %p300
        $region150: #{encoder_forward.1} parent=107 // pred_check_branch
          %912 = sbr.rel (%p910) target = $region152
        $region151: #{encoder_forward.1} parent=107 // pred_region
          %913 = dma.done [#allocation18], 16
        $region152: #{encoder_forward.1} parent=107 // pred_fallthru
          _
        // Predicated region
        $region153: #{encoder_forward.1} parent=107 // pred_check
          %p914 = pneg %p321
        $region154: #{encoder_forward.1} parent=107 // pred_check_branch
          %916 = sbr.rel (%p914) target = $region156
        $region155: #{encoder_forward.1} parent=107 // pred_region
          %917 = dma.done [#allocation21], 16
        $region156: #{encoder_forward.1} parent=107 // pred_fallthru
          _
        // Predicated region
        $region157: #{encoder_forward.1} parent=107 // pred_check
          %p918 = pneg %p342
        $region158: #{encoder_forward.1} parent=107 // pred_check_branch
          %920 = sbr.rel (%p918) target = $region160
        $region159: #{encoder_forward.1} parent=107 // pred_region
          %921 = dma.done [#allocation21], 1024
        $region160: #{encoder_forward.1} parent=107 // pred_fallthru
          _
        // Predicated region
        $region161: #{encoder_forward.1} parent=107 // pred_check
          %p922 = pneg %p363
        $region162: #{encoder_forward.1} parent=107 // pred_check_branch
          %924 = sbr.rel (%p922) target = $region164
        $region163: #{encoder_forward.1} parent=107 // pred_region
          %925 = dma.done [#allocation24], 16
        $region164: #{encoder_forward.1} parent=107 // pred_fallthru
          _
        // Predicated region
        $region165: #{encoder_forward.1} parent=107 // pred_check
          %p926 = pneg %p384
        $region166: #{encoder_forward.1} parent=107 // pred_check_branch
          %928 = sbr.rel (%p926) target = $region168
        $region167: #{encoder_forward.1} parent=107 // pred_region
          %929 = dma.done [#allocation24], 1024
        $region168: #{encoder_forward.1} parent=107 // pred_fallthru
          _
        // Predicated region
        $region169: #{encoder_forward.1} parent=107 // pred_check
          %p930 = pneg %p405
        $region170: #{encoder_forward.1} parent=107 // pred_check_branch
          %932 = sbr.rel (%p930) target = $region172
        $region171: #{encoder_forward.1} parent=107 // pred_region
          %933 = dma.done [#allocation27], 16
        $region172: #{encoder_forward.1} parent=107 // pred_fallthru
          _
        // Predicated region
        $region173: #{encoder_forward.1} parent=107 // pred_check
          %p934 = pneg %p468
        $region174: #{encoder_forward.1} parent=107 // pred_check_branch
          %936 = sbr.rel (%p934) target = $region176
        $region175: #{encoder_forward.1} parent=107 // pred_region
          %937 = dma.done [#allocation27], 1024
        $region176: #{encoder_forward.1} parent=107 // pred_fallthru
          _
        %s938 = sand.u32 %s66, 1
        %s939 = scalar_lea.sflag [#allocation3], %s938
        %s940 = sand.u32 %s66, 1
        %s941 = smul.addr %s940, 40
        %s942 = scalar_lea.vmem [#allocation2], %s941
        %p943 = pneg %p79
        %p944 = pneg %p76
        %s945 = sand.u32 %s54, 1
        %s946 = scalar_lea.sflag [#allocation6], %s945
        %s947 = sand.u32 %s98, 1
        %s948 = smul.addr %s947, 72
        %s949 = scalar_lea.vmem [#allocation5], %s948
        %p950 = pneg %p111
        %p951 = pneg %p108
        %p952 = pneg %p132
        %p953 = pneg %p129
        %p954 = pneg %p153
        %p955 = pneg %p150
        %p956 = pneg %p174
        %p957 = pneg %p171
        %p958 = pneg %p195
        %p959 = pneg %p192
        %p960 = pneg %p216
        %p961 = pneg %p213
        %p962 = pneg %p237
        %p963 = pneg %p234
        %p964 = pneg %p258
        %p965 = pneg %p255
        %p966 = pneg %p279
        %p967 = pneg %p276
        %p968 = pneg %p300
        %p969 = pneg %p297
        %p970 = pneg %p321
        %p971 = pneg %p318
        %p972 = pneg %p342
        %p973 = pneg %p339
        %p974 = pneg %p363
        %p975 = pneg %p360
        %p976 = pneg %p384
        %p977 = pneg %p381
        %p978 = pneg %p405
        %p979 = pneg %p402
        %p980 = pneg %p426
        %p981 = pneg %p423
        %p982 = pneg %p447
        %p983 = pneg %p444
        %p984 = pneg %p468
        %p985 = pneg %p465
        %p986 = pneg %p489
        %p987 = pneg %p486
        %p988 = pneg %p510
        %p989 = pneg %p507
        %p990 = pneg %p531
        %p991 = pneg %p528
        %p992 = pneg %p561
        %p993 = pneg %p558
        %s994 = sand.u32 %s548, 1
        %s995 = scalar_lea.sflag [#allocation4], %s994
        %s996 = sand.u32 %s548, 1
        %s997 = smul.addr %s996, 40
        %s998 = scalar_lea.vmem [#allocation29], %s997
        %p999 = pneg %p593
        %p1000 = pneg %p590
        %s1001 = sand.u32 %s580, 1
        %s1002 = scalar_lea.sflag [#allocation31], %s1001
        %s1003 = sand.u32 %s580, 1
        %s1004 = smul.addr %s1003, 72
        %s1005 = scalar_lea.vmem [#allocation30], %s1004
        %p1006 = scmp.lt.s32.totalorder %s54, 0
        %s1007 = scalar_select %p1006, %s54, 0
        %s1008 = smul.u32 5, %s1007
        %s1009 = ssub.s32 %s54, 1
        %p1010 = scmp.gt.s32.totalorder %s1009, 0
        %s1011 = scalar_select %p1010, %s1009, 0
        %s1012 = smul.u32 9, %s1011
        %p1013 = scmp.lt.s32.totalorder %s54, 0
        %s1014 = scalar_select %p1013, %s54, 0
        %s1015 = smul.u32 5, %s1014
        %s1016 = ssub.s32 %s54, 1
        %p1017 = scmp.gt.s32.totalorder %s1016, 0
        %s1018 = scalar_select %p1017, %s1016, 0
        %s1019 = smul.u32 9, %s1018
        %p1021 = scmp.lt.s32.totalorder %s54, 1
        // Predicated region
        $region177: #{encoder_forward.1} parent=107 // pred_check
          %p1022 = pneg %p1021
        $region178: #{encoder_forward.1} parent=107 // pred_check_branch
          %1024 = sbr.rel (%p1022) target = $region180
        $region179: #{encoder_forward.1} parent=107 // pred_region
          %v1025 = vld [vmem:[%s864] sm:$0xff]
          %v1026 = vld [vmem:[%s864 + $0x8] sm:$0xff]
          %v1027 = vld [vmem:[%s864 + $0x10] sm:$0xff]
          %v1028 = vld [vmem:[%s864 + $0x18] sm:$0xff]
          %v1029 = vld [vmem:[%s864 + $0x20] sm:$0xff]
          %v1030 = vpack.c.bf16 %v1026, %v1025
          %v1031 = vpack.c.bf16 %v1028, %v1027
          %v1032 = vpack.c.bf16 %v1029, %v1029
          %v1033 = vld [vmem:[#allocation7] sm:$0xf]
          %v1034 = vld [vmem:[#allocation7 + $0x4] sm:$0xf]
          %v1035 = vld [vmem:[#allocation7 + $0x8] sm:$0xf]
          %v1036 = vld [vmem:[#allocation7 + $0xc] sm:$0xf]
          %v1037 = vld [vmem:[#allocation7 + $0x10] sm:$0xf]
          %v1038 = vld [vmem:[#allocation7 + $0x14] sm:$0xf]
          %v1039 = vld [vmem:[#allocation7 + $0x18] sm:$0xf]
          %v1040 = vld [vmem:[#allocation7 + $0x1c] sm:$0xf]
          %v1041 = vld [vmem:[#allocation7 + $0x20] sm:$0xf]
          %v1042 = vld [vmem:[#allocation7 + $0x24] sm:$0xf]
          %v1043 = vld [vmem:[#allocation7 + $0x28] sm:$0xf]
          %v1044 = vld [vmem:[#allocation7 + $0x2c] sm:$0xf]
          %v1045 = vld [vmem:[#allocation7 + $0x30] sm:$0xf]
          %v1046 = vld [vmem:[#allocation7 + $0x34] sm:$0xf]
          %v1047 = vld [vmem:[#allocation7 + $0x38] sm:$0xf]
          %v1048 = vld [vmem:[#allocation7 + $0x3c] sm:$0xf]
          %v1049 = vld [vmem:[#allocation8] sm:$0x1]
          %v1050 = vunpack.c.l.bf16 %v1049
          %v1051 = vlaneseq
          %v1052 = vshrl.u32 %v1051, 7
          %v1053 = vsub.s32 0, %v1052
          %v1054 = vrot.slane %v1050, %v1053
          %v1071 = vunpack.c.l.b16 %v1033
          %v1072 = vunpack.c.l.b16 %v1034
          %v1073 = vunpack.c.l.b16 %v1035
          %v1074 = vunpack.c.l.b16 %v1036
          %v1075 = vunpack.c.l.b16 %v1037
          %v1076 = vunpack.c.l.b16 %v1038
          %v1077 = vunpack.c.l.b16 %v1039
          %v1078 = vunpack.c.l.b16 %v1040
          %v1079 = vunpack.c.l.b16 %v1041
          %v1080 = vunpack.c.l.b16 %v1042
          %v1081 = vunpack.c.l.b16 %v1043
          %v1082 = vunpack.c.l.b16 %v1044
          %v1083 = vunpack.c.l.b16 %v1045
          %v1084 = vunpack.c.l.b16 %v1046
          %v1085 = vunpack.c.l.b16 %v1047
          %v1086 = vunpack.c.l.b16 %v1048
          %v1087 = vpack.c.b16 %v1072, %v1071
          %v1088 = vpack.c.b16 %v1074, %v1073
          %v1089 = vpack.c.b16 %v1076, %v1075
          %v1090 = vpack.c.b16 %v1078, %v1077
          %v1091 = vpack.c.b16 %v1080, %v1079
          %v1092 = vpack.c.b16 %v1082, %v1081
          %v1093 = vpack.c.b16 %v1084, %v1083
          %v1094 = vpack.c.b16 %v1086, %v1085
          %1103 = vmatprep.subr.bf16.mxu0 0
          %1104 = vmatpush1.bf16.msra.mxu0 %v1087
          %1105 = vmatprep.subr.bf16.mxu0 0
          %1106 = vmatpush1.bf16.msra.mxu0 %v1088
          %1107 = vmatprep.subr.bf16.mxu0 0
          %1108 = vmatpush1.bf16.msra.mxu0 %v1089
          %1109 = vmatprep.subr.bf16.mxu0 0
          %1110 = vmatpush1.bf16.msra.mxu0 %v1090
          %1111 = vmatprep.subr.bf16.mxu0 0
          %1112 = vmatpush1.bf16.msra.mxu0 %v1091
          %1113 = vmatprep.subr.bf16.mxu0 0
          %1114 = vmatpush1.bf16.msra.mxu0 %v1092
          %1115 = vmatprep.subr.bf16.mxu0 0
          %1116 = vmatpush1.bf16.msra.mxu0 %v1093
          %1117 = vmatprep.subr.bf16.mxu0 0
          %1118 = vmatpush1.bf16.msra.mxu0 %v1094
          %1119 = vmatprep.subr.bf16.mxu0 0
          %1120 = vmatpush1.bf16.msra.mxu0 0
          %1121 = vmatprep.subr.bf16.mxu0 0
          %1122 = vmatpush1.bf16.msra.mxu0 0
          %1123 = vmatprep.subr.bf16.mxu0 0
          %1124 = vmatpush1.bf16.msra.mxu0 0
          %1125 = vmatprep.subr.bf16.mxu0 0
          %1126 = vmatpush1.bf16.msra.mxu0 0
          %1127 = vmatprep.subr.bf16.mxu0 0
          %1128 = vmatpush1.bf16.msra.mxu0 0
          %1129 = vmatprep.subr.bf16.mxu0 0
          %1130 = vmatpush1.bf16.msra.mxu0 0
          %1131 = vmatprep.subr.bf16.mxu0 0
          %1132 = vmatpush1.bf16.msra.mxu0 0
          %1133 = vmatprep.subr.bf16.mxu0 0
          %1134 = vmatpush1.bf16.msra.mxu0 0
          %1135 = vmatprep.mubr.bf16.mxu0 0
          %1136 = vmatmul.mubr.bf16.gmra.mrb[0].mxu0 %v1030
          %v1137 = vpop.f32.mrb[0].mxu0
          %v1138 = vadd.f32 %v1054, %v1137
          %v1139 = vpop.f32.mrb[0].mxu0
          %v1140 = vpop.f32.mrb[0].mxu0
          %v1141 = vadd.f32 %v1054, %v1140
          %v1142 = vpop.f32.mrb[0].mxu0
          %1143 = vmatprep.mubr.bf16.mxu0 0
          %1144 = vmatmul.mubr.bf16.gmra.mrb[0].mxu0 %v1031
          %v1145 = vpop.f32.mrb[0].mxu0
          %v1146 = vadd.f32 %v1054, %v1145
          %v1147 = vpop.f32.mrb[0].mxu0
          %v1148 = vpop.f32.mrb[0].mxu0
          %v1149 = vadd.f32 %v1054, %v1148
          %v1150 = vpop.f32.mrb[0].mxu0
          %1151 = vmatprep.mubr.bf16.mxu0 0
          %1152 = vmatmul.mubr.bf16.gmra.mrb[0].mxu0 %v1032
          %v1153 = vpop.f32.mrb[0].mxu0
          %v1154 = vadd.f32 %v1054, %v1153
          %v1155 = vpop.f32.mrb[0].mxu0
          %v1156 = vpop.f32.mrb[0].mxu0
          %v1157 = vpop.f32.mrb[0].mxu0
          %1158 = vdwg.mxu0
          %v1159 = vxor.u32 %v1138, 2147483648
          %v1160 = vxor.u32 %v1141, 2147483648
          %v1161 = vxor.u32 %v1146, 2147483648
          %v1162 = vxor.u32 %v1149, 2147483648
          %v1163 = vxor.u32 %v1154, 2147483648
          %v1164 = vmul.f32 %v1159, 1.442695
          %v1165 = vpow.pop %v1164
          %v1166 = vmul.f32 %v1160, 1.442695
          %v1167 = vpow.pop %v1166
          %v1168 = vmul.f32 %v1161, 1.442695
          %v1169 = vpow.pop %v1168
          %v1170 = vmul.f32 %v1162, 1.442695
          %v1171 = vpow.pop %v1170
          %v1172 = vmul.f32 %v1163, 1.442695
          %v1173 = vpow.pop %v1172
          %v1174 = vadd.f32 %v1165, 1.0
          %v1175 = vadd.f32 %v1167, 1.0
          %v1176 = vadd.f32 %v1169, 1.0
          %v1177 = vadd.f32 %v1171, 1.0
          %v1178 = vadd.f32 %v1173, 1.0
          %v1179 = vrcp.pop %v1174
          %v1180 = vmul.f32 1.0, %v1179
          %v1181 = vrcp.pop %v1175
          %v1182 = vmul.f32 1.0, %v1181
          %v1183 = vrcp.pop %v1176
          %v1184 = vmul.f32 1.0, %v1183
          %v1185 = vrcp.pop %v1177
          %v1186 = vmul.f32 1.0, %v1185
          %v1187 = vrcp.pop %v1178
          %v1188 = vmul.f32 1.0, %v1187
          %v1189 = vmul.f32 %v1138, %v1180
          %v1190 = vmul.f32 %v1141, %v1182
          %v1191 = vmul.f32 %v1146, %v1184
          %v1192 = vmul.f32 %v1149, %v1186
          %v1193 = vmul.f32 %v1154, %v1188
          %v1194 = vpack.c.bf16 %v1190, %v1189
          %v1195 = vpack.c.bf16 %v1192, %v1191
          %v1196 = vpack.c.bf16 %v1193, %v1193
          %v1197 = vld [vmem:[#allocation10] sm:$0xf]
          %v1198 = vld [vmem:[#allocation10 + $0x4] sm:$0xf]
          %v1199 = vld [vmem:[#allocation10 + $0x8] sm:$0xf]
          %v1200 = vld [vmem:[#allocation10 + $0xc] sm:$0xf]
          %v1201 = vld [vmem:[#allocation10 + $0x10] sm:$0xf]
          %v1202 = vld [vmem:[#allocation10 + $0x14] sm:$0xf]
          %v1203 = vld [vmem:[#allocation10 + $0x18] sm:$0xf]
          %v1204 = vld [vmem:[#allocation10 + $0x1c] sm:$0xf]
          %v1205 = vld [vmem:[#allocation10 + $0x20] sm:$0xf]
          %v1206 = vld [vmem:[#allocation10 + $0x24] sm:$0xf]
          %v1207 = vld [vmem:[#allocation10 + $0x28] sm:$0xf]
          %v1208 = vld [vmem:[#allocation10 + $0x2c] sm:$0xf]
          %v1209 = vld [vmem:[#allocation10 + $0x30] sm:$0xf]
          %v1210 = vld [vmem:[#allocation10 + $0x34] sm:$0xf]
          %v1211 = vld [vmem:[#allocation10 + $0x38] sm:$0xf]
          %v1212 = vld [vmem:[#allocation10 + $0x3c] sm:$0xf]
          %v1213 = vld [vmem:[#allocation11] sm:$0x1]
          %v1214 = vunpack.c.l.bf16 %v1213
          %v1215 = vlaneseq
          %v1216 = vshrl.u32 %v1215, 7
          %v1217 = vsub.s32 0, %v1216
          %v1218 = vrot.slane %v1214, %v1217
          %v1235 = vunpack.c.l.b16 %v1197
          %v1236 = vunpack.c.l.b16 %v1198
          %v1237 = vunpack.c.l.b16 %v1199
          %v1238 = vunpack.c.l.b16 %v1200
          %v1239 = vunpack.c.l.b16 %v1201
          %v1240 = vunpack.c.l.b16 %v1202
          %v1241 = vunpack.c.l.b16 %v1203
          %v1242 = vunpack.c.l.b16 %v1204
          %v1243 = vunpack.c.l.b16 %v1205
          %v1244 = vunpack.c.l.b16 %v1206
          %v1245 = vunpack.c.l.b16 %v1207
          %v1246 = vunpack.c.l.b16 %v1208
          %v1247 = vunpack.c.l.b16 %v1209
          %v1248 = vunpack.c.l.b16 %v1210
          %v1249 = vunpack.c.l.b16 %v1211
          %v1250 = vunpack.c.l.b16 %v1212
          %v1251 = vpack.c.b16 %v1236, %v1235
          %v1252 = vpack.c.b16 %v1238, %v1237
          %v1253 = vpack.c.b16 %v1240, %v1239
          %v1254 = vpack.c.b16 %v1242, %v1241
          %v1255 = vpack.c.b16 %v1244, %v1243
          %v1256 = vpack.c.b16 %v1246, %v1245
          %v1257 = vpack.c.b16 %v1248, %v1247
          %v1258 = vpack.c.b16 %v1250, %v1249
          %1267 = vmatprep.subr.bf16.mxu0 0
          %1268 = vmatpush1.bf16.msra.mxu0 %v1251
          %1269 = vmatprep.subr.bf16.mxu0 0
          %1270 = vmatpush1.bf16.msra.mxu0 %v1252
          %1271 = vmatprep.subr.bf16.mxu0 0
          %1272 = vmatpush1.bf16.msra.mxu0 %v1253
          %1273 = vmatprep.subr.bf16.mxu0 0
          %1274 = vmatpush1.bf16.msra.mxu0 %v1254
          %1275 = vmatprep.subr.bf16.mxu0 0
          %1276 = vmatpush1.bf16.msra.mxu0 %v1255
          %1277 = vmatprep.subr.bf16.mxu0 0
          %1278 = vmatpush1.bf16.msra.mxu0 %v1256
          %1279 = vmatprep.subr.bf16.mxu0 0
          %1280 = vmatpush1.bf16.msra.mxu0 %v1257
          %1281 = vmatprep.subr.bf16.mxu0 0
          %1282 = vmatpush1.bf16.msra.mxu0 %v1258
          %1283 = vmatprep.subr.bf16.mxu0 0
          %1284 = vmatpush1.bf16.msra.mxu0 0
          %1285 = vmatprep.subr.bf16.mxu0 0
          %1286 = vmatpush1.bf16.msra.mxu0 0
          %1287 = vmatprep.subr.bf16.mxu0 0
          %1288 = vmatpush1.bf16.msra.mxu0 0
          %1289 = vmatprep.subr.bf16.mxu0 0
          %1290 = vmatpush1.bf16.msra.mxu0 0
          %1291 = vmatprep.subr.bf16.mxu0 0
          %1292 = vmatpush1.bf16.msra.mxu0 0
          %1293 = vmatprep.subr.bf16.mxu0 0
          %1294 = vmatpush1.bf16.msra.mxu0 0
          %1295 = vmatprep.subr.bf16.mxu0 0
          %1296 = vmatpush1.bf16.msra.mxu0 0
          %1297 = vmatprep.subr.bf16.mxu0 0
          %1298 = vmatpush1.bf16.msra.mxu0 0
          %1299 = vmatprep.mubr.bf16.mxu0 0
          %1300 = vmatmul.mubr.bf16.gmra.mrb[0].mxu0 %v1194
          %v1301 = vpop.f32.mrb[0].mxu0
          %v1302 = vadd.f32 %v1218, %v1301
          %v1303 = vpop.f32.mrb[0].mxu0
          %v1304 = vpop.f32.mrb[0].mxu0
          %v1305 = vadd.f32 %v1218, %v1304
          %v1306 = vpop.f32.mrb[0].mxu0
          %1307 = vmatprep.mubr.bf16.mxu0 0
          %1308 = vmatmul.mubr.bf16.gmra.mrb[0].mxu0 %v1195
          %v1309 = vpop.f32.mrb[0].mxu0
          %v1310 = vadd.f32 %v1218, %v1309
          %v1311 = vpop.f32.mrb[0].mxu0
          %v1312 = vpop.f32.mrb[0].mxu0
          %v1313 = vadd.f32 %v1218, %v1312
          %v1314 = vpop.f32.mrb[0].mxu0
          %1315 = vmatprep.mubr.bf16.mxu0 0
          %1316 = vmatmul.mubr.bf16.gmra.mrb[0].mxu0 %v1196
          %v1317 = vpop.f32.mrb[0].mxu0
          %v1318 = vadd.f32 %v1218, %v1317
          %v1319 = vpop.f32.mrb[0].mxu0
          %v1320 = vpop.f32.mrb[0].mxu0
          %v1321 = vpop.f32.mrb[0].mxu0
          %1322 = vdwg.mxu0
          %v1323 = vxor.u32 %v1302, 2147483648
          %v1324 = vxor.u32 %v1305, 2147483648
          %v1325 = vxor.u32 %v1310, 2147483648
          %v1326 = vxor.u32 %v1313, 2147483648
          %v1327 = vxor.u32 %v1318, 2147483648
          %v1328 = vmul.f32 %v1323, 1.442695
          %v1329 = vpow.pop %v1328
          %v1330 = vmul.f32 %v1324, 1.442695
          %v1331 = vpow.pop %v1330
          %v1332 = vmul.f32 %v1325, 1.442695
          %v1333 = vpow.pop %v1332
          %v1334 = vmul.f32 %v1326, 1.442695
          %v1335 = vpow.pop %v1334
          %v1336 = vmul.f32 %v1327, 1.442695
          %v1337 = vpow.pop %v1336
          %v1338 = vadd.f32 %v1329, 1.0
          %v1339 = vadd.f32 %v1331, 1.0
          %v1340 = vadd.f32 %v1333, 1.0
          %v1341 = vadd.f32 %v1335, 1.0
          %v1342 = vadd.f32 %v1337, 1.0
          %v1343 = vrcp.pop %v1338
          %v1344 = vmul.f32 1.0, %v1343
          %v1345 = vrcp.pop %v1339
          %v1346 = vmul.f32 1.0, %v1345
          %v1347 = vrcp.pop %v1340
          %v1348 = vmul.f32 1.0, %v1347
          %v1349 = vrcp.pop %v1341
          %v1350 = vmul.f32 1.0, %v1349
          %v1351 = vrcp.pop %v1342
          %v1352 = vmul.f32 1.0, %v1351
          %v1353 = vmul.f32 %v1302, %v1344
          %v1354 = vmul.f32 %v1305, %v1346
          %v1355 = vmul.f32 %v1310, %v1348
          %v1356 = vmul.f32 %v1313, %v1350
          %v1357 = vmul.f32 %v1318, %v1352
          %v1358 = vpack.c.bf16 %v1354, %v1353
          %v1359 = vpack.c.bf16 %v1356, %v1355
          %v1360 = vpack.c.bf16 %v1357, %v1357
          %v1361 = vld [vmem:[#allocation13] sm:$0xf]
          %v1362 = vld [vmem:[#allocation13 + $0x4] sm:$0xf]
          %v1363 = vld [vmem:[#allocation13 + $0x8] sm:$0xf]
          %v1364 = vld [vmem:[#allocation13 + $0xc] sm:$0xf]
          %v1365 = vld [vmem:[#allocation13 + $0x10] sm:$0xf]
          %v1366 = vld [vmem:[#allocation13 + $0x14] sm:$0xf]
          %v1367 = vld [vmem:[#allocation13 + $0x18] sm:$0xf]
          %v1368 = vld [vmem:[#allocation13 + $0x1c] sm:$0xf]
          %v1369 = vld [vmem:[#allocation13 + $0x20] sm:$0xf]
          %v1370 = vld [vmem:[#allocation13 + $0x24] sm:$0xf]
          %v1371 = vld [vmem:[#allocation13 + $0x28] sm:$0xf]
          %v1372 = vld [vmem:[#allocation13 + $0x2c] sm:$0xf]
          %v1373 = vld [vmem:[#allocation13 + $0x30] sm:$0xf]
          %v1374 = vld [vmem:[#allocation13 + $0x34] sm:$0xf]
          %v1375 = vld [vmem:[#allocation13 + $0x38] sm:$0xf]
          %v1376 = vld [vmem:[#allocation13 + $0x3c] sm:$0xf]
          %v1377 = vld [vmem:[#allocation14] sm:$0x1]
          %v1378 = vunpack.c.l.bf16 %v1377
          %v1379 = vlaneseq
          %v1380 = vshrl.u32 %v1379, 7
          %v1381 = vsub.s32 0, %v1380
          %v1382 = vrot.slane %v1378, %v1381
          %v1399 = vunpack.c.l.b16 %v1361
          %v1400 = vunpack.c.l.b16 %v1362
          %v1401 = vunpack.c.l.b16 %v1363
          %v1402 = vunpack.c.l.b16 %v1364
          %v1403 = vunpack.c.l.b16 %v1365
          %v1404 = vunpack.c.l.b16 %v1366
          %v1405 = vunpack.c.l.b16 %v1367
          %v1406 = vunpack.c.l.b16 %v1368
          %v1407 = vunpack.c.l.b16 %v1369
          %v1408 = vunpack.c.l.b16 %v1370
          %v1409 = vunpack.c.l.b16 %v1371
          %v1410 = vunpack.c.l.b16 %v1372
          %v1411 = vunpack.c.l.b16 %v1373
          %v1412 = vunpack.c.l.b16 %v1374
          %v1413 = vunpack.c.l.b16 %v1375
          %v1414 = vunpack.c.l.b16 %v1376
          %v1415 = vpack.c.b16 %v1400, %v1399
          %v1416 = vpack.c.b16 %v1402, %v1401
          %v1417 = vpack.c.b16 %v1404, %v1403
          %v1418 = vpack.c.b16 %v1406, %v1405
          %v1419 = vpack.c.b16 %v1408, %v1407
          %v1420 = vpack.c.b16 %v1410, %v1409
          %v1421 = vpack.c.b16 %v1412, %v1411
          %v1422 = vpack.c.b16 %v1414, %v1413
          %1431 = vmatprep.subr.bf16.mxu0 0
          %1432 = vmatpush1.bf16.msra.mxu0 %v1415
          %1433 = vmatprep.subr.bf16.mxu0 0
          %1434 = vmatpush1.bf16.msra.mxu0 %v1416
          %1435 = vmatprep.subr.bf16.mxu0 0
          %1436 = vmatpush1.bf16.msra.mxu0 %v1417
          %1437 = vmatprep.subr.bf16.mxu0 0
          %1438 = vmatpush1.bf16.msra.mxu0 %v1418
          %1439 = vmatprep.subr.bf16.mxu0 0
          %1440 = vmatpush1.bf16.msra.mxu0 %v1419
          %1441 = vmatprep.subr.bf16.mxu0 0
          %1442 = vmatpush1.bf16.msra.mxu0 %v1420
          %1443 = vmatprep.subr.bf16.mxu0 0
          %1444 = vmatpush1.bf16.msra.mxu0 %v1421
          %1445 = vmatprep.subr.bf16.mxu0 0
          %1446 = vmatpush1.bf16.msra.mxu0 %v1422
          %1447 = vmatprep.subr.bf16.mxu0 0
          %1448 = vmatpush1.bf16.msra.mxu0 0
          %1449 = vmatprep.subr.bf16.mxu0 0
          %1450 = vmatpush1.bf16.msra.mxu0 0
          %1451 = vmatprep.subr.bf16.mxu0 0
          %1452 = vmatpush1.bf16.msra.mxu0 0
          %1453 = vmatprep.subr.bf16.mxu0 0
          %1454 = vmatpush1.bf16.msra.mxu0 0
          %1455 = vmatprep.subr.bf16.mxu0 0
          %1456 = vmatpush1.bf16.msra.mxu0 0
          %1457 = vmatprep.subr.bf16.mxu0 0
          %1458 = vmatpush1.bf16.msra.mxu0 0
          %1459 = vmatprep.subr.bf16.mxu0 0
          %1460 = vmatpush1.bf16.msra.mxu0 0
          %1461 = vmatprep.subr.bf16.mxu0 0
          %1462 = vmatpush1.bf16.msra.mxu0 0
          %1463 = vmatprep.mubr.bf16.mxu0 0
          %1464 = vmatmul.mubr.bf16.gmra.mrb[0].mxu0 %v1358
          %v1465 = vpop.f32.mrb[0].mxu0
          %v1466 = vadd.f32 %v1382, %v1465
          %v1467 = vpop.f32.mrb[0].mxu0
          %v1468 = vpop.f32.mrb[0].mxu0
          %v1469 = vadd.f32 %v1382, %v1468
          %v1470 = vpop.f32.mrb[0].mxu0
          %1471 = vmatprep.mubr.bf16.mxu0 0
          %1472 = vmatmul.mubr.bf16.gmra.mrb[0].mxu0 %v1359
          %v1473 = vpop.f32.mrb[0].mxu0
          %v1474 = vadd.f32 %v1382, %v1473
          %v1475 = vpop.f32.mrb[0].mxu0
          %v1476 = vpop.f32.mrb[0].mxu0
          %v1477 = vadd.f32 %v1382, %v1476
          %v1478 = vpop.f32.mrb[0].mxu0
          %1479 = vmatprep.mubr.bf16.mxu0 0
          %1480 = vmatmul.mubr.bf16.gmra.mrb[0].mxu0 %v1360
          %v1481 = vpop.f32.mrb[0].mxu0
          %v1482 = vadd.f32 %v1382, %v1481
          %v1483 = vpop.f32.mrb[0].mxu0
          %v1484 = vpop.f32.mrb[0].mxu0
          %v1485 = vpop.f32.mrb[0].mxu0
          %1486 = vdwg.mxu0
          %v1487 = vxor.u32 %v1466, 2147483648
          %v1488 = vxor.u32 %v1469, 2147483648
          %v1489 = vxor.u32 %v1474, 2147483648
          %v1490 = vxor.u32 %v1477, 2147483648
          %v1491 = vxor.u32 %v1482, 2147483648
          %v1492 = vmul.f32 %v1487, 1.442695
          %v1493 = vpow.pop %v1492
          %v1494 = vmul.f32 %v1488, 1.442695
          %v1495 = vpow.pop %v1494
          %v1496 = vmul.f32 %v1489, 1.442695
          %v1497 = vpow.pop %v1496
          %v1498 = vmul.f32 %v1490, 1.442695
          %v1499 = vpow.pop %v1498
          %v1500 = vmul.f32 %v1491, 1.442695
          %v1501 = vpow.pop %v1500
          %v1502 = vadd.f32 %v1493, 1.0
          %v1503 = vadd.f32 %v1495, 1.0
          %v1504 = vadd.f32 %v1497, 1.0
          %v1505 = vadd.f32 %v1499, 1.0
          %v1506 = vadd.f32 %v1501, 1.0
          %v1507 = vrcp.pop %v1502
          %v1508 = vmul.f32 1.0, %v1507
          %v1509 = vrcp.pop %v1503
          %v1510 = vmul.f32 1.0, %v1509
          %v1511 = vrcp.pop %v1504
          %v1512 = vmul.f32 1.0, %v1511
          %v1513 = vrcp.pop %v1505
          %v1514 = vmul.f32 1.0, %v1513
          %v1515 = vrcp.pop %v1506
          %v1516 = vmul.f32 1.0, %v1515
          %v1517 = vmul.f32 %v1466, %v1508
          %v1518 = vmul.f32 %v1469, %v1510
          %v1519 = vmul.f32 %v1474, %v1512
          %v1520 = vmul.f32 %v1477, %v1514
          %v1521 = vmul.f32 %v1482, %v1516
          %v1522 = vpack.c.bf16 %v1518, %v1517
          %v1523 = vpack.c.bf16 %v1520, %v1519
          %v1524 = vpack.c.bf16 %v1521, %v1521
          %v1525 = vld [vmem:[#allocation16] sm:$0xf]
          %v1526 = vld [vmem:[#allocation16 + $0x4] sm:$0xf]
          %v1527 = vld [vmem:[#allocation16 + $0x8] sm:$0xf]
          %v1528 = vld [vmem:[#allocation16 + $0xc] sm:$0xf]
          %v1529 = vld [vmem:[#allocation16 + $0x10] sm:$0xf]
          %v1530 = vld [vmem:[#allocation16 + $0x14] sm:$0xf]
          %v1531 = vld [vmem:[#allocation16 + $0x18] sm:$0xf]
          %v1532 = vld [vmem:[#allocation16 + $0x1c] sm:$0xf]
          %v1533 = vld [vmem:[#allocation16 + $0x20] sm:$0xf]
          %v1534 = vld [vmem:[#allocation16 + $0x24] sm:$0xf]
          %v1535 = vld [vmem:[#allocation16 + $0x28] sm:$0xf]
          %v1536 = vld [vmem:[#allocation16 + $0x2c] sm:$0xf]
          %v1537 = vld [vmem:[#allocation16 + $0x30] sm:$0xf]
          %v1538 = vld [vmem:[#allocation16 + $0x34] sm:$0xf]
          %v1539 = vld [vmem:[#allocation16 + $0x38] sm:$0xf]
          %v1540 = vld [vmem:[#allocation16 + $0x3c] sm:$0xf]
          %v1541 = vld [vmem:[#allocation17] sm:$0x1]
          %v1542 = vunpack.c.l.bf16 %v1541
          %v1543 = vlaneseq
          %v1544 = vshrl.u32 %v1543, 7
          %v1545 = vsub.s32 0, %v1544
          %v1546 = vrot.slane %v1542, %v1545
          %v1563 = vunpack.c.l.b16 %v1525
          %v1564 = vunpack.c.l.b16 %v1526
          %v1565 = vunpack.c.l.b16 %v1527
          %v1566 = vunpack.c.l.b16 %v1528
          %v1567 = vunpack.c.l.b16 %v1529
          %v1568 = vunpack.c.l.b16 %v1530
          %v1569 = vunpack.c.l.b16 %v1531
          %v1570 = vunpack.c.l.b16 %v1532
          %v1571 = vunpack.c.l.b16 %v1533
          %v1572 = vunpack.c.l.b16 %v1534
          %v1573 = vunpack.c.l.b16 %v1535
          %v1574 = vunpack.c.l.b16 %v1536
          %v1575 = vunpack.c.l.b16 %v1537
          %v1576 = vunpack.c.l.b16 %v1538
          %v1577 = vunpack.c.l.b16 %v1539
          %v1578 = vunpack.c.l.b16 %v1540
          %v1579 = vpack.c.b16 %v1564, %v1563
          %v1580 = vpack.c.b16 %v1566, %v1565
          %v1581 = vpack.c.b16 %v1568, %v1567
          %v1582 = vpack.c.b16 %v1570, %v1569
          %v1583 = vpack.c.b16 %v1572, %v1571
          %v1584 = vpack.c.b16 %v1574, %v1573
          %v1585 = vpack.c.b16 %v1576, %v1575
          %v1586 = vpack.c.b16 %v1578, %v1577
          %1595 = vmatprep.subr.bf16.mxu0 0
          %1596 = vmatpush1.bf16.msra.mxu0 %v1579
          %1597 = vmatprep.subr.bf16.mxu0 0
          %1598 = vmatpush1.bf16.msra.mxu0 %v1580
          %1599 = vmatprep.subr.bf16.mxu0 0
          %1600 = vmatpush1.bf16.msra.mxu0 %v1581
          %1601 = vmatprep.subr.bf16.mxu0 0
          %1602 = vmatpush1.bf16.msra.mxu0 %v1582
          %1603 = vmatprep.subr.bf16.mxu0 0
          %1604 = vmatpush1.bf16.msra.mxu0 %v1583
          %1605 = vmatprep.subr.bf16.mxu0 0
          %1606 = vmatpush1.bf16.msra.mxu0 %v1584
          %1607 = vmatprep.subr.bf16.mxu0 0
          %1608 = vmatpush1.bf16.msra.mxu0 %v1585
          %1609 = vmatprep.subr.bf16.mxu0 0
          %1610 = vmatpush1.bf16.msra.mxu0 %v1586
          %1611 = vmatprep.subr.bf16.mxu0 0
          %1612 = vmatpush1.bf16.msra.mxu0 0
          %1613 = vmatprep.subr.bf16.mxu0 0
          %1614 = vmatpush1.bf16.msra.mxu0 0
          %1615 = vmatprep.subr.bf16.mxu0 0
          %1616 = vmatpush1.bf16.msra.mxu0 0
          %1617 = vmatprep.subr.bf16.mxu0 0
          %1618 = vmatpush1.bf16.msra.mxu0 0
          %1619 = vmatprep.subr.bf16.mxu0 0
          %1620 = vmatpush1.bf16.msra.mxu0 0
          %1621 = vmatprep.subr.bf16.mxu0 0
          %1622 = vmatpush1.bf16.msra.mxu0 0
          %1623 = vmatprep.subr.bf16.mxu0 0
          %1624 = vmatpush1.bf16.msra.mxu0 0
          %1625 = vmatprep.subr.bf16.mxu0 0
          %1626 = vmatpush1.bf16.msra.mxu0 0
          %1627 = vmatprep.mubr.bf16.mxu0 0
          %1628 = vmatmul.mubr.bf16.gmra.mrb[0].mxu0 %v1522
          %v1629 = vpop.f32.mrb[0].mxu0
          %v1630 = vadd.f32 %v1546, %v1629
          %v1631 = vpop.f32.mrb[0].mxu0
          %v1632 = vpop.f32.mrb[0].mxu0
          %v1633 = vadd.f32 %v1546, %v1632
          %v1634 = vpop.f32.mrb[0].mxu0
          %1635 = vmatprep.mubr.bf16.mxu0 0
          %1636 = vmatmul.mubr.bf16.gmra.mrb[0].mxu0 %v1523
          %v1637 = vpop.f32.mrb[0].mxu0
          %v1638 = vadd.f32 %v1546, %v1637
          %v1639 = vpop.f32.mrb[0].mxu0
          %v1640 = vpop.f32.mrb[0].mxu0
          %v1641 = vadd.f32 %v1546, %v1640
          %v1642 = vpop.f32.mrb[0].mxu0
          %1643 = vmatprep.mubr.bf16.mxu0 0
          %1644 = vmatmul.mubr.bf16.gmra.mrb[0].mxu0 %v1524
          %v1645 = vpop.f32.mrb[0].mxu0
          %v1646 = vadd.f32 %v1546, %v1645
          %v1647 = vpop.f32.mrb[0].mxu0
          %v1648 = vpop.f32.mrb[0].mxu0
          %v1649 = vpop.f32.mrb[0].mxu0
          %1650 = vdwg.mxu0
          %1651 = vadd.xlane.f32.xlu0 %v1630
          %v1652 = vpop.xlane.xlu0 %1651
          %1653 = vadd.xlane.f32.xlu0 %v1633
          %v1654 = vpop.xlane.xlu0 %1653
          %1655 = vadd.xlane.f32.xlu0 %v1638
          %v1656 = vpop.xlane.xlu0 %1655
          %1657 = vadd.xlane.f32.xlu0 %v1641
          %v1658 = vpop.xlane.xlu0 %1657
          %1659 = vadd.xlane.f32.xlu0 %v1646
          %v1660 = vpop.xlane.xlu0 %1659
          %v1661 = vrcp.pop 128.0
          %v1662 = vmul.f32 %v1652, %v1661
          %v1663 = vmul.f32 %v1654, %v1661
          %v1664 = vmul.f32 %v1656, %v1661
          %v1665 = vmul.f32 %v1658, %v1661
          %v1666 = vmul.f32 %v1660, %v1661
          %v1667 = vmul.f32 %v1630, %v1630
          %v1668 = vmul.f32 %v1633, %v1633
          %v1669 = vmul.f32 %v1638, %v1638
          %v1670 = vmul.f32 %v1641, %v1641
          %v1671 = vmul.f32 %v1646, %v1646
          %1672 = vadd.xlane.f32.xlu0 %v1667
          %v1673 = vpop.xlane.xlu0 %1672
          %1674 = vadd.xlane.f32.xlu0 %v1668
          %v1675 = vpop.xlane.xlu0 %1674
          %1676 = vadd.xlane.f32.xlu0 %v1669
          %v1677 = vpop.xlane.xlu0 %1676
          %1678 = vadd.xlane.f32.xlu0 %v1670
          %v1679 = vpop.xlane.xlu0 %1678
          %1680 = vadd.xlane.f32.xlu0 %v1671
          %v1681 = vpop.xlane.xlu0 %1680
          %v1682 = vmul.f32 %v1673, %v1661
          %v1683 = vmul.f32 %v1675, %v1661
          %v1684 = vmul.f32 %v1677, %v1661
          %v1685 = vmul.f32 %v1679, %v1661
          %v1686 = vmul.f32 %v1681, %v1661
          %v1687 = vmul.f32 %v1662, %v1662
          %v1688 = vmul.f32 %v1663, %v1663
          %v1689 = vmul.f32 %v1664, %v1664
          %v1690 = vmul.f32 %v1665, %v1665
          %v1691 = vmul.f32 %v1666, %v1666
          %v1692 = vsub.f32 %v1682, %v1687
          %v1693 = vsub.f32 %v1683, %v1688
          %v1694 = vsub.f32 %v1684, %v1689
          %v1695 = vsub.f32 %v1685, %v1690
          %v1696 = vsub.f32 %v1686, %v1691
          %v1697 = vmax.f32 %v1692, 0.0
          %v1698 = vmax.f32 %v1693, 0.0
          %v1699 = vmax.f32 %v1694, 0.0
          %v1700 = vmax.f32 %v1695, 0.0
          %v1701 = vmax.f32 %v1696, 0.0
          %v1702 = vsub.f32 %v1630, %v1662
          %v1703 = vsub.f32 %v1633, %v1663
          %v1704 = vsub.f32 %v1638, %v1664
          %v1705 = vsub.f32 %v1641, %v1665
          %v1706 = vsub.f32 %v1646, %v1666
          %v1707 = vadd.f32 %v1697, 1e-05
          %v1708 = vadd.f32 %v1698, 1e-05
          %v1709 = vadd.f32 %v1699, 1e-05
          %v1710 = vadd.f32 %v1700, 1e-05
          %v1711 = vadd.f32 %v1701, 1e-05
          %v1712 = vrsqrt.pop %v1707
          %v1713 = vrsqrt.pop %v1708
          %v1714 = vrsqrt.pop %v1709
          %v1715 = vrsqrt.pop %v1710
          %v1716 = vrsqrt.pop %v1711
          %v1717 = vmul.f32 %v1702, %v1712
          %v1718 = vmul.f32 %v1703, %v1713
          %v1719 = vmul.f32 %v1704, %v1714
          %v1720 = vmul.f32 %v1705, %v1715
          %v1721 = vmul.f32 %v1706, %v1716
          %v1722 = vld [vmem:[#allocation19] sm:$0x1]
          %v1723 = vunpack.c.l.bf16 %v1722
          %v1724 = vlaneseq
          %v1725 = vshrl.u32 %v1724, 7
          %v1726 = vsub.s32 0, %v1725
          %v1727 = vrot.slane %v1723, %v1726
          %v1728 = vmul.f32 %v1717, %v1727
          %v1729 = vmul.f32 %v1718, %v1727
          %v1730 = vmul.f32 %v1719, %v1727
          %v1731 = vmul.f32 %v1720, %v1727
          %v1732 = vmul.f32 %v1721, %v1727
          %v1733 = vld [vmem:[#allocation20] sm:$0x1]
          %v1734 = vunpack.c.l.bf16 %v1733
          %v1735 = vlaneseq
          %v1736 = vshrl.u32 %v1735, 7
          %v1737 = vsub.s32 0, %v1736
          %v1738 = vrot.slane %v1734, %v1737
          %v1739 = vadd.f32 %v1728, %v1738
          %v1740 = vadd.f32 %v1729, %v1738
          %v1741 = vadd.f32 %v1730, %v1738
          %v1742 = vadd.f32 %v1731, %v1738
          %v1743 = vadd.f32 %v1732, %v1738
          %1744 = vst [vmem:[%s998] sm:$0xff] %v1739
          %1745 = vst [vmem:[%s998 + $0x8] sm:$0xff] %v1740
          %1746 = vst [vmem:[%s998 + $0x10] sm:$0xff] %v1741
          %1747 = vst [vmem:[%s998 + $0x18] sm:$0xff] %v1742
          %1748 = vst [vmem:[%s998 + $0x20] sm:$0xff] %v1743
        $region180: #{encoder_forward.1} parent=107 // pred_fallthru
          _
        %p1749 = scmp.ge.s32.totalorder %s54, 1
        // Predicated region
        $region181: #{encoder_forward.1} parent=107 // pred_check
          %p1750 = pneg %p1749
        $region182: #{encoder_forward.1} parent=107 // pred_check_branch
          %1752 = sbr.rel (%p1750) target = $region184
        $region183: #{encoder_forward.1} parent=107 // pred_region
          %v1753 = vld [vmem:[%s873] sm:$0xff]
          %v1754 = vld [vmem:[%s873 + $0x8] sm:$0xff]
          %v1755 = vld [vmem:[%s873 + $0x10] sm:$0xff]
          %v1756 = vld [vmem:[%s873 + $0x18] sm:$0xff]
          %v1757 = vld [vmem:[%s873 + $0x20] sm:$0xff]
          %v1758 = vld [vmem:[%s873 + $0x28] sm:$0xff]
          %v1759 = vld [vmem:[%s873 + $0x30] sm:$0xff]
          %v1760 = vld [vmem:[%s873 + $0x38] sm:$0xff]
          %v1761 = vld [vmem:[%s873 + $0x40] sm:$0xff]
          %v1762 = vpack.c.bf16 %v1754, %v1753
          %v1763 = vpack.c.bf16 %v1756, %v1755
          %v1764 = vpack.c.bf16 %v1758, %v1757
          %v1765 = vpack.c.bf16 %v1760, %v1759
          %v1766 = vpack.c.bf16 %v1761, %v1761
          %v1767 = vld [vmem:[#allocation22] sm:$0xf]
          %v1768 = vld [vmem:[#allocation22 + $0x4] sm:$0xf]
          %v1769 = vld [vmem:[#allocation22 + $0x8] sm:$0xf]
          %v1770 = vld [vmem:[#allocation22 + $0xc] sm:$0xf]
          %v1771 = vld [vmem:[#allocation22 + $0x10] sm:$0xf]
          %v1772 = vld [vmem:[#allocation22 + $0x14] sm:$0xf]
          %v1773 = vld [vmem:[#allocation22 + $0x18] sm:$0xf]
          %v1774 = vld [vmem:[#allocation22 + $0x1c] sm:$0xf]
          %v1775 = vld [vmem:[#allocation22 + $0x20] sm:$0xf]
          %v1776 = vld [vmem:[#allocation22 + $0x24] sm:$0xf]
          %v1777 = vld [vmem:[#allocation22 + $0x28] sm:$0xf]
          %v1778 = vld [vmem:[#allocation22 + $0x2c] sm:$0xf]
          %v1779 = vld [vmem:[#allocation22 + $0x30] sm:$0xf]
          %v1780 = vld [vmem:[#allocation22 + $0x34] sm:$0xf]
          %v1781 = vld [vmem:[#allocation22 + $0x38] sm:$0xf]
          %v1782 = vld [vmem:[#allocation22 + $0x3c] sm:$0xf]
          %v1783 = vld [vmem:[#allocation23] sm:$0x1]
          %v1784 = vunpack.c.l.bf16 %v1783
          %v1785 = vlaneseq
          %v1786 = vshrl.u32 %v1785, 7
          %v1787 = vsub.s32 0, %v1786
          %v1788 = vrot.slane %v1784, %v1787
          %v1805 = vunpack.c.l.b16 %v1767
          %v1806 = vunpack.c.l.b16 %v1768
          %v1807 = vunpack.c.l.b16 %v1769
          %v1808 = vunpack.c.l.b16 %v1770
          %v1809 = vunpack.c.l.b16 %v1771
          %v1810 = vunpack.c.l.b16 %v1772
          %v1811 = vunpack.c.l.b16 %v1773
          %v1812 = vunpack.c.l.b16 %v1774
          %v1813 = vunpack.c.l.b16 %v1775
          %v1814 = vunpack.c.l.b16 %v1776
          %v1815 = vunpack.c.l.b16 %v1777
          %v1816 = vunpack.c.l.b16 %v1778
          %v1817 = vunpack.c.l.b16 %v1779
          %v1818 = vunpack.c.l.b16 %v1780
          %v1819 = vunpack.c.l.b16 %v1781
          %v1820 = vunpack.c.l.b16 %v1782
          %v1821 = vpack.c.b16 %v1806, %v1805
          %v1822 = vpack.c.b16 %v1808, %v1807
          %v1823 = vpack.c.b16 %v1810, %v1809
          %v1824 = vpack.c.b16 %v1812, %v1811
          %v1825 = vpack.c.b16 %v1814, %v1813
          %v1826 = vpack.c.b16 %v1816, %v1815
          %v1827 = vpack.c.b16 %v1818, %v1817
          %v1828 = vpack.c.b16 %v1820, %v1819
          %1837 = vmatprep.subr.bf16.mxu0 0
          %1838 = vmatpush1.bf16.msra.mxu0 %v1821
          %1839 = vmatprep.subr.bf16.mxu0 0
          %1840 = vmatpush1.bf16.msra.mxu0 %v1822
          %1841 = vmatprep.subr.bf16.mxu0 0
          %1842 = vmatpush1.bf16.msra.mxu0 %v1823
          %1843 = vmatprep.subr.bf16.mxu0 0
          %1844 = vmatpush1.bf16.msra.mxu0 %v1824
          %1845 = vmatprep.subr.bf16.mxu0 0
          %1846 = vmatpush1.bf16.msra.mxu0 %v1825
          %1847 = vmatprep.subr.bf16.mxu0 0
          %1848 = vmatpush1.bf16.msra.mxu0 %v1826
          %1849 = vmatprep.subr.bf16.mxu0 0
          %1850 = vmatpush1.bf16.msra.mxu0 %v1827
          %1851 = vmatprep.subr.bf16.mxu0 0
          %1852 = vmatpush1.bf16.msra.mxu0 %v1828
          %1853 = vmatprep.subr.bf16.mxu0 0
          %1854 = vmatpush1.bf16.msra.mxu0 0
          %1855 = vmatprep.subr.bf16.mxu0 0
          %1856 = vmatpush1.bf16.msra.mxu0 0
          %1857 = vmatprep.subr.bf16.mxu0 0
          %1858 = vmatpush1.bf16.msra.mxu0 0
          %1859 = vmatprep.subr.bf16.mxu0 0
          %1860 = vmatpush1.bf16.msra.mxu0 0
          %1861 = vmatprep.subr.bf16.mxu0 0
          %1862 = vmatpush1.bf16.msra.mxu0 0
          %1863 = vmatprep.subr.bf16.mxu0 0
          %1864 = vmatpush1.bf16.msra.mxu0 0
          %1865 = vmatprep.subr.bf16.mxu0 0
          %1866 = vmatpush1.bf16.msra.mxu0 0
          %1867 = vmatprep.subr.bf16.mxu0 0
          %1868 = vmatpush1.bf16.msra.mxu0 0
          %1869 = vmatprep.mubr.bf16.mxu0 0
          %1870 = vmatmul.mubr.bf16.gmra.mrb[0].mxu0 %v1762
          %v1871 = vpop.f32.mrb[0].mxu0
          %v1872 = vadd.f32 %v1788, %v1871
          %v1873 = vpop.f32.mrb[0].mxu0
          %v1874 = vpop.f32.mrb[0].mxu0
          %v1875 = vadd.f32 %v1788, %v1874
          %v1876 = vpop.f32.mrb[0].mxu0
          %1877 = vmatprep.mubr.bf16.mxu0 0
          %1878 = vmatmul.mubr.bf16.gmra.mrb[0].mxu0 %v1763
          %v1879 = vpop.f32.mrb[0].mxu0
          %v1880 = vadd.f32 %v1788, %v1879
          %v1881 = vpop.f32.mrb[0].mxu0
          %v1882 = vpop.f32.mrb[0].mxu0
          %v1883 = vadd.f32 %v1788, %v1882
          %v1884 = vpop.f32.mrb[0].mxu0
          %1885 = vmatprep.mubr.bf16.mxu0 0
          %1886 = vmatmul.mubr.bf16.gmra.mrb[0].mxu0 %v1764
          %v1887 = vpop.f32.mrb[0].mxu0
          %v1888 = vadd.f32 %v1788, %v1887
          %v1889 = vpop.f32.mrb[0].mxu0
          %v1890 = vpop.f32.mrb[0].mxu0
          %v1891 = vadd.f32 %v1788, %v1890
          %v1892 = vpop.f32.mrb[0].mxu0
          %1893 = vmatprep.mubr.bf16.mxu0 0
          %1894 = vmatmul.mubr.bf16.gmra.mrb[0].mxu0 %v1765
          %v1895 = vpop.f32.mrb[0].mxu0
          %v1896 = vadd.f32 %v1788, %v1895
          %v1897 = vpop.f32.mrb[0].mxu0
          %v1898 = vpop.f32.mrb[0].mxu0
          %v1899 = vadd.f32 %v1788, %v1898
          %v1900 = vpop.f32.mrb[0].mxu0
          %1901 = vmatprep.mubr.bf16.mxu0 0
          %1902 = vmatmul.mubr.bf16.gmra.mrb[0].mxu0 %v1766
          %v1903 = vpop.f32.mrb[0].mxu0
          %v1904 = vadd.f32 %v1788, %v1903
          %v1905 = vpop.f32.mrb[0].mxu0
          %v1906 = vpop.f32.mrb[0].mxu0
          %v1907 = vpop.f32.mrb[0].mxu0
          %1908 = vdwg.mxu0
          %v1909 = vxor.u32 %v1872, 2147483648
          %v1910 = vxor.u32 %v1875, 2147483648
          %v1911 = vxor.u32 %v1880, 2147483648
          %v1912 = vxor.u32 %v1883, 2147483648
          %v1913 = vxor.u32 %v1888, 2147483648
          %v1914 = vxor.u32 %v1891, 2147483648
          %v1915 = vxor.u32 %v1896, 2147483648
          %v1916 = vxor.u32 %v1899, 2147483648
          %v1917 = vxor.u32 %v1904, 2147483648
          %v1918 = vmul.f32 %v1909, 1.442695
          %v1919 = vpow.pop %v1918
          %v1920 = vmul.f32 %v1910, 1.442695
          %v1921 = vpow.pop %v1920
          %v1922 = vmul.f32 %v1911, 1.442695
          %v1923 = vpow.pop %v1922
          %v1924 = vmul.f32 %v1912, 1.442695
          %v1925 = vpow.pop %v1924
          %v1926 = vmul.f32 %v1913, 1.442695
          %v1927 = vpow.pop %v1926
          %v1928 = vmul.f32 %v1914, 1.442695
          %v1929 = vpow.pop %v1928
          %v1930 = vmul.f32 %v1915, 1.442695
          %v1931 = vpow.pop %v1930
          %v1932 = vmul.f32 %v1916, 1.442695
          %v1933 = vpow.pop %v1932
          %v1934 = vmul.f32 %v1917, 1.442695
          %v1935 = vpow.pop %v1934
          %v1936 = vadd.f32 %v1919, 1.0
          %v1937 = vadd.f32 %v1921, 1.0
          %v1938 = vadd.f32 %v1923, 1.0
          %v1939 = vadd.f32 %v1925, 1.0
          %v1940 = vadd.f32 %v1927, 1.0
          %v1941 = vadd.f32 %v1929, 1.0
          %v1942 = vadd.f32 %v1931, 1.0
          %v1943 = vadd.f32 %v1933, 1.0
          %v1944 = vadd.f32 %v1935, 1.0
          %v1945 = vrcp.pop %v1936
          %v1946 = vmul.f32 1.0, %v1945
          %v1947 = vrcp.pop %v1937
          %v1948 = vmul.f32 1.0, %v1947
          %v1949 = vrcp.pop %v1938
          %v1950 = vmul.f32 1.0, %v1949
          %v1951 = vrcp.pop %v1939
          %v1952 = vmul.f32 1.0, %v1951
          %v1953 = vrcp.pop %v1940
          %v1954 = vmul.f32 1.0, %v1953
          %v1955 = vrcp.pop %v1941
          %v1956 = vmul.f32 1.0, %v1955
          %v1957 = vrcp.pop %v1942
          %v1958 = vmul.f32 1.0, %v1957
          %v1959 = vrcp.pop %v1943
          %v1960 = vmul.f32 1.0, %v1959
          %v1961 = vrcp.pop %v1944
          %v1962 = vmul.f32 1.0, %v1961
          %v1963 = vmul.f32 %v1872, %v1946
          %v1964 = vmul.f32 %v1875, %v1948
          %v1965 = vmul.f32 %v1880, %v1950
          %v1966 = vmul.f32 %v1883, %v1952
          %v1967 = vmul.f32 %v1888, %v1954
          %v1968 = vmul.f32 %v1891, %v1956
          %v1969 = vmul.f32 %v1896, %v1958
          %v1970 = vmul.f32 %v1899, %v1960
          %v1971 = vmul.f32 %v1904, %v1962
          %v1972 = vpack.c.bf16 %v1964, %v1963
          %v1973 = vpack.c.bf16 %v1966, %v1965
          %v1974 = vpack.c.bf16 %v1968, %v1967
          %v1975 = vpack.c.bf16 %v1970, %v1969
          %v1976 = vpack.c.bf16 %v1971, %v1971
          %v1977 = vld [vmem:[#allocation25] sm:$0xf]
          %v1978 = vld [vmem:[#allocation25 + $0x4] sm:$0xf]
          %v1979 = vld [vmem:[#allocation25 + $0x8] sm:$0xf]
          %v1980 = vld [vmem:[#allocation25 + $0xc] sm:$0xf]
          %v1981 = vld [vmem:[#allocation25 + $0x10] sm:$0xf]
          %v1982 = vld [vmem:[#allocation25 + $0x14] sm:$0xf]
          %v1983 = vld [vmem:[#allocation25 + $0x18] sm:$0xf]
          %v1984 = vld [vmem:[#allocation25 + $0x1c] sm:$0xf]
          %v1985 = vld [vmem:[#allocation25 + $0x20] sm:$0xf]
          %v1986 = vld [vmem:[#allocation25 + $0x24] sm:$0xf]
          %v1987 = vld [vmem:[#allocation25 + $0x28] sm:$0xf]
          %v1988 = vld [vmem:[#allocation25 + $0x2c] sm:$0xf]
          %v1989 = vld [vmem:[#allocation25 + $0x30] sm:$0xf]
          %v1990 = vld [vmem:[#allocation25 + $0x34] sm:$0xf]
          %v1991 = vld [vmem:[#allocation25 + $0x38] sm:$0xf]
          %v1992 = vld [vmem:[#allocation25 + $0x3c] sm:$0xf]
          %v1993 = vld [vmem:[#allocation26] sm:$0x1]
          %v1994 = vunpack.c.l.bf16 %v1993
          %v1995 = vlaneseq
          %v1996 = vshrl.u32 %v1995, 7
          %v1997 = vsub.s32 0, %v1996
          %v1998 = vrot.slane %v1994, %v1997
          %v2015 = vunpack.c.l.b16 %v1977
          %v2016 = vunpack.c.l.b16 %v1978
          %v2017 = vunpack.c.l.b16 %v1979
          %v2018 = vunpack.c.l.b16 %v1980
          %v2019 = vunpack.c.l.b16 %v1981
          %v2020 = vunpack.c.l.b16 %v1982
          %v2021 = vunpack.c.l.b16 %v1983
          %v2022 = vunpack.c.l.b16 %v1984
          %v2023 = vunpack.c.l.b16 %v1985
          %v2024 = vunpack.c.l.b16 %v1986
          %v2025 = vunpack.c.l.b16 %v1987
          %v2026 = vunpack.c.l.b16 %v1988
          %v2027 = vunpack.c.l.b16 %v1989
          %v2028 = vunpack.c.l.b16 %v1990
          %v2029 = vunpack.c.l.b16 %v1991
          %v2030 = vunpack.c.l.b16 %v1992
          %v2031 = vpack.c.b16 %v2016, %v2015
          %v2032 = vpack.c.b16 %v2018, %v2017
          %v2033 = vpack.c.b16 %v2020, %v2019
          %v2034 = vpack.c.b16 %v2022, %v2021
          %v2035 = vpack.c.b16 %v2024, %v2023
          %v2036 = vpack.c.b16 %v2026, %v2025
          %v2037 = vpack.c.b16 %v2028, %v2027
          %v2038 = vpack.c.b16 %v2030, %v2029
          %2047 = vmatprep.subr.bf16.mxu0 0
          %2048 = vmatpush1.bf16.msra.mxu0 %v2031
          %2049 = vmatprep.subr.bf16.mxu0 0
          %2050 = vmatpush1.bf16.msra.mxu0 %v2032
          %2051 = vmatprep.subr.bf16.mxu0 0
          %2052 = vmatpush1.bf16.msra.mxu0 %v2033
          %2053 = vmatprep.subr.bf16.mxu0 0
          %2054 = vmatpush1.bf16.msra.mxu0 %v2034
          %2055 = vmatprep.subr.bf16.mxu0 0
          %2056 = vmatpush1.bf16.msra.mxu0 %v2035
          %2057 = vmatprep.subr.bf16.mxu0 0
          %2058 = vmatpush1.bf16.msra.mxu0 %v2036
          %2059 = vmatprep.subr.bf16.mxu0 0
          %2060 = vmatpush1.bf16.msra.mxu0 %v2037
          %2061 = vmatprep.subr.bf16.mxu0 0
          %2062 = vmatpush1.bf16.msra.mxu0 %v2038
          %2063 = vmatprep.subr.bf16.mxu0 0
          %2064 = vmatpush1.bf16.msra.mxu0 0
          %2065 = vmatprep.subr.bf16.mxu0 0
          %2066 = vmatpush1.bf16.msra.mxu0 0
          %2067 = vmatprep.subr.bf16.mxu0 0
          %2068 = vmatpush1.bf16.msra.mxu0 0
          %2069 = vmatprep.subr.bf16.mxu0 0
          %2070 = vmatpush1.bf16.msra.mxu0 0
          %2071 = vmatprep.subr.bf16.mxu0 0
          %2072 = vmatpush1.bf16.msra.mxu0 0
          %2073 = vmatprep.subr.bf16.mxu0 0
          %2074 = vmatpush1.bf16.msra.mxu0 0
          %2075 = vmatprep.subr.bf16.mxu0 0
          %2076 = vmatpush1.bf16.msra.mxu0 0
          %2077 = vmatprep.subr.bf16.mxu0 0
          %2078 = vmatpush1.bf16.msra.mxu0 0
          %2079 = vmatprep.mubr.bf16.mxu0 0
          %2080 = vmatmul.mubr.bf16.gmra.mrb[0].mxu0 %v1972
          %v2081 = vpop.f32.mrb[0].mxu0
          %v2082 = vadd.f32 %v1998, %v2081
          %v2083 = vpop.f32.mrb[0].mxu0
          %v2084 = vpop.f32.mrb[0].mxu0
          %v2085 = vadd.f32 %v1998, %v2084
          %v2086 = vpop.f32.mrb[0].mxu0
          %2087 = vmatprep.mubr.bf16.mxu0 0
          %2088 = vmatmul.mubr.bf16.gmra.mrb[0].mxu0 %v1973
          %v2089 = vpop.f32.mrb[0].mxu0
          %v2090 = vadd.f32 %v1998, %v2089
          %v2091 = vpop.f32.mrb[0].mxu0
          %v2092 = vpop.f32.mrb[0].mxu0
          %v2093 = vadd.f32 %v1998, %v2092
          %v2094 = vpop.f32.mrb[0].mxu0
          %2095 = vmatprep.mubr.bf16.mxu0 0
          %2096 = vmatmul.mubr.bf16.gmra.mrb[0].mxu0 %v1974
          %v2097 = vpop.f32.mrb[0].mxu0
          %v2098 = vadd.f32 %v1998, %v2097
          %v2099 = vpop.f32.mrb[0].mxu0
          %v2100 = vpop.f32.mrb[0].mxu0
          %v2101 = vadd.f32 %v1998, %v2100
          %v2102 = vpop.f32.mrb[0].mxu0
          %2103 = vmatprep.mubr.bf16.mxu0 0
          %2104 = vmatmul.mubr.bf16.gmra.mrb[0].mxu0 %v1975
          %v2105 = vpop.f32.mrb[0].mxu0
          %v2106 = vadd.f32 %v1998, %v2105
          %v2107 = vpop.f32.mrb[0].mxu0
          %v2108 = vpop.f32.mrb[0].mxu0
          %v2109 = vadd.f32 %v1998, %v2108
          %v2110 = vpop.f32.mrb[0].mxu0
          %2111 = vmatprep.mubr.bf16.mxu0 0
          %2112 = vmatmul.mubr.bf16.gmra.mrb[0].mxu0 %v1976
          %v2113 = vpop.f32.mrb[0].mxu0
          %v2114 = vadd.f32 %v1998, %v2113
          %v2115 = vpop.f32.mrb[0].mxu0
          %v2116 = vpop.f32.mrb[0].mxu0
          %v2117 = vpop.f32.mrb[0].mxu0
          %2118 = vdwg.mxu0
          %v2119 = vxor.u32 %v2082, 2147483648
          %v2120 = vxor.u32 %v2085, 2147483648
          %v2121 = vxor.u32 %v2090, 2147483648
          %v2122 = vxor.u32 %v2093, 2147483648
          %v2123 = vxor.u32 %v2098, 2147483648
          %v2124 = vxor.u32 %v2101, 2147483648
          %v2125 = vxor.u32 %v2106, 2147483648
          %v2126 = vxor.u32 %v2109, 2147483648
          %v2127 = vxor.u32 %v2114, 2147483648
          %v2128 = vmul.f32 %v2119, 1.442695
          %v2129 = vpow.pop %v2128
          %v2130 = vmul.f32 %v2120, 1.442695
          %v2131 = vpow.pop %v2130
          %v2132 = vmul.f32 %v2121, 1.442695
          %v2133 = vpow.pop %v2132
          %v2134 = vmul.f32 %v2122, 1.442695
          %v2135 = vpow.pop %v2134
          %v2136 = vmul.f32 %v2123, 1.442695
          %v2137 = vpow.pop %v2136
          %v2138 = vmul.f32 %v2124, 1.442695
          %v2139 = vpow.pop %v2138
          %v2140 = vmul.f32 %v2125, 1.442695
          %v2141 = vpow.pop %v2140
          %v2142 = vmul.f32 %v2126, 1.442695
          %v2143 = vpow.pop %v2142
          %v2144 = vmul.f32 %v2127, 1.442695
          %v2145 = vpow.pop %v2144
          %v2146 = vadd.f32 %v2129, 1.0
          %v2147 = vadd.f32 %v2131, 1.0
          %v2148 = vadd.f32 %v2133, 1.0
          %v2149 = vadd.f32 %v2135, 1.0
          %v2150 = vadd.f32 %v2137, 1.0
          %v2151 = vadd.f32 %v2139, 1.0
          %v2152 = vadd.f32 %v2141, 1.0
          %v2153 = vadd.f32 %v2143, 1.0
          %v2154 = vadd.f32 %v2145, 1.0
          %v2155 = vrcp.pop %v2146
          %v2156 = vmul.f32 1.0, %v2155
          %v2157 = vrcp.pop %v2147
          %v2158 = vmul.f32 1.0, %v2157
          %v2159 = vrcp.pop %v2148
          %v2160 = vmul.f32 1.0, %v2159
          %v2161 = vrcp.pop %v2149
          %v2162 = vmul.f32 1.0, %v2161
          %v2163 = vrcp.pop %v2150
          %v2164 = vmul.f32 1.0, %v2163
          %v2165 = vrcp.pop %v2151
          %v2166 = vmul.f32 1.0, %v2165
          %v2167 = vrcp.pop %v2152
          %v2168 = vmul.f32 1.0, %v2167
          %v2169 = vrcp.pop %v2153
          %v2170 = vmul.f32 1.0, %v2169
          %v2171 = vrcp.pop %v2154
          %v2172 = vmul.f32 1.0, %v2171
          %v2173 = vmul.f32 %v2082, %v2156
          %v2174 = vmul.f32 %v2085, %v2158
          %v2175 = vmul.f32 %v2090, %v2160
          %v2176 = vmul.f32 %v2093, %v2162
          %v2177 = vmul.f32 %v2098, %v2164
          %v2178 = vmul.f32 %v2101, %v2166
          %v2179 = vmul.f32 %v2106, %v2168
          %v2180 = vmul.f32 %v2109, %v2170
          %v2181 = vmul.f32 %v2114, %v2172
          %v2182 = vpack.c.bf16 %v2174, %v2173
          %v2183 = vpack.c.bf16 %v2176, %v2175
          %v2184 = vpack.c.bf16 %v2178, %v2177
          %v2185 = vpack.c.bf16 %v2180, %v2179
          %v2186 = vpack.c.bf16 %v2181, %v2181
          %v2187 = vld [vmem:[%s16] sm:$0xf]
          %v2188 = vld [vmem:[%s16 + $0x4] sm:$0xf]
          %v2189 = vld [vmem:[%s16 + $0x8] sm:$0xf]
          %v2190 = vld [vmem:[%s16 + $0xc] sm:$0xf]
          %v2191 = vld [vmem:[%s16 + $0x10] sm:$0xf]
          %v2192 = vld [vmem:[%s16 + $0x14] sm:$0xf]
          %v2193 = vld [vmem:[%s16 + $0x18] sm:$0xf]
          %v2194 = vld [vmem:[%s16 + $0x1c] sm:$0xf]
          %v2195 = vld [vmem:[%s16 + $0x20] sm:$0xf]
          %v2196 = vld [vmem:[%s16 + $0x24] sm:$0xf]
          %v2197 = vld [vmem:[%s16 + $0x28] sm:$0xf]
          %v2198 = vld [vmem:[%s16 + $0x2c] sm:$0xf]
          %v2199 = vld [vmem:[%s16 + $0x30] sm:$0xf]
          %v2200 = vld [vmem:[%s16 + $0x34] sm:$0xf]
          %v2201 = vld [vmem:[%s16 + $0x38] sm:$0xf]
          %v2202 = vld [vmem:[%s16 + $0x3c] sm:$0xf]
          %v2203 = vld [vmem:[%s17] sm:$0x1]
          %v2204 = vunpack.c.l.bf16 %v2203
          %v2205 = vlaneseq
          %v2206 = vshrl.u32 %v2205, 7
          %v2207 = vsub.s32 0, %v2206
          %v2208 = vrot.slane %v2204, %v2207
          %v2225 = vunpack.c.l.b16 %v2187
          %v2226 = vunpack.c.l.b16 %v2188
          %v2227 = vunpack.c.l.b16 %v2189
          %v2228 = vunpack.c.l.b16 %v2190
          %v2229 = vunpack.c.l.b16 %v2191
          %v2230 = vunpack.c.l.b16 %v2192
          %v2231 = vunpack.c.l.b16 %v2193
          %v2232 = vunpack.c.l.b16 %v2194
          %v2233 = vunpack.c.l.b16 %v2195
          %v2234 = vunpack.c.l.b16 %v2196
          %v2235 = vunpack.c.l.b16 %v2197
          %v2236 = vunpack.c.l.b16 %v2198
          %v2237 = vunpack.c.l.b16 %v2199
          %v2238 = vunpack.c.l.b16 %v2200
          %v2239 = vunpack.c.l.b16 %v2201
          %v2240 = vunpack.c.l.b16 %v2202
          %v2241 = vpack.c.b16 %v2226, %v2225
          %v2242 = vpack.c.b16 %v2228, %v2227
          %v2243 = vpack.c.b16 %v2230, %v2229
          %v2244 = vpack.c.b16 %v2232, %v2231
          %v2245 = vpack.c.b16 %v2234, %v2233
          %v2246 = vpack.c.b16 %v2236, %v2235
          %v2247 = vpack.c.b16 %v2238, %v2237
          %v2248 = vpack.c.b16 %v2240, %v2239
          %2257 = vmatprep.subr.bf16.mxu0 0
          %2258 = vmatpush1.bf16.msra.mxu0 %v2241
          %2259 = vmatprep.subr.bf16.mxu0 0
          %2260 = vmatpush1.bf16.msra.mxu0 %v2242
          %2261 = vmatprep.subr.bf16.mxu0 0
          %2262 = vmatpush1.bf16.msra.mxu0 %v2243
          %2263 = vmatprep.subr.bf16.mxu0 0
          %2264 = vmatpush1.bf16.msra.mxu0 %v2244
          %2265 = vmatprep.subr.bf16.mxu0 0
          %2266 = vmatpush1.bf16.msra.mxu0 %v2245
          %2267 = vmatprep.subr.bf16.mxu0 0
          %2268 = vmatpush1.bf16.msra.mxu0 %v2246
          %2269 = vmatprep.subr.bf16.mxu0 0
          %2270 = vmatpush1.bf16.msra.mxu0 %v2247
          %2271 = vmatprep.subr.bf16.mxu0 0
          %2272 = vmatpush1.bf16.msra.mxu0 %v2248
          %2273 = vmatprep.subr.bf16.mxu0 0
          %2274 = vmatpush1.bf16.msra.mxu0 0
          %2275 = vmatprep.subr.bf16.mxu0 0
          %2276 = vmatpush1.bf16.msra.mxu0 0
          %2277 = vmatprep.subr.bf16.mxu0 0
          %2278 = vmatpush1.bf16.msra.mxu0 0
          %2279 = vmatprep.subr.bf16.mxu0 0
          %2280 = vmatpush1.bf16.msra.mxu0 0
          %2281 = vmatprep.subr.bf16.mxu0 0
          %2282 = vmatpush1.bf16.msra.mxu0 0
          %2283 = vmatprep.subr.bf16.mxu0 0
          %2284 = vmatpush1.bf16.msra.mxu0 0
          %2285 = vmatprep.subr.bf16.mxu0 0
          %2286 = vmatpush1.bf16.msra.mxu0 0
          %2287 = vmatprep.subr.bf16.mxu0 0
          %2288 = vmatpush1.bf16.msra.mxu0 0
          %2289 = vmatprep.mubr.bf16.mxu0 0
          %2290 = vmatmul.mubr.bf16.gmra.mrb[0].mxu0 %v2182
          %v2291 = vpop.f32.mrb[0].mxu0
          %v2292 = vadd.f32 %v2208, %v2291
          %v2293 = vpop.f32.mrb[0].mxu0
          %v2294 = vpop.f32.mrb[0].mxu0
          %v2295 = vadd.f32 %v2208, %v2294
          %v2296 = vpop.f32.mrb[0].mxu0
          %2297 = vmatprep.mubr.bf16.mxu0 0
          %2298 = vmatmul.mubr.bf16.gmra.mrb[0].mxu0 %v2183
          %v2299 = vpop.f32.mrb[0].mxu0
          %v2300 = vadd.f32 %v2208, %v2299
          %v2301 = vpop.f32.mrb[0].mxu0
          %v2302 = vpop.f32.mrb[0].mxu0
          %v2303 = vadd.f32 %v2208, %v2302
          %v2304 = vpop.f32.mrb[0].mxu0
          %2305 = vmatprep.mubr.bf16.mxu0 0
          %2306 = vmatmul.mubr.bf16.gmra.mrb[0].mxu0 %v2184
          %v2307 = vpop.f32.mrb[0].mxu0
          %v2308 = vadd.f32 %v2208, %v2307
          %v2309 = vpop.f32.mrb[0].mxu0
          %v2310 = vpop.f32.mrb[0].mxu0
          %v2311 = vadd.f32 %v2208, %v2310
          %v2312 = vpop.f32.mrb[0].mxu0
          %2313 = vmatprep.mubr.bf16.mxu0 0
          %2314 = vmatmul.mubr.bf16.gmra.mrb[0].mxu0 %v2185
          %v2315 = vpop.f32.mrb[0].mxu0
          %v2316 = vadd.f32 %v2208, %v2315
          %v2317 = vpop.f32.mrb[0].mxu0
          %v2318 = vpop.f32.mrb[0].mxu0
          %v2319 = vadd.f32 %v2208, %v2318
          %v2320 = vpop.f32.mrb[0].mxu0
          %2321 = vmatprep.mubr.bf16.mxu0 0
          %2322 = vmatmul.mubr.bf16.gmra.mrb[0].mxu0 %v2186
          %v2323 = vpop.f32.mrb[0].mxu0
          %v2324 = vadd.f32 %v2208, %v2323
          %v2325 = vpop.f32.mrb[0].mxu0
          %v2326 = vpop.f32.mrb[0].mxu0
          %v2327 = vpop.f32.mrb[0].mxu0
          %2328 = vdwg.mxu0
          %v2329 = vxor.u32 %v2292, 2147483648
          %v2330 = vxor.u32 %v2295, 2147483648
          %v2331 = vxor.u32 %v2300, 2147483648
          %v2332 = vxor.u32 %v2303, 2147483648
          %v2333 = vxor.u32 %v2308, 2147483648
          %v2334 = vxor.u32 %v2311, 2147483648
          %v2335 = vxor.u32 %v2316, 2147483648
          %v2336 = vxor.u32 %v2319, 2147483648
          %v2337 = vxor.u32 %v2324, 2147483648
          %v2338 = vmul.f32 %v2329, 1.442695
          %v2339 = vpow.pop %v2338
          %v2340 = vmul.f32 %v2330, 1.442695
          %v2341 = vpow.pop %v2340
          %v2342 = vmul.f32 %v2331, 1.442695
          %v2343 = vpow.pop %v2342
          %v2344 = vmul.f32 %v2332, 1.442695
          %v2345 = vpow.pop %v2344
          %v2346 = vmul.f32 %v2333, 1.442695
          %v2347 = vpow.pop %v2346
          %v2348 = vmul.f32 %v2334, 1.442695
          %v2349 = vpow.pop %v2348
          %v2350 = vmul.f32 %v2335, 1.442695
          %v2351 = vpow.pop %v2350
          %v2352 = vmul.f32 %v2336, 1.442695
          %v2353 = vpow.pop %v2352
          %v2354 = vmul.f32 %v2337, 1.442695
          %v2355 = vpow.pop %v2354
          %v2356 = vadd.f32 %v2339, 1.0
          %v2357 = vadd.f32 %v2341, 1.0
          %v2358 = vadd.f32 %v2343, 1.0
          %v2359 = vadd.f32 %v2345, 1.0
          %v2360 = vadd.f32 %v2347, 1.0
          %v2361 = vadd.f32 %v2349, 1.0
          %v2362 = vadd.f32 %v2351, 1.0
          %v2363 = vadd.f32 %v2353, 1.0
          %v2364 = vadd.f32 %v2355, 1.0
          %v2365 = vrcp.pop %v2356
          %v2366 = vmul.f32 1.0, %v2365
          %v2367 = vrcp.pop %v2357
          %v2368 = vmul.f32 1.0, %v2367
          %v2369 = vrcp.pop %v2358
          %v2370 = vmul.f32 1.0, %v2369
          %v2371 = vrcp.pop %v2359
          %v2372 = vmul.f32 1.0, %v2371
          %v2373 = vrcp.pop %v2360
          %v2374 = vmul.f32 1.0, %v2373
          %v2375 = vrcp.pop %v2361
          %v2376 = vmul.f32 1.0, %v2375
          %v2377 = vrcp.pop %v2362
          %v2378 = vmul.f32 1.0, %v2377
          %v2379 = vrcp.pop %v2363
          %v2380 = vmul.f32 1.0, %v2379
          %v2381 = vrcp.pop %v2364
          %v2382 = vmul.f32 1.0, %v2381
          %v2383 = vmul.f32 %v2292, %v2366
          %v2384 = vmul.f32 %v2295, %v2368
          %v2385 = vmul.f32 %v2300, %v2370
          %v2386 = vmul.f32 %v2303, %v2372
          %v2387 = vmul.f32 %v2308, %v2374
          %v2388 = vmul.f32 %v2311, %v2376
          %v2389 = vmul.f32 %v2316, %v2378
          %v2390 = vmul.f32 %v2319, %v2380
          %v2391 = vmul.f32 %v2324, %v2382
          %v2392 = vpack.c.bf16 %v2384, %v2383
          %v2393 = vpack.c.bf16 %v2386, %v2385
          %v2394 = vpack.c.bf16 %v2388, %v2387
          %v2395 = vpack.c.bf16 %v2390, %v2389
          %v2396 = vpack.c.bf16 %v2391, %v2391
          %v2397 = vld [vmem:[#allocation28] sm:$0xf]
          %v2398 = vld [vmem:[#allocation28 + $0x4] sm:$0xf]
          %v2399 = vld [vmem:[#allocation28 + $0x8] sm:$0xf]
          %v2400 = vld [vmem:[#allocation28 + $0xc] sm:$0xf]
          %v2401 = vld [vmem:[#allocation28 + $0x10] sm:$0xf]
          %v2402 = vld [vmem:[#allocation28 + $0x14] sm:$0xf]
          %v2403 = vld [vmem:[#allocation28 + $0x18] sm:$0xf]
          %v2404 = vld [vmem:[#allocation28 + $0x1c] sm:$0xf]
          %v2405 = vld [vmem:[#allocation28 + $0x20] sm:$0xf]
          %v2406 = vld [vmem:[#allocation28 + $0x24] sm:$0xf]
          %v2407 = vld [vmem:[#allocation28 + $0x28] sm:$0xf]
          %v2408 = vld [vmem:[#allocation28 + $0x2c] sm:$0xf]
          %v2409 = vld [vmem:[#allocation28 + $0x30] sm:$0xf]
          %v2410 = vld [vmem:[#allocation28 + $0x34] sm:$0xf]
          %v2411 = vld [vmem:[#allocation28 + $0x38] sm:$0xf]
          %v2412 = vld [vmem:[#allocation28 + $0x3c] sm:$0xf]
          %v2413 = vld [vmem:[%s19] sm:$0x1]
          %v2414 = vunpack.c.l.bf16 %v2413
          %v2415 = vlaneseq
          %v2416 = vshrl.u32 %v2415, 7
          %v2417 = vsub.s32 0, %v2416
          %v2418 = vrot.slane %v2414, %v2417
          %v2435 = vunpack.c.l.b16 %v2397
          %v2436 = vunpack.c.l.b16 %v2398
          %v2437 = vunpack.c.l.b16 %v2399
          %v2438 = vunpack.c.l.b16 %v2400
          %v2439 = vunpack.c.l.b16 %v2401
          %v2440 = vunpack.c.l.b16 %v2402
          %v2441 = vunpack.c.l.b16 %v2403
          %v2442 = vunpack.c.l.b16 %v2404
          %v2443 = vunpack.c.l.b16 %v2405
          %v2444 = vunpack.c.l.b16 %v2406
          %v2445 = vunpack.c.l.b16 %v2407
          %v2446 = vunpack.c.l.b16 %v2408
          %v2447 = vunpack.c.l.b16 %v2409
          %v2448 = vunpack.c.l.b16 %v2410
          %v2449 = vunpack.c.l.b16 %v2411
          %v2450 = vunpack.c.l.b16 %v2412
          %v2451 = vpack.c.b16 %v2436, %v2435
          %v2452 = vpack.c.b16 %v2438, %v2437
          %v2453 = vpack.c.b16 %v2440, %v2439
          %v2454 = vpack.c.b16 %v2442, %v2441
          %v2455 = vpack.c.b16 %v2444, %v2443
          %v2456 = vpack.c.b16 %v2446, %v2445
          %v2457 = vpack.c.b16 %v2448, %v2447
          %v2458 = vpack.c.b16 %v2450, %v2449
          %2467 = vmatprep.subr.bf16.mxu0 0
          %2468 = vmatpush1.bf16.msra.mxu0 %v2451
          %2469 = vmatprep.subr.bf16.mxu0 0
          %2470 = vmatpush1.bf16.msra.mxu0 %v2452
          %2471 = vmatprep.subr.bf16.mxu0 0
          %2472 = vmatpush1.bf16.msra.mxu0 %v2453
          %2473 = vmatprep.subr.bf16.mxu0 0
          %2474 = vmatpush1.bf16.msra.mxu0 %v2454
          %2475 = vmatprep.subr.bf16.mxu0 0
          %2476 = vmatpush1.bf16.msra.mxu0 %v2455
          %2477 = vmatprep.subr.bf16.mxu0 0
          %2478 = vmatpush1.bf16.msra.mxu0 %v2456
          %2479 = vmatprep.subr.bf16.mxu0 0
          %2480 = vmatpush1.bf16.msra.mxu0 %v2457
          %2481 = vmatprep.subr.bf16.mxu0 0
          %2482 = vmatpush1.bf16.msra.mxu0 %v2458
          %2483 = vmatprep.subr.bf16.mxu0 0
          %2484 = vmatpush1.bf16.msra.mxu0 0
          %2485 = vmatprep.subr.bf16.mxu0 0
          %2486 = vmatpush1.bf16.msra.mxu0 0
          %2487 = vmatprep.subr.bf16.mxu0 0
          %2488 = vmatpush1.bf16.msra.mxu0 0
          %2489 = vmatprep.subr.bf16.mxu0 0
          %2490 = vmatpush1.bf16.msra.mxu0 0
          %2491 = vmatprep.subr.bf16.mxu0 0
          %2492 = vmatpush1.bf16.msra.mxu0 0
          %2493 = vmatprep.subr.bf16.mxu0 0
          %2494 = vmatpush1.bf16.msra.mxu0 0
          %2495 = vmatprep.subr.bf16.mxu0 0
          %2496 = vmatpush1.bf16.msra.mxu0 0
          %2497 = vmatprep.subr.bf16.mxu0 0
          %2498 = vmatpush1.bf16.msra.mxu0 0
          %2499 = vmatprep.mubr.bf16.mxu0 0
          %2500 = vmatmul.mubr.bf16.gmra.mrb[0].mxu0 %v2392
          %v2501 = vpop.f32.mrb[0].mxu0
          %v2502 = vadd.f32 %v2418, %v2501
          %v2503 = vpop.f32.mrb[0].mxu0
          %v2504 = vpop.f32.mrb[0].mxu0
          %v2505 = vadd.f32 %v2418, %v2504
          %v2506 = vpop.f32.mrb[0].mxu0
          %2507 = vmatprep.mubr.bf16.mxu0 0
          %2508 = vmatmul.mubr.bf16.gmra.mrb[0].mxu0 %v2393
          %v2509 = vpop.f32.mrb[0].mxu0
          %v2510 = vadd.f32 %v2418, %v2509
          %v2511 = vpop.f32.mrb[0].mxu0
          %v2512 = vpop.f32.mrb[0].mxu0
          %v2513 = vadd.f32 %v2418, %v2512
          %v2514 = vpop.f32.mrb[0].mxu0
          %2515 = vmatprep.mubr.bf16.mxu0 0
          %2516 = vmatmul.mubr.bf16.gmra.mrb[0].mxu0 %v2394
          %v2517 = vpop.f32.mrb[0].mxu0
          %v2518 = vadd.f32 %v2418, %v2517
          %v2519 = vpop.f32.mrb[0].mxu0
          %v2520 = vpop.f32.mrb[0].mxu0
          %v2521 = vadd.f32 %v2418, %v2520
          %v2522 = vpop.f32.mrb[0].mxu0
          %2523 = vmatprep.mubr.bf16.mxu0 0
          %2524 = vmatmul.mubr.bf16.gmra.mrb[0].mxu0 %v2395
          %v2525 = vpop.f32.mrb[0].mxu0
          %v2526 = vadd.f32 %v2418, %v2525
          %v2527 = vpop.f32.mrb[0].mxu0
          %v2528 = vpop.f32.mrb[0].mxu0
          %v2529 = vadd.f32 %v2418, %v2528
          %v2530 = vpop.f32.mrb[0].mxu0
          %2531 = vmatprep.mubr.bf16.mxu0 0
          %2532 = vmatmul.mubr.bf16.gmra.mrb[0].mxu0 %v2396
          %v2533 = vpop.f32.mrb[0].mxu0
          %v2534 = vadd.f32 %v2418, %v2533
          %v2535 = vpop.f32.mrb[0].mxu0
          %v2536 = vpop.f32.mrb[0].mxu0
          %v2537 = vpop.f32.mrb[0].mxu0
          %2538 = vdwg.mxu0
          %2539 = vadd.xlane.f32.xlu0 %v2502
          %v2540 = vpop.xlane.xlu0 %2539
          %2541 = vadd.xlane.f32.xlu0 %v2505
          %v2542 = vpop.xlane.xlu0 %2541
          %2543 = vadd.xlane.f32.xlu0 %v2510
          %v2544 = vpop.xlane.xlu0 %2543
          %2545 = vadd.xlane.f32.xlu0 %v2513
          %v2546 = vpop.xlane.xlu0 %2545
          %2547 = vadd.xlane.f32.xlu0 %v2518
          %v2548 = vpop.xlane.xlu0 %2547
          %2549 = vadd.xlane.f32.xlu0 %v2521
          %v2550 = vpop.xlane.xlu0 %2549
          %2551 = vadd.xlane.f32.xlu0 %v2526
          %v2552 = vpop.xlane.xlu0 %2551
          %2553 = vadd.xlane.f32.xlu0 %v2529
          %v2554 = vpop.xlane.xlu0 %2553
          %2555 = vadd.xlane.f32.xlu0 %v2534
          %v2556 = vpop.xlane.xlu0 %2555
          %v2557 = vrcp.pop 128.0
          %v2558 = vmul.f32 %v2540, %v2557
          %v2559 = vmul.f32 %v2542, %v2557
          %v2560 = vmul.f32 %v2544, %v2557
          %v2561 = vmul.f32 %v2546, %v2557
          %v2562 = vmul.f32 %v2548, %v2557
          %v2563 = vmul.f32 %v2550, %v2557
          %v2564 = vmul.f32 %v2552, %v2557
          %v2565 = vmul.f32 %v2554, %v2557
          %v2566 = vmul.f32 %v2556, %v2557
          %v2567 = vmul.f32 %v2502, %v2502
          %v2568 = vmul.f32 %v2505, %v2505
          %v2569 = vmul.f32 %v2510, %v2510
          %v2570 = vmul.f32 %v2513, %v2513
          %v2571 = vmul.f32 %v2518, %v2518
          %v2572 = vmul.f32 %v2521, %v2521
          %v2573 = vmul.f32 %v2526, %v2526
          %v2574 = vmul.f32 %v2529, %v2529
          %v2575 = vmul.f32 %v2534, %v2534
          %2576 = vadd.xlane.f32.xlu0 %v2567
          %v2577 = vpop.xlane.xlu0 %2576
          %2578 = vadd.xlane.f32.xlu0 %v2568
          %v2579 = vpop.xlane.xlu0 %2578
          %2580 = vadd.xlane.f32.xlu0 %v2569
          %v2581 = vpop.xlane.xlu0 %2580
          %2582 = vadd.xlane.f32.xlu0 %v2570
          %v2583 = vpop.xlane.xlu0 %2582
          %2584 = vadd.xlane.f32.xlu0 %v2571
          %v2585 = vpop.xlane.xlu0 %2584
          %2586 = vadd.xlane.f32.xlu0 %v2572
          %v2587 = vpop.xlane.xlu0 %2586
          %2588 = vadd.xlane.f32.xlu0 %v2573
          %v2589 = vpop.xlane.xlu0 %2588
          %2590 = vadd.xlane.f32.xlu0 %v2574
          %v2591 = vpop.xlane.xlu0 %2590
          %2592 = vadd.xlane.f32.xlu0 %v2575
          %v2593 = vpop.xlane.xlu0 %2592
          %v2594 = vmul.f32 %v2577, %v2557
          %v2595 = vmul.f32 %v2579, %v2557
          %v2596 = vmul.f32 %v2581, %v2557
          %v2597 = vmul.f32 %v2583, %v2557
          %v2598 = vmul.f32 %v2585, %v2557
          %v2599 = vmul.f32 %v2587, %v2557
          %v2600 = vmul.f32 %v2589, %v2557
          %v2601 = vmul.f32 %v2591, %v2557
          %v2602 = vmul.f32 %v2593, %v2557
          %v2603 = vmul.f32 %v2558, %v2558
          %v2604 = vmul.f32 %v2559, %v2559
          %v2605 = vmul.f32 %v2560, %v2560
          %v2606 = vmul.f32 %v2561, %v2561
          %v2607 = vmul.f32 %v2562, %v2562
          %v2608 = vmul.f32 %v2563, %v2563
          %v2609 = vmul.f32 %v2564, %v2564
          %v2610 = vmul.f32 %v2565, %v2565
          %v2611 = vmul.f32 %v2566, %v2566
          %v2612 = vsub.f32 %v2594, %v2603
          %v2613 = vsub.f32 %v2595, %v2604
          %v2614 = vsub.f32 %v2596, %v2605
          %v2615 = vsub.f32 %v2597, %v2606
          %v2616 = vsub.f32 %v2598, %v2607
          %v2617 = vsub.f32 %v2599, %v2608
          %v2618 = vsub.f32 %v2600, %v2609
          %v2619 = vsub.f32 %v2601, %v2610
          %v2620 = vsub.f32 %v2602, %v2611
          %v2621 = vmax.f32 %v2612, 0.0
          %v2622 = vmax.f32 %v2613, 0.0
          %v2623 = vmax.f32 %v2614, 0.0
          %v2624 = vmax.f32 %v2615, 0.0
          %v2625 = vmax.f32 %v2616, 0.0
          %v2626 = vmax.f32 %v2617, 0.0
          %v2627 = vmax.f32 %v2618, 0.0
          %v2628 = vmax.f32 %v2619, 0.0
          %v2629 = vmax.f32 %v2620, 0.0
          %v2630 = vsub.f32 %v2502, %v2558
          %v2631 = vsub.f32 %v2505, %v2559
          %v2632 = vsub.f32 %v2510, %v2560
          %v2633 = vsub.f32 %v2513, %v2561
          %v2634 = vsub.f32 %v2518, %v2562
          %v2635 = vsub.f32 %v2521, %v2563
          %v2636 = vsub.f32 %v2526, %v2564
          %v2637 = vsub.f32 %v2529, %v2565
          %v2638 = vsub.f32 %v2534, %v2566
          %v2639 = vadd.f32 %v2621, 1e-05
          %v2640 = vadd.f32 %v2622, 1e-05
          %v2641 = vadd.f32 %v2623, 1e-05
          %v2642 = vadd.f32 %v2624, 1e-05
          %v2643 = vadd.f32 %v2625, 1e-05
          %v2644 = vadd.f32 %v2626, 1e-05
          %v2645 = vadd.f32 %v2627, 1e-05
          %v2646 = vadd.f32 %v2628, 1e-05
          %v2647 = vadd.f32 %v2629, 1e-05
          %v2648 = vrsqrt.pop %v2639
          %v2649 = vrsqrt.pop %v2640
          %v2650 = vrsqrt.pop %v2641
          %v2651 = vrsqrt.pop %v2642
          %v2652 = vrsqrt.pop %v2643
          %v2653 = vrsqrt.pop %v2644
          %v2654 = vrsqrt.pop %v2645
          %v2655 = vrsqrt.pop %v2646
          %v2656 = vrsqrt.pop %v2647
          %v2657 = vmul.f32 %v2630, %v2648
          %v2658 = vmul.f32 %v2631, %v2649
          %v2659 = vmul.f32 %v2632, %v2650
          %v2660 = vmul.f32 %v2633, %v2651
          %v2661 = vmul.f32 %v2634, %v2652
          %v2662 = vmul.f32 %v2635, %v2653
          %v2663 = vmul.f32 %v2636, %v2654
          %v2664 = vmul.f32 %v2637, %v2655
          %v2665 = vmul.f32 %v2638, %v2656
          %v2666 = vld [vmem:[%s20] sm:$0x1]
          %v2667 = vunpack.c.l.bf16 %v2666
          %v2668 = vlaneseq
          %v2669 = vshrl.u32 %v2668, 7
          %v2670 = vsub.s32 0, %v2669
          %v2671 = vrot.slane %v2667, %v2670
          %v2672 = vmul.f32 %v2657, %v2671
          %v2673 = vmul.f32 %v2658, %v2671
          %v2674 = vmul.f32 %v2659, %v2671
          %v2675 = vmul.f32 %v2660, %v2671
          %v2676 = vmul.f32 %v2661, %v2671
          %v2677 = vmul.f32 %v2662, %v2671
          %v2678 = vmul.f32 %v2663, %v2671
          %v2679 = vmul.f32 %v2664, %v2671
          %v2680 = vmul.f32 %v2665, %v2671
          %v2681 = vld [vmem:[%s21] sm:$0x1]
          %v2682 = vunpack.c.l.bf16 %v2681
          %v2683 = vlaneseq
          %v2684 = vshrl.u32 %v2683, 7
          %v2685 = vsub.s32 0, %v2684
          %v2686 = vrot.slane %v2682, %v2685
          %v2687 = vadd.f32 %v2672, %v2686
          %v2688 = vadd.f32 %v2673, %v2686
          %v2689 = vadd.f32 %v2674, %v2686
          %v2690 = vadd.f32 %v2675, %v2686
          %v2691 = vadd.f32 %v2676, %v2686
          %v2692 = vadd.f32 %v2677, %v2686
          %v2693 = vadd.f32 %v2678, %v2686
          %v2694 = vadd.f32 %v2679, %v2686
          %v2695 = vadd.f32 %v2680, %v2686
          %2696 = vst [vmem:[%s1005] sm:$0xff] %v2687
          %2697 = vst [vmem:[%s1005 + $0x8] sm:$0xff] %v2688
          %2698 = vst [vmem:[%s1005 + $0x10] sm:$0xff] %v2689
          %2699 = vst [vmem:[%s1005 + $0x18] sm:$0xff] %v2690
          %2700 = vst [vmem:[%s1005 + $0x20] sm:$0xff] %v2691
          %2701 = vst [vmem:[%s1005 + $0x28] sm:$0xff] %v2692
          %2702 = vst [vmem:[%s1005 + $0x30] sm:$0xff] %v2693
          %2703 = vst [vmem:[%s1005 + $0x38] sm:$0xff] %v2694
          %2704 = vst [vmem:[%s1005 + $0x40] sm:$0xff] %v2695
        $region184: #{encoder_forward.1} parent=107 // pred_fallthru
          _
        %s2705 = sand.u32 %s548, 1
        %s2706 = scalar_lea.sflag [#allocation4], %s2705
        %s2707 = sand.u32 %s548, 1
        %s2708 = smul.addr %s2707, 40
        %s2709 = scalar_lea.vmem [#allocation29], %s2708
        %s2710 = sand.u32 %s580, 1
        %s2711 = scalar_lea.sflag [#allocation31], %s2710
        %s2712 = sand.u32 %s580, 1
        %s2713 = smul.addr %s2712, 72
        %s2714 = scalar_lea.vmem [#allocation30], %s2713
        // Predicated region
        $region185: #{encoder_forward.1} parent=107 // pred_check
          %p2715 = pneg %p558
        $region186: #{encoder_forward.1} parent=107 // pred_check_branch
          %2717 = sbr.rel (%p2715) target = $region188
        $region187: #{encoder_forward.1} parent=107 // pred_region
          %p2718 = scmp.lt.s32.totalorder %s54, 0
          %s2719 = scalar_select %p2718, %s54, 0
          %s2720 = smul.u32 5, %s2719
          %s2722 = ssub.s32 640, 640
          %2723 = vsyncadd %s2706, %s2722
          %s2724 = smul.addr %s2720, 128
          %s2725 = scalar_lea.hbm %s22, %s2724
          %s2726 = sshll.u32 %s2709, 4
          %s2727 = int_to_ptr.vmem [resolvable:$true] %s2726
          %2732 = dma.vmem_to_hbm [thread:$0]  %s2727, 640, %s2725, %s2706, 128, 128, 8
        $region188: #{encoder_forward.1} parent=107 // pred_fallthru
          _
        // Predicated region
        $region189: #{encoder_forward.1} parent=107 // pred_check
          %p2733 = pneg %p590
        $region190: #{encoder_forward.1} parent=107 // pred_check_branch
          %2735 = sbr.rel (%p2733) target = $region192
        $region191: #{encoder_forward.1} parent=107 // pred_region
          %s2736 = ssub.s32 %s54, 1
          %p2737 = scmp.gt.s32.totalorder %s2736, 0
          %s2738 = scalar_select %p2737, %s2736, 0
          %s2739 = smul.u32 9, %s2738
          %s2741 = ssub.s32 1152, 1152
          %2742 = vsyncadd %s2711, %s2741
          %s2743 = smul.addr %s2739, 128
          %s2744 = scalar_lea.hbm %s23, %s2743
          %s2745 = sshll.u32 %s2714, 4
          %s2746 = int_to_ptr.vmem [resolvable:$true] %s2745
          %2751 = dma.vmem_to_hbm [thread:$0]  %s2746, 1152, %s2744, %s2711, 128, 128, 8
        $region192: #{encoder_forward.1} parent=107 // pred_fallthru
          _
      $region108: #{encoder_forward.1} parent=5 // pred_fallthru
        _
      %p2752 = scmp.le.s32.totalorder 2, %s49
      // Predicated region
      $region193: #{encoder_forward.1} parent=5 // pred_check
        %p2753 = pneg %p2752
      $region194: #{encoder_forward.1} parent=5 // pred_check_branch
        %2755 = sbr.rel (%p2753) target = $region196
      $region195: #{encoder_forward.1} parent=5 // pred_region
        %s2756 = ssub.s32 %s49, 2
        // Predicated region
        $region197: #{encoder_forward.1} parent=195 // pred_check
          %p2757 = pneg %p564
        $region198: #{encoder_forward.1} parent=195 // pred_check_branch
          %2759 = sbr.rel (%p2757) target = $region200
        $region199: #{encoder_forward.1} parent=195 // pred_region
          %s2760 = sand.u32 %s549, 1
          %s2761 = scalar_lea.sflag [#allocation4], %s2760
          %s2762 = sand.u32 %s549, 1
          %s2763 = smul.addr %s2762, 40
          %s2764 = scalar_lea.vmem [#allocation29], %s2763
          %2765 = dma.done %s2761, 640
        $region200: #{encoder_forward.1} parent=195 // pred_fallthru
          _
        // Predicated region
        $region201: #{encoder_forward.1} parent=195 // pred_check
          %p2766 = pneg %p596
        $region202: #{encoder_forward.1} parent=195 // pred_check_branch
          %2768 = sbr.rel (%p2766) target = $region204
        $region203: #{encoder_forward.1} parent=195 // pred_region
          %s2769 = sand.u32 %s581, 1
          %s2770 = scalar_lea.sflag [#allocation31], %s2769
          %s2771 = sand.u32 %s581, 1
          %s2772 = smul.addr %s2771, 72
          %s2773 = scalar_lea.vmem [#allocation30], %s2772
          %2774 = dma.done %s2770, 1152
        $region204: #{encoder_forward.1} parent=195 // pred_fallthru
          _
      $region196: #{encoder_forward.1} parent=5 // pred_fallthru
        _
    $region6: #{encoder_forward.1} parent=1 // loop_footer
      %s53 = sadd.s32 1, %s49
    $region7: #{encoder_forward.1} parent=1 // loop_footer_branch
      %48 = sbr.rel target = $region3
    $region8: #{encoder_forward.1} parent=1 // loop_exit
      _
    %2775 = vsyncpa [#allocation3], 1
    %s2776 = scalar_lea.sflag [#allocation3], 1
    %2777 = vsyncpa %s2776, 1
    %2778 = vsyncpa [#allocation6], 1
    %s2779 = scalar_lea.sflag [#allocation6], 1
    %2780 = vsyncpa %s2779, 1
    %2781 = vsyncpa [#allocation9], 1
    %2782 = vsyncpa [#allocation12], 1
    %2783 = vsyncpa [#allocation15], 1
    %2784 = vsyncpa [#allocation18], 1
    %2785 = vsyncpa [#allocation21], 1
    %2786 = vsyncpa [#allocation24], 1
    %2787 = vsyncpa [#allocation27], 1
    %2788 = vsyncpa [#allocation4], 1
    %s2789 = scalar_lea.sflag [#allocation4], 1
    %2790 = vsyncpa %s2789, 1
    %2791 = vsyncpa [#allocation31], 1
    %s2792 = scalar_lea.sflag [#allocation31], 1
    %2793 = vsyncpa %s2792, 1

</llo_original>
